<compile_context>
chip_gen: v7x
topology: tpu7x:2x2x1
jax: 0.10.0
libtpu: 0.0.40
codegen_flags: <defaults>
</compile_context>

<pallas_src>
import math
import numpy as np
import jax
import jax.numpy as jnp
from jax.experimental import pallas as pl
from jax.experimental.pallas import tpu as pltpu

# ----------------------- small, self-consistent config -----------------------
B, L, D = 2, 64, 64         # batch, seq_len, model dim  (BL = 128 -> full MXU M)
BL = B * L                  # flattened rows = 128
H = 4                       # n_heads (n_kv_heads defaults to n_heads -> n_rep == 1)
HD = D // H                 # head_dim = 16
MULTIPLE_OF = 32
EPS = 1e-5
# FeedForward hidden_dim per reference formula (hidden_dim=None)
_ff = 4 * D
_ff = int(2 * _ff / 3)
FF = MULTIPLE_OF * ((_ff + MULTIPLE_OF - 1) // MULTIPLE_OF)     # 192
FFP = 256                   # FF padded up to a 128-lane multiple (zero-pad columns)


# --------------------------------- kernel ------------------------------------
def transformer_block_kernel(x_ref, rope_ref, bias_ref, wqk_ref, wo_ref,
                             w13_ref, w2_ref, nw_ref, o_ref):
    f32 = jnp.float32
    bf16 = jnp.bfloat16
    x = x_ref[...]                                   # (BL, D) f32

    def rmsnorm(v, w):
        ms = jnp.mean(v * v, axis=-1, keepdims=True)
        return v * jax.lax.rsqrt(ms + EPS) * w

    # -------------------------- attention branch -----------------------------
    h1 = rmsnorm(x, nw_ref[0:1, :])                                  # (BL, D)
    # fused q|k projection: lane-dense (BL, 2D) = (128, 128) output.
    # 1/sqrt(HD) is already folded into the wq columns (wrapper-side).
    qk = jnp.dot(h1.astype(bf16), wqk_ref[...],
                 preferred_element_type=f32)                         # (BL, 2D)

    # interleaved RoPE on the fused q|k slab with precomputed tables:
    #   out = qk*cos_full + roll(qk,+1)*sin_even + roll(qk,-1)*sin_odd
    # sin_even is -sin on even lanes / 0 on odd, sin_odd is +sin on odd lanes / 0
    # on even, so no iota / parity select is needed.  Tables are per-sequence
    # (L, 2D) and tiled over the B batch copies here (sublane concat, cheap).
    cosf = jnp.concatenate([rope_ref[0]] * B, axis=0)                # (BL, 2D)
    sin_e = jnp.concatenate([rope_ref[1]] * B, axis=0)               # (BL, 2D)
    sin_o = jnp.concatenate([rope_ref[2]] * B, axis=0)               # (BL, 2D)
    W2D = 2 * D
    qk_r = (qk * cosf
            + pltpu.roll(qk, W2D - 1, 1) * sin_e     # out[j] = qk[j+1] (even lanes)
            + pltpu.roll(qk, 1, 1) * sin_o)          # out[j] = qk[j-1] (odd lanes)

    # single bf16 cast of the whole rotated q|k slab; heads slice from it.
    qk_bf = qk_r.astype(bf16)                                        # (BL, 2D)
    bias = bias_ref[...]                                             # (BL, BL) f32

    ohs = []
    for h in range(H):                               # H=4, unrolled
        qh = qk_bf[:, h * HD:(h + 1) * HD]           # (BL, HD) bf16
        kh = qk_bf[:, D + h * HD:D + (h + 1) * HD]   # (BL, HD) bf16
        vh = kh    # REFERENCE QUIRK: xv = repeat_kv(xk, n_rep) -> V is the rotated K
        s = jax.lax.dot_general(qh, kh, (((1,), (1,)), ((), ())),
                                preferred_element_type=f32)          # (BL, BL) f32
        s = s + bias                                 # block-diag + causal (additive)
        m = jnp.max(s, axis=-1, keepdims=True)
        e = jnp.exp(s - m)
        p = e * pl.reciprocal(jnp.sum(e, axis=-1, keepdims=True), approx=True)
        ohs.append(jnp.dot(p.astype(bf16), vh,
                           preferred_element_type=f32))              # (BL, HD)
    # consolidate the 4 per-head projections: one lane-concat + ONE wo matmul.
    o_concat = jnp.concatenate(ohs, axis=-1).astype(bf16)            # (BL, D)
    attn = jnp.dot(o_concat, wo_ref[...], preferred_element_type=f32)

    hres = x + attn

    # --------------------------- feed-forward branch --------------------------
    h2 = rmsnorm(hres, nw_ref[1:2, :])
    # fused (and zero-padded) w1|w3: both halves start on a 128-lane boundary.
    # (Padding FF=192 -> FFP=256 wastes ~33% FFN MXU columns; acceptable here since
    #  the kernel is latency-bound — revisit if the FFN becomes MXU/DMA visible.)
    ag = jnp.dot(h2.astype(bf16), w13_ref[...],
                 preferred_element_type=f32)                         # (BL, 2*FFP)
    a = ag[:, :FFP]                                                  # (BL, FFP)
    g = ag[:, FFP:]                                                  # (BL, FFP)
    ffn_in = a * jax.nn.sigmoid(a) * g       # padded lanes are exactly 0
    ffn = jnp.dot(ffn_in.astype(bf16), w2_ref[...],
                  preferred_element_type=f32)                        # (BL, D)

    o_ref[...] = hres + ffn


# -------------------------------- wrapper ------------------------------------
def transformer_block(x, rope, bias, wqk, wo, w13, w2, norms):
    x_flat = x.reshape(BL, D)

    def full(shape):
        n = len(shape)
        return pl.BlockSpec(shape, lambda i, _n=n: (0,) * _n)

    out = pl.pallas_call(
        transformer_block_kernel,
        out_shape=jax.ShapeDtypeStruct((BL, D), jnp.float32),
        grid_spec=pltpu.PrefetchScalarGridSpec(
            num_scalar_prefetch=0,
            grid=(1,),                                   # single step: whole batch
            in_specs=[
                full((BL, D)),          # x (flattened)
                full((3, L, 2 * D)),    # rope tables: [cos_full; sin_even; sin_odd]
                full((BL, BL)),         # additive block-diag + causal mask bias
                full((D, 2 * D)),       # fused wq|wk (wq pre-scaled) (bf16)
                full((D, D)),           # wo                          (bf16)
                full((D, 2 * FFP)),     # fused padded w1|w3          (bf16)
                full((FFP, D)),         # padded w2                   (bf16)
                full((2, D)),           # [attn_norm w; ffn_norm w]
            ],
            out_specs=full((BL, D)),
        ),
        compiler_params=pltpu.CompilerParams(
            dimension_semantics=("arbitrary",)),
    )(x_flat, rope, bias, wqk, wo, w13, w2, norms)
    return out.reshape(B, L, D)


# ------------------------- pure numpy reference -------------------------------
def ref_forward(x, cos, sin, wq, wk, wo, w1, w2, w3, anw, fnw):
    x = np.asarray(x, np.float64)
    wq, wk, wo = (np.asarray(a, np.float64) for a in (wq, wk, wo))
    w1, w2, w3 = (np.asarray(a, np.float64) for a in (w1, w2, w3))
    anw, fnw = np.asarray(anw, np.float64), np.asarray(fnw, np.float64)
    cos, sin = np.asarray(cos, np.float64), np.asarray(sin, np.float64)

    def rmsnorm(v, w):
        return v * (1.0 / np.sqrt(np.mean(v * v, -1, keepdims=True) + EPS)) * w

    h1 = rmsnorm(x, anw)
    q = (h1 @ wq).reshape(B, L, H, HD)
    k = (h1 @ wk).reshape(B, L, H, HD)
    qr, qi = q[..., 0::2], q[..., 1::2]
    kr, ki = k[..., 0::2], k[..., 1::2]
    c = cos[None, :, None, :]
    s = sin[None, :, None, :]
    q_out = np.stack([qr * c - qi * s, qr * s + qi * c], -1).reshape(B, L, H, HD)
    k_out = np.stack([kr * c - ki * s, kr * s + ki * c], -1).reshape(B, L, H, HD)
    v_out = k_out                      # reference quirk: xv = repeat_kv(xk, n_rep)

    qT = q_out.transpose(0, 2, 1, 3)
    kT = k_out.transpose(0, 2, 1, 3)
    vT = v_out.transpose(0, 2, 1, 3)
    sc = qT @ kT.transpose(0, 1, 3, 2) / math.sqrt(HD)
    mask = np.tril(np.ones((L, L), bool))
    sc = np.where(mask, sc, -np.inf)
    sc = sc - sc.max(-1, keepdims=True)
    p = np.exp(sc)
    p = p / p.sum(-1, keepdims=True)
    o = (p @ vT).transpose(0, 2, 1, 3).reshape(B, L, D)
    hres = x + o @ wo
    h2 = rmsnorm(hres, fnw)
    a = h2 @ w1
    g = h2 @ w3
    ffn = (a / (1.0 + np.exp(-a)) * g) @ w2
    return (hres + ffn).astype(np.float32)


# ----------------------------------- main -------------------------------------
if __name__ == "__main__":
    key = jax.random.PRNGKey(0)
    ks = jax.random.split(key, 12)
    x = jax.random.normal(ks[0], (B, L, D), jnp.float32)

    # master f32 weights (pre-transposed: y = x @ W)
    wq = jax.random.normal(ks[1], (D, D), jnp.float32) * 0.05
    wk = jax.random.normal(ks[2], (D, D), jnp.float32) * 0.05
    wo = jax.random.normal(ks[3], (D, D), jnp.float32) * 0.05
    w1 = jax.random.normal(ks[4], (D, FF), jnp.float32) * 0.05
    w2 = jax.random.normal(ks[5], (FF, D), jnp.float32) * 0.05
    w3 = jax.random.normal(ks[6], (D, FF), jnp.float32) * 0.05
    anw = (1.0 + 0.1 * jax.random.normal(ks[7], (1, D), jnp.float32))
    fnw = (1.0 + 0.1 * jax.random.normal(ks[8], (1, D), jnp.float32))

    # rotary frequencies: freqs_cos/freqs_sin of shape (L, HD//2) as in the module
    inv = 1.0 / (10000.0 ** (np.arange(0, HD, 2, dtype=np.float32) / HD))   # (HD//2,)
    t = np.arange(L, dtype=np.float32)
    f = np.outer(t, inv)                                                    # (L, HD//2)
    cos = np.cos(f).astype(np.float32)
    sin = np.sin(f).astype(np.float32)

    # ---- kernel-side precomputed operands ----
    # RoPE tables over the fused [q|k] lane layout (2*H head copies), per sequence
    # position only (tiled over batch in-kernel):
    #   cos_full[:, 2i] = cos_full[:, 2i+1] = cos[:, i]
    #   sin_even[:, 2i] = -sin[:, i],  sin_even[:, 2i+1] = 0
    #   sin_odd [:, 2i] = 0,           sin_odd [:, 2i+1] = +sin[:, i]
    zeros = np.zeros_like(sin)
    cos_head = np.repeat(cos, 2, axis=1)                                    # (L, HD)
    sin_e_head = np.stack([-sin, zeros], axis=-1).reshape(L, HD)            # (L, HD)
    sin_o_head = np.stack([zeros, sin], axis=-1).reshape(L, HD)             # (L, HD)
    rope = jnp.asarray(np.stack([np.tile(cos_head, (1, 2 * H)),
                                 np.tile(sin_e_head, (1, 2 * H)),
                                 np.tile(sin_o_head, (1, 2 * H))], axis=0)) # (3, L, 2D)

    # precomputed additive block-diagonal (per-batch) + causal mask bias on the
    # flattened (BL, BL) rows; f32 so the -1e30 fill is safe.
    r = np.arange(BL)
    allowed = (r[:, None] // L == r[None, :] // L) & (r[None, :] <= r[:, None])
    bias = jnp.asarray(np.where(allowed, 0.0, -1e30).astype(np.float32))    # (BL, BL)

    # fused q|k projection weight, with the 1/sqrt(head_dim) attention scale folded
    # into the wq columns (f32, before the bf16 cast); bf16 for the MXU.
    scale = 1.0 / math.sqrt(HD)
    wqk_b = jnp.concatenate([wq * scale, wk], axis=1).astype(jnp.bfloat16)  # (D, 2D)
    wo_b = wo.astype(jnp.bfloat16)                                          # (D, D)

    # fused + zero-padded w1|w3 (each half padded FF=192 -> FFP=256 so lane slices
    # in-kernel start on 128-lane boundaries); w2 row-padded to match.
    w13_pad = np.zeros((D, 2 * FFP), np.float32)
    w13_pad[:, :FF] = np.asarray(w1)
    w13_pad[:, FFP:FFP + FF] = np.asarray(w3)
    w13_b = jnp.asarray(w13_pad).astype(jnp.bfloat16)                       # (D, 2*FFP)
    w2_pad = np.zeros((FFP, D), np.float32)
    w2_pad[:FF, :] = np.asarray(w2)
    w2_b = jnp.asarray(w2_pad).astype(jnp.bfloat16)                         # (FFP, D)

    norms = jnp.concatenate([anw, fnw], axis=0)                             # (2, D)

    out = transformer_block(x, rope, bias, wqk_b, wo_b, w13_b, w2_b, norms)
    out = jax.block_until_ready(out)

    ref = ref_forward(np.asarray(x), cos, sin,
                      np.asarray(wq), np.asarray(wk), np.asarray(wo),
                      np.asarray(w1), np.asarray(w2), np.asarray(w3),
                      np.asarray(anw), np.asarray(fnw))
    # tolerance accounts for bf16 matmul operands (f32 accumulation) + approx recip
    np.testing.assert_allclose(np.asarray(out), ref, rtol=5e-2, atol=5e-2)

    print("KERNEL_OK")
</pallas_src>

<mosaic_0001>
module attributes {stable_mosaic.version = 11 : i64} {
  func.func @transformer_block_kernel(%arg0: i32, %arg1: memref<128x64xf32, #tpu.memory_space<vmem>>, %arg2: memref<3x64x128xf32, #tpu.memory_space<vmem>>, %arg3: memref<128x128xf32, #tpu.memory_space<vmem>>, %arg4: memref<64x128xbf16, #tpu.memory_space<vmem>>, %arg5: memref<64x64xbf16, #tpu.memory_space<vmem>>, %arg6: memref<64x512xbf16, #tpu.memory_space<vmem>>, %arg7: memref<256x64xbf16, #tpu.memory_space<vmem>>, %arg8: memref<2x64xf32, #tpu.memory_space<vmem>>, %arg9: memref<128x64xf32, #tpu.memory_space<vmem>>) attributes {dimension_semantics = [#tpu.dimension_semantics<arbitrary>], iteration_bounds = array<i64: 1>, scalar_prefetch = 0 : i64, scratch_operands = 0 : i64, tpu.core_type = #tpu.core_type<tc>, window_params = [{pipeline_mode = #tpu.pipeline_mode<synchronous>, transform_indices = @transform_0, window_bounds = array<i64: 128, 64>}, {pipeline_mode = #tpu.pipeline_mode<synchronous>, transform_indices = @transform_1, window_bounds = array<i64: 3, 64, 128>}, {pipeline_mode = #tpu.pipeline_mode<synchronous>, transform_indices = @transform_2, window_bounds = array<i64: 128, 128>}, {pipeline_mode = #tpu.pipeline_mode<synchronous>, transform_indices = @transform_3, window_bounds = array<i64: 64, 128>}, {pipeline_mode = #tpu.pipeline_mode<synchronous>, transform_indices = @transform_4, window_bounds = array<i64: 64, 64>}, {pipeline_mode = #tpu.pipeline_mode<synchronous>, transform_indices = @transform_5, window_bounds = array<i64: 64, 512>}, {pipeline_mode = #tpu.pipeline_mode<synchronous>, transform_indices = @transform_6, window_bounds = array<i64: 256, 64>}, {pipeline_mode = #tpu.pipeline_mode<synchronous>, transform_indices = @transform_7, window_bounds = array<i64: 2, 64>}, {pipeline_mode = #tpu.pipeline_mode<synchronous>, transform_indices = @transform_8, window_bounds = array<i64: 128, 64>}]} {
    %c0 = arith.constant 0 : index
    %c0_0 = arith.constant 0 : index
    %0 = vector.load %arg1[%c0, %c0_0] : memref<128x64xf32, #tpu.memory_space<vmem>>, vector<128x64xf32>
    %c0_1 = arith.constant 0 : index
    %c0_2 = arith.constant 0 : index
    %1 = vector.load %arg8[%c0_1, %c0_2] : memref<2x64xf32, #tpu.memory_space<vmem>>, vector<1x64xf32>
    %2 = arith.mulf %0, %0 : vector<128x64xf32>
    %cst = arith.constant dense<0.000000e+00> : vector<128xf32>
    %3 = vector.multi_reduction <add>, %2, %cst [1] : vector<128x64xf32> to vector<128xf32>
    %4 = vector.shape_cast %3 : vector<128xf32> to vector<128x1xf32>
    %cst_3 = arith.constant 6.400000e+01 : f32
    %5 = vector.broadcast %cst_3 : f32 to vector<128x1xf32>
    %6 = arith.divf %4, %5 : vector<128x1xf32>
    %cst_4 = arith.constant 9.99999974E-6 : f32
    %7 = vector.broadcast %cst_4 : f32 to vector<128x1xf32>
    %8 = arith.addf %6, %7 : vector<128x1xf32>
    %9 = math.rsqrt %8 : vector<128x1xf32>
    %10 = vector.broadcast %9 : vector<128x1xf32> to vector<128x64xf32>
    %11 = arith.mulf %0, %10 : vector<128x64xf32>
    %12 = vector.broadcast %1 : vector<1x64xf32> to vector<128x64xf32>
    %13 = arith.mulf %11, %12 : vector<128x64xf32>
    %14 = arith.truncf %13 : vector<128x64xf32> to vector<128x64xbf16>
    %c0_5 = arith.constant 0 : index
    %c0_6 = arith.constant 0 : index
    %15 = vector.load %arg4[%c0_5, %c0_6] : memref<64x128xbf16, #tpu.memory_space<vmem>>, vector<64x128xbf16>
    %cst_7 = arith.constant dense<0.000000e+00> : vector<128x128xf32>
    %16 = tpu.matmul %14, %15, %cst_7 {dimension_numbers = #tpu.dot_dimension_numbers<[1], [0], [0], [1], [0, 0, 1, 1], [], []>} : vector<128x64xbf16>, vector<64x128xbf16>, vector<128x128xf32> -> vector<128x128xf32>
    %c0_8 = arith.constant 0 : index
    %c0_9 = arith.constant 0 : index
    %c0_10 = arith.constant 0 : index
    %17 = vector.load %arg2[%c0_8, %c0_9, %c0_10] : memref<3x64x128xf32, #tpu.memory_space<vmem>>, vector<1x64x128xf32>
    %18 = vector.shape_cast %17 : vector<1x64x128xf32> to vector<64x128xf32>
    %19 = tpu.concatenate %18, %18 in 0 : vector<64x128xf32>, vector<64x128xf32> -> vector<128x128xf32>
    %c1 = arith.constant 1 : index
    %c0_11 = arith.constant 0 : index
    %c0_12 = arith.constant 0 : index
    %20 = vector.load %arg2[%c1, %c0_11, %c0_12] : memref<3x64x128xf32, #tpu.memory_space<vmem>>, vector<1x64x128xf32>
    %21 = vector.shape_cast %20 : vector<1x64x128xf32> to vector<64x128xf32>
    %22 = tpu.concatenate %21, %21 in 0 : vector<64x128xf32>, vector<64x128xf32> -> vector<128x128xf32>
    %c2 = arith.constant 2 : index
    %c0_13 = arith.constant 0 : index
    %c0_14 = arith.constant 0 : index
    %23 = vector.load %arg2[%c2, %c0_13, %c0_14] : memref<3x64x128xf32, #tpu.memory_space<vmem>>, vector<1x64x128xf32>
    %24 = vector.shape_cast %23 : vector<1x64x128xf32> to vector<64x128xf32>
    %25 = tpu.concatenate %24, %24 in 0 : vector<64x128xf32>, vector<64x128xf32> -> vector<128x128xf32>
    %26 = arith.mulf %16, %19 : vector<128x128xf32>
    %c127_i32 = arith.constant 127 : i32
    %27 = tpu.dynamic_rotate %16 by %c127_i32 dim 1 : vector<128x128xf32>, i32 -> vector<128x128xf32>
    %28 = arith.mulf %27, %22 : vector<128x128xf32>
    %29 = arith.addf %26, %28 : vector<128x128xf32>
    %c1_i32 = arith.constant 1 : i32
    %30 = tpu.dynamic_rotate %16 by %c1_i32 dim 1 : vector<128x128xf32>, i32 -> vector<128x128xf32>
    %31 = arith.mulf %30, %25 : vector<128x128xf32>
    %32 = arith.addf %29, %31 : vector<128x128xf32>
    %33 = arith.truncf %32 : vector<128x128xf32> to vector<128x128xbf16>
    %c0_15 = arith.constant 0 : index
    %c0_16 = arith.constant 0 : index
    %34 = vector.load %arg3[%c0_15, %c0_16] : memref<128x128xf32, #tpu.memory_space<vmem>>, vector<128x128xf32>
    %35 = vector.extract_strided_slice %33 {offsets = [0, 0], sizes = [128, 16], strides = [1, 1]} : vector<128x128xbf16> to vector<128x16xbf16>
    %36 = vector.extract_strided_slice %33 {offsets = [0, 64], sizes = [128, 16], strides = [1, 1]} : vector<128x128xbf16> to vector<128x16xbf16>
    %cst_17 = arith.constant dense<0.000000e+00> : vector<128x128xf32>
    %37 = tpu.matmul %35, %36, %cst_17 {dimension_numbers = #tpu.dot_dimension_numbers<[1], [1], [0], [0], [0, 0, 1, 0], [], []>} : vector<128x16xbf16>, vector<128x16xbf16>, vector<128x128xf32> -> vector<128x128xf32>
    %38 = arith.addf %37, %34 : vector<128x128xf32>
    %cst_18 = arith.constant dense<0xFF800000> : vector<128xf32>
    %39 = vector.multi_reduction <maximumf>, %38, %cst_18 [1] : vector<128x128xf32> to vector<128xf32>
    %40 = vector.shape_cast %39 : vector<128xf32> to vector<128x1xf32>
    %41 = vector.broadcast %40 : vector<128x1xf32> to vector<128x128xf32>
    %42 = arith.subf %38, %41 : vector<128x128xf32>
    %43 = math.exp %42 : vector<128x128xf32>
    %cst_19 = arith.constant dense<0.000000e+00> : vector<128xf32>
    %44 = vector.multi_reduction <add>, %43, %cst_19 [1] : vector<128x128xf32> to vector<128xf32>
    %45 = vector.shape_cast %44 : vector<128xf32> to vector<128x1xf32>
    %46 = tpu.reciprocal %45 {approx = true} : vector<128x1xf32> -> vector<128x1xf32>
    %47 = vector.broadcast %46 : vector<128x1xf32> to vector<128x128xf32>
    %48 = arith.mulf %43, %47 : vector<128x128xf32>
    %49 = arith.truncf %48 : vector<128x128xf32> to vector<128x128xbf16>
    %cst_20 = arith.constant dense<0.000000e+00> : vector<128x16xf32>
    %50 = tpu.matmul %49, %36, %cst_20 {dimension_numbers = #tpu.dot_dimension_numbers<[1], [0], [0], [1], [0, 0, 1, 1], [], []>} : vector<128x128xbf16>, vector<128x16xbf16>, vector<128x16xf32> -> vector<128x16xf32>
    %51 = vector.extract_strided_slice %33 {offsets = [0, 16], sizes = [128, 16], strides = [1, 1]} : vector<128x128xbf16> to vector<128x16xbf16>
    %52 = vector.extract_strided_slice %33 {offsets = [0, 80], sizes = [128, 16], strides = [1, 1]} : vector<128x128xbf16> to vector<128x16xbf16>
    %cst_21 = arith.constant dense<0.000000e+00> : vector<128x128xf32>
    %53 = tpu.matmul %51, %52, %cst_21 {dimension_numbers = #tpu.dot_dimension_numbers<[1], [1], [0], [0], [0, 0, 1, 0], [], []>} : vector<128x16xbf16>, vector<128x16xbf16>, vector<128x128xf32> -> vector<128x128xf32>
    %54 = arith.addf %53, %34 : vector<128x128xf32>
    %cst_22 = arith.constant dense<0xFF800000> : vector<128xf32>
    %55 = vector.multi_reduction <maximumf>, %54, %cst_22 [1] : vector<128x128xf32> to vector<128xf32>
    %56 = vector.shape_cast %55 : vector<128xf32> to vector<128x1xf32>
    %57 = vector.broadcast %56 : vector<128x1xf32> to vector<128x128xf32>
    %58 = arith.subf %54, %57 : vector<128x128xf32>
    %59 = math.exp %58 : vector<128x128xf32>
    %cst_23 = arith.constant dense<0.000000e+00> : vector<128xf32>
    %60 = vector.multi_reduction <add>, %59, %cst_23 [1] : vector<128x128xf32> to vector<128xf32>
    %61 = vector.shape_cast %60 : vector<128xf32> to vector<128x1xf32>
    %62 = tpu.reciprocal %61 {approx = true} : vector<128x1xf32> -> vector<128x1xf32>
    %63 = vector.broadcast %62 : vector<128x1xf32> to vector<128x128xf32>
    %64 = arith.mulf %59, %63 : vector<128x128xf32>
    %65 = arith.truncf %64 : vector<128x128xf32> to vector<128x128xbf16>
    %cst_24 = arith.constant dense<0.000000e+00> : vector<128x16xf32>
    %66 = tpu.matmul %65, %52, %cst_24 {dimension_numbers = #tpu.dot_dimension_numbers<[1], [0], [0], [1], [0, 0, 1, 1], [], []>} : vector<128x128xbf16>, vector<128x16xbf16>, vector<128x16xf32> -> vector<128x16xf32>
    %67 = vector.extract_strided_slice %33 {offsets = [0, 32], sizes = [128, 16], strides = [1, 1]} : vector<128x128xbf16> to vector<128x16xbf16>
    %68 = vector.extract_strided_slice %33 {offsets = [0, 96], sizes = [128, 16], strides = [1, 1]} : vector<128x128xbf16> to vector<128x16xbf16>
    %cst_25 = arith.constant dense<0.000000e+00> : vector<128x128xf32>
    %69 = tpu.matmul %67, %68, %cst_25 {dimension_numbers = #tpu.dot_dimension_numbers<[1], [1], [0], [0], [0, 0, 1, 0], [], []>} : vector<128x16xbf16>, vector<128x16xbf16>, vector<128x128xf32> -> vector<128x128xf32>
    %70 = arith.addf %69, %34 : vector<128x128xf32>
    %cst_26 = arith.constant dense<0xFF800000> : vector<128xf32>
    %71 = vector.multi_reduction <maximumf>, %70, %cst_26 [1] : vector<128x128xf32> to vector<128xf32>
    %72 = vector.shape_cast %71 : vector<128xf32> to vector<128x1xf32>
    %73 = vector.broadcast %72 : vector<128x1xf32> to vector<128x128xf32>
    %74 = arith.subf %70, %73 : vector<128x128xf32>
    %75 = math.exp %74 : vector<128x128xf32>
    %cst_27 = arith.constant dense<0.000000e+00> : vector<128xf32>
    %76 = vector.multi_reduction <add>, %75, %cst_27 [1] : vector<128x128xf32> to vector<128xf32>
    %77 = vector.shape_cast %76 : vector<128xf32> to vector<128x1xf32>
    %78 = tpu.reciprocal %77 {approx = true} : vector<128x1xf32> -> vector<128x1xf32>
    %79 = vector.broadcast %78 : vector<128x1xf32> to vector<128x128xf32>
    %80 = arith.mulf %75, %79 : vector<128x128xf32>
    %81 = arith.truncf %80 : vector<128x128xf32> to vector<128x128xbf16>
    %cst_28 = arith.constant dense<0.000000e+00> : vector<128x16xf32>
    %82 = tpu.matmul %81, %68, %cst_28 {dimension_numbers = #tpu.dot_dimension_numbers<[1], [0], [0], [1], [0, 0, 1, 1], [], []>} : vector<128x128xbf16>, vector<128x16xbf16>, vector<128x16xf32> -> vector<128x16xf32>
    %83 = vector.extract_strided_slice %33 {offsets = [0, 48], sizes = [128, 16], strides = [1, 1]} : vector<128x128xbf16> to vector<128x16xbf16>
    %84 = vector.extract_strided_slice %33 {offsets = [0, 112], sizes = [128, 16], strides = [1, 1]} : vector<128x128xbf16> to vector<128x16xbf16>
    %cst_29 = arith.constant dense<0.000000e+00> : vector<128x128xf32>
    %85 = tpu.matmul %83, %84, %cst_29 {dimension_numbers = #tpu.dot_dimension_numbers<[1], [1], [0], [0], [0, 0, 1, 0], [], []>} : vector<128x16xbf16>, vector<128x16xbf16>, vector<128x128xf32> -> vector<128x128xf32>
    %86 = arith.addf %85, %34 : vector<128x128xf32>
    %cst_30 = arith.constant dense<0xFF800000> : vector<128xf32>
    %87 = vector.multi_reduction <maximumf>, %86, %cst_30 [1] : vector<128x128xf32> to vector<128xf32>
    %88 = vector.shape_cast %87 : vector<128xf32> to vector<128x1xf32>
    %89 = vector.broadcast %88 : vector<128x1xf32> to vector<128x128xf32>
    %90 = arith.subf %86, %89 : vector<128x128xf32>
    %91 = math.exp %90 : vector<128x128xf32>
    %cst_31 = arith.constant dense<0.000000e+00> : vector<128xf32>
    %92 = vector.multi_reduction <add>, %91, %cst_31 [1] : vector<128x128xf32> to vector<128xf32>
    %93 = vector.shape_cast %92 : vector<128xf32> to vector<128x1xf32>
    %94 = tpu.reciprocal %93 {approx = true} : vector<128x1xf32> -> vector<128x1xf32>
    %95 = vector.broadcast %94 : vector<128x1xf32> to vector<128x128xf32>
    %96 = arith.mulf %91, %95 : vector<128x128xf32>
    %97 = arith.truncf %96 : vector<128x128xf32> to vector<128x128xbf16>
    %cst_32 = arith.constant dense<0.000000e+00> : vector<128x16xf32>
    %98 = tpu.matmul %97, %84, %cst_32 {dimension_numbers = #tpu.dot_dimension_numbers<[1], [0], [0], [1], [0, 0, 1, 1], [], []>} : vector<128x128xbf16>, vector<128x16xbf16>, vector<128x16xf32> -> vector<128x16xf32>
    %99 = tpu.concatenate %50, %66, %82, %98 in 1 : vector<128x16xf32>, vector<128x16xf32>, vector<128x16xf32>, vector<128x16xf32> -> vector<128x64xf32>
    %100 = arith.truncf %99 : vector<128x64xf32> to vector<128x64xbf16>
    %c0_33 = arith.constant 0 : index
    %c0_34 = arith.constant 0 : index
    %101 = vector.load %arg5[%c0_33, %c0_34] : memref<64x64xbf16, #tpu.memory_space<vmem>>, vector<64x64xbf16>
    %cst_35 = arith.constant dense<0.000000e+00> : vector<128x64xf32>
    %102 = tpu.matmul %100, %101, %cst_35 {dimension_numbers = #tpu.dot_dimension_numbers<[1], [0], [0], [1], [0, 0, 1, 1], [], []>} : vector<128x64xbf16>, vector<64x64xbf16>, vector<128x64xf32> -> vector<128x64xf32>
    %103 = arith.addf %0, %102 : vector<128x64xf32>
    %c1_36 = arith.constant 1 : index
    %c0_37 = arith.constant 0 : index
    %104 = vector.load %arg8[%c1_36, %c0_37] : memref<2x64xf32, #tpu.memory_space<vmem>>, vector<1x64xf32>
    %105 = arith.mulf %103, %103 : vector<128x64xf32>
    %cst_38 = arith.constant dense<0.000000e+00> : vector<128xf32>
    %106 = vector.multi_reduction <add>, %105, %cst_38 [1] : vector<128x64xf32> to vector<128xf32>
    %107 = vector.shape_cast %106 : vector<128xf32> to vector<128x1xf32>
    %cst_39 = arith.constant 6.400000e+01 : f32
    %108 = vector.broadcast %cst_39 : f32 to vector<128x1xf32>
    %109 = arith.divf %107, %108 : vector<128x1xf32>
    %cst_40 = arith.constant 9.99999974E-6 : f32
    %110 = vector.broadcast %cst_40 : f32 to vector<128x1xf32>
    %111 = arith.addf %109, %110 : vector<128x1xf32>
    %112 = math.rsqrt %111 : vector<128x1xf32>
    %113 = vector.broadcast %112 : vector<128x1xf32> to vector<128x64xf32>
    %114 = arith.mulf %103, %113 : vector<128x64xf32>
    %115 = vector.broadcast %104 : vector<1x64xf32> to vector<128x64xf32>
    %116 = arith.mulf %114, %115 : vector<128x64xf32>
    %117 = arith.truncf %116 : vector<128x64xf32> to vector<128x64xbf16>
    %c0_41 = arith.constant 0 : index
    %c0_42 = arith.constant 0 : index
    %118 = vector.load %arg6[%c0_41, %c0_42] : memref<64x512xbf16, #tpu.memory_space<vmem>>, vector<64x512xbf16>
    %cst_43 = arith.constant dense<0.000000e+00> : vector<128x512xf32>
    %119 = tpu.matmul %117, %118, %cst_43 {dimension_numbers = #tpu.dot_dimension_numbers<[1], [0], [0], [1], [0, 0, 1, 1], [], []>} : vector<128x64xbf16>, vector<64x512xbf16>, vector<128x512xf32> -> vector<128x512xf32>
    %120 = vector.extract_strided_slice %119 {offsets = [0, 0], sizes = [128, 256], strides = [1, 1]} : vector<128x512xf32> to vector<128x256xf32>
    %121 = vector.extract_strided_slice %119 {offsets = [0, 256], sizes = [128, 256], strides = [1, 1]} : vector<128x512xf32> to vector<128x256xf32>
    %122 = arith.negf %120 : vector<128x256xf32>
    %123 = math.exp %122 : vector<128x256xf32>
    %cst_44 = arith.constant 1.000000e+00 : f32
    %124 = vector.broadcast %cst_44 : f32 to vector<128x256xf32>
    %125 = arith.addf %124, %123 : vector<128x256xf32>
    %126 = arith.divf %124, %125 : vector<128x256xf32>
    %127 = arith.mulf %120, %126 : vector<128x256xf32>
    %128 = arith.mulf %127, %121 : vector<128x256xf32>
    %129 = arith.truncf %128 : vector<128x256xf32> to vector<128x256xbf16>
    %c0_45 = arith.constant 0 : index
    %c0_46 = arith.constant 0 : index
    %130 = vector.load %arg7[%c0_45, %c0_46] : memref<256x64xbf16, #tpu.memory_space<vmem>>, vector<256x64xbf16>
    %cst_47 = arith.constant dense<0.000000e+00> : vector<128x64xf32>
    %131 = tpu.matmul %129, %130, %cst_47 {dimension_numbers = #tpu.dot_dimension_numbers<[1], [0], [0], [1], [0, 0, 1, 1], [], []>} : vector<128x256xbf16>, vector<256x64xbf16>, vector<128x64xf32> -> vector<128x64xf32>
    %132 = arith.addf %103, %131 : vector<128x64xf32>
    %c0_48 = arith.constant 0 : index
    %c0_49 = arith.constant 0 : index
    %133 = vector.load %arg9[%c0_48, %c0_49] : memref<128x64xf32, #tpu.memory_space<vmem>>, vector<128x64xf32>
    tpu.vector_store %arg9[%c0_48, %c0_49], %132 {strides = array<i32>} : memref<128x64xf32, #tpu.memory_space<vmem>>, vector<128x64xf32>,
    return
  }
  func.func @transform_0(%arg0: i32) -> (i32, i32) {
    %c0_i32 = arith.constant 0 : i32
    %c0_i32_0 = arith.constant 0 : i32
    %c0_i32_1 = arith.constant 0 : i32
    return %c0_i32, %c0_i32_0 : i32, i32
  }
  func.func @transform_1(%arg0: i32) -> (i32, i32, i32) {
    %c0_i32 = arith.constant 0 : i32
    %c0_i32_0 = arith.constant 0 : i32
    %c0_i32_1 = arith.constant 0 : i32
    %c0_i32_2 = arith.constant 0 : i32
    return %c0_i32, %c0_i32_0, %c0_i32_1 : i32, i32, i32
  }
  func.func @transform_2(%arg0: i32) -> (i32, i32) {
    %c0_i32 = arith.constant 0 : i32
    %c0_i32_0 = arith.constant 0 : i32
    %c0_i32_1 = arith.constant 0 : i32
    return %c0_i32, %c0_i32_0 : i32, i32
  }
  func.func @transform_3(%arg0: i32) -> (i32, i32) {
    %c0_i32 = arith.constant 0 : i32
    %c0_i32_0 = arith.constant 0 : i32
    %c0_i32_1 = arith.constant 0 : i32
    return %c0_i32, %c0_i32_0 : i32, i32
  }
  func.func @transform_4(%arg0: i32) -> (i32, i32) {
    %c0_i32 = arith.constant 0 : i32
    %c0_i32_0 = arith.constant 0 : i32
    %c0_i32_1 = arith.constant 0 : i32
    return %c0_i32, %c0_i32_0 : i32, i32
  }
  func.func @transform_5(%arg0: i32) -> (i32, i32) {
    %c0_i32 = arith.constant 0 : i32
    %c0_i32_0 = arith.constant 0 : i32
    %c0_i32_1 = arith.constant 0 : i32
    return %c0_i32, %c0_i32_0 : i32, i32
  }
  func.func @transform_6(%arg0: i32) -> (i32, i32) {
    %c0_i32 = arith.constant 0 : i32
    %c0_i32_0 = arith.constant 0 : i32
    %c0_i32_1 = arith.constant 0 : i32
    return %c0_i32, %c0_i32_0 : i32, i32
  }
  func.func @transform_7(%arg0: i32) -> (i32, i32) {
    %c0_i32 = arith.constant 0 : i32
    %c0_i32_0 = arith.constant 0 : i32
    %c0_i32_1 = arith.constant 0 : i32
    return %c0_i32, %c0_i32_0 : i32, i32
  }
  func.func @transform_8(%arg0: i32) -> (i32, i32) {
    %c0_i32 = arith.constant 0 : i32
    %c0_i32_0 = arith.constant 0 : i32
    %c0_i32_1 = arith.constant 0 : i32
    return %c0_i32, %c0_i32_0 : i32, i32
  }
}

</mosaic_0001>

<llo_original>
// kernel: tpu_custom_call.1
$region0: #{tpu_custom_call.1}
  #allocation0 [shape = 'u32[]', space=smem, size = 0x4, offset = 0x4, fixed_abs, tag = 'smem constant byte address 0x4 - core index']
  #allocation1 [shape = 'u32[144,128]{1,0:T(1,128)}', space=vmem, size = 0x12000, scoped, tag = 'internal scratch']
  %s0 = inlined_call_operand.vmem [shape: f32[128,64], index: 0, kind: input, shape index: {}]
  %s1 = inlined_call_operand.vmem [shape: f32[3,64,128], index: 1, kind: input, shape index: {}]
  %s2 = inlined_call_operand.vmem [shape: f32[128,128], index: 2, kind: input, shape index: {}]
  %s3 = inlined_call_operand.hbm [shape: bf16[64,128], index: 3, kind: input, shape index: {}]
  %s4 = inlined_call_operand.hbm [shape: bf16[64,64], index: 4, kind: input, shape index: {}]
  %s5 = inlined_call_operand.hbm [shape: bf16[64,512], index: 5, kind: input, shape index: {}]
  %s6 = inlined_call_operand.vmem [shape: bf16[256,64], index: 6, kind: input, shape index: {}]
  %s7 = inlined_call_operand.vmem [shape: f32[2,64], index: 7, kind: input, shape index: {}]
  %s8 = inlined_call_operand.vmem [shape: f32[128,64], index: 8, kind: output, shape index: {}]
  %s9 = sld [smem:[#allocation0]]
  $region54: #{tpu_custom_call.1} parent=0
    _
  %s11 = ssub.s32 1, %s9
  %s12 = scalar_select 0, %s11, %s9
  $region1: #{tpu_custom_call.1} parent=0
    #allocation2 [shape = 'u8[16384]{0}', space=vmem, size = 0x4000, scoped, tag = 'input window, operand 3, single buffered']
    #allocation3 [shape = 's32[1]{0}', space=sflag, size = 0x4, scoped, tag = 'scoped memory for tpu_custom_call.1']
    #allocation4 [shape = 'u8[16384]{0}', space=vmem, size = 0x4000, scoped, tag = 'input window, operand 4, single buffered']
    #allocation5 [shape = 's32[1]{0}', space=sflag, size = 0x4, scoped, tag = 'scoped memory for tpu_custom_call.1']
    #allocation6 [shape = 'u8[65536]{0}', space=vmem, size = 0x10000, scoped, tag = 'input window, operand 5, single buffered']
    %13 = vsyncpa [#allocation3], 0
    %14 = vsyncpa [#allocation5], 0
    // Predicated region
    $region2: #{tpu_custom_call.1} parent=1 // pred_check
      _
    $region3: #{tpu_custom_call.1} parent=1 // pred_check_branch
      %16 = sbr.rel (0) target = $region5
    $region4: #{tpu_custom_call.1} parent=1 // pred_region
      _
    $region5: #{tpu_custom_call.1} parent=1 // pred_fallthru
      _
    // Predicated region
    $region6: #{tpu_custom_call.1} parent=1 // pred_check
      _
    $region7: #{tpu_custom_call.1} parent=1 // pred_check_branch
      %18 = sbr.rel (0) target = $region9
    $region8: #{tpu_custom_call.1} parent=1 // pred_region
      _
    $region9: #{tpu_custom_call.1} parent=1 // pred_fallthru
      _
    // Predicated region
    $region10: #{tpu_custom_call.1} parent=1 // pred_check
      _
    $region11: #{tpu_custom_call.1} parent=1 // pred_check_branch
      %20 = sbr.rel (0) target = $region13
    $region12: #{tpu_custom_call.1} parent=1 // pred_region
      _
    $region13: #{tpu_custom_call.1} parent=1 // pred_fallthru
      _
    // Predicated region
    $region14: #{tpu_custom_call.1} parent=1 // pred_check
      _
    $region15: #{tpu_custom_call.1} parent=1 // pred_check_branch
      %22 = sbr.rel (0) target = $region17
    $region16: #{tpu_custom_call.1} parent=1 // pred_region
      %s24 = ssub.s32 512, 512
      %25 = vsyncadd [#allocation3], %s24
      %s26 = sshll.u32 [#allocation2], 4
      %s27 = int_to_ptr.vmem [resolvable:$true] %s26
      %32 = dma.hbm_to_vmem [thread:$0]  %s3, 512, %s27, [#allocation3], 64, 64, 4
    $region17: #{tpu_custom_call.1} parent=1 // pred_fallthru
      _
    // Predicated region
    $region18: #{tpu_custom_call.1} parent=1 // pred_check
      _
    $region19: #{tpu_custom_call.1} parent=1 // pred_check_branch
      %34 = sbr.rel (0) target = $region21
    $region20: #{tpu_custom_call.1} parent=1 // pred_region
      %s36 = ssub.s32 512, 512
      %37 = vsyncadd [#allocation5], %s36
      %s38 = sshll.u32 [#allocation4], 4
      %s39 = int_to_ptr.vmem [resolvable:$true] %s38
      %44 = dma.hbm_to_vmem [thread:$0]  %s4, 512, %s39, [#allocation5], 64, 64, 4
    $region21: #{tpu_custom_call.1} parent=1 // pred_fallthru
      _
    // Predicated region
    $region22: #{tpu_custom_call.1} parent=1 // pred_check
      _
    $region23: #{tpu_custom_call.1} parent=1 // pred_check_branch
      %46 = sbr.rel (0) target = $region25
    $region24: #{tpu_custom_call.1} parent=1 // pred_region
      %s48 = ssub.s32 2048, 2048
      %49 = vsyncadd [#allocation5], %s48
      %s50 = sshll.u32 [#allocation6], 4
      %s51 = int_to_ptr.vmem [resolvable:$true] %s50
      %56 = dma.hbm_to_vmem [thread:$0]  %s5, 2048, %s51, [#allocation5], 256, 256, 16
    $region25: #{tpu_custom_call.1} parent=1 // pred_fallthru
      _
    // Predicated region
    $region26: #{tpu_custom_call.1} parent=1 // pred_check
      _
    $region27: #{tpu_custom_call.1} parent=1 // pred_check_branch
      %58 = sbr.rel (0) target = $region29
    $region28: #{tpu_custom_call.1} parent=1 // pred_region
      _
    $region29: #{tpu_custom_call.1} parent=1 // pred_fallthru
      _
    // Predicated region
    $region30: #{tpu_custom_call.1} parent=1 // pred_check
      _
    $region31: #{tpu_custom_call.1} parent=1 // pred_check_branch
      %60 = sbr.rel (0) target = $region33
    $region32: #{tpu_custom_call.1} parent=1 // pred_region
      _
    $region33: #{tpu_custom_call.1} parent=1 // pred_fallthru
      _
    // Predicated region
    $region34: #{tpu_custom_call.1} parent=1 // pred_check
      _
    $region35: #{tpu_custom_call.1} parent=1 // pred_check_branch
      %62 = sbr.rel (0) target = $region37
    $region36: #{tpu_custom_call.1} parent=1 // pred_region
      %63 = dma.done [#allocation3], 512
    $region37: #{tpu_custom_call.1} parent=1 // pred_fallthru
      _
    // Predicated region
    $region38: #{tpu_custom_call.1} parent=1 // pred_check
      _
    $region39: #{tpu_custom_call.1} parent=1 // pred_check_branch
      %65 = sbr.rel (0) target = $region41
    $region40: #{tpu_custom_call.1} parent=1 // pred_region
      %66 = dma.done [#allocation5], 512
    $region41: #{tpu_custom_call.1} parent=1 // pred_fallthru
      _
    // Predicated region
    $region42: #{tpu_custom_call.1} parent=1 // pred_check
      _
    $region43: #{tpu_custom_call.1} parent=1 // pred_check_branch
      %68 = sbr.rel (0) target = $region45
    $region44: #{tpu_custom_call.1} parent=1 // pred_region
      %69 = dma.done [#allocation5], 2048
    $region45: #{tpu_custom_call.1} parent=1 // pred_fallthru
      _
    %v71 = vld [vmem:[%s0] sm:$0xff]
    %v72 = vld [vmem:[%s0 + $0x8] sm:$0xff]
    %v73 = vld [vmem:[%s0 + $0x10] sm:$0xff]
    %v74 = vld [vmem:[%s0 + $0x18] sm:$0xff]
    %v75 = vld [vmem:[%s0 + $0x20] sm:$0xff]
    %v76 = vld [vmem:[%s0 + $0x28] sm:$0xff]
    %v77 = vld [vmem:[%s0 + $0x30] sm:$0xff]
    %v78 = vld [vmem:[%s0 + $0x38] sm:$0xff]
    %v79 = vld [vmem:[%s0 + $0x40] sm:$0xff]
    %v80 = vld [vmem:[%s0 + $0x48] sm:$0xff]
    %v81 = vld [vmem:[%s0 + $0x50] sm:$0xff]
    %v82 = vld [vmem:[%s0 + $0x58] sm:$0xff]
    %v83 = vld [vmem:[%s0 + $0x60] sm:$0xff]
    %v84 = vld [vmem:[%s0 + $0x68] sm:$0xff]
    %v85 = vld [vmem:[%s0 + $0x70] sm:$0xff]
    %v86 = vld [vmem:[%s0 + $0x78] sm:$0xff]
    %v87 = vld [vmem:[%s7] sm:$0x1]
    %v88 = vmul.f32 %v71, %v71
    %v89 = vmul.f32 %v72, %v72
    %v90 = vmul.f32 %v73, %v73
    %v91 = vmul.f32 %v74, %v74
    %v92 = vmul.f32 %v75, %v75
    %v93 = vmul.f32 %v76, %v76
    %v94 = vmul.f32 %v77, %v77
    %v95 = vmul.f32 %v78, %v78
    %v96 = vmul.f32 %v79, %v79
    %v97 = vmul.f32 %v80, %v80
    %v98 = vmul.f32 %v81, %v81
    %v99 = vmul.f32 %v82, %v82
    %v100 = vmul.f32 %v83, %v83
    %v101 = vmul.f32 %v84, %v84
    %v102 = vmul.f32 %v85, %v85
    %v103 = vmul.f32 %v86, %v86
    %vm104 = vcmask 523264
    %v105 = vsel %vm104, %v88, 0.0
    %106 = vadd.xlane.f32.xlu0 %v105
    %v107 = vpop.xlane.xlu0 %106
    %v108 = vsel %vm104, %v89, 0.0
    %109 = vadd.xlane.f32.xlu0 %v108
    %v110 = vpop.xlane.xlu0 %109
    %v111 = vsel %vm104, %v90, 0.0
    %112 = vadd.xlane.f32.xlu0 %v111
    %v113 = vpop.xlane.xlu0 %112
    %v114 = vsel %vm104, %v91, 0.0
    %115 = vadd.xlane.f32.xlu0 %v114
    %v116 = vpop.xlane.xlu0 %115
    %v117 = vsel %vm104, %v92, 0.0
    %118 = vadd.xlane.f32.xlu0 %v117
    %v119 = vpop.xlane.xlu0 %118
    %v120 = vsel %vm104, %v93, 0.0
    %121 = vadd.xlane.f32.xlu0 %v120
    %v122 = vpop.xlane.xlu0 %121
    %v123 = vsel %vm104, %v94, 0.0
    %124 = vadd.xlane.f32.xlu0 %v123
    %v125 = vpop.xlane.xlu0 %124
    %v126 = vsel %vm104, %v95, 0.0
    %127 = vadd.xlane.f32.xlu0 %v126
    %v128 = vpop.xlane.xlu0 %127
    %v129 = vsel %vm104, %v96, 0.0
    %130 = vadd.xlane.f32.xlu0 %v129
    %v131 = vpop.xlane.xlu0 %130
    %v132 = vsel %vm104, %v97, 0.0
    %133 = vadd.xlane.f32.xlu0 %v132
    %v134 = vpop.xlane.xlu0 %133
    %v135 = vsel %vm104, %v98, 0.0
    %136 = vadd.xlane.f32.xlu0 %v135
    %v137 = vpop.xlane.xlu0 %136
    %v138 = vsel %vm104, %v99, 0.0
    %139 = vadd.xlane.f32.xlu0 %v138
    %v140 = vpop.xlane.xlu0 %139
    %v141 = vsel %vm104, %v100, 0.0
    %142 = vadd.xlane.f32.xlu0 %v141
    %v143 = vpop.xlane.xlu0 %142
    %v144 = vsel %vm104, %v101, 0.0
    %145 = vadd.xlane.f32.xlu0 %v144
    %v146 = vpop.xlane.xlu0 %145
    %v147 = vsel %vm104, %v102, 0.0
    %148 = vadd.xlane.f32.xlu0 %v147
    %v149 = vpop.xlane.xlu0 %148
    %v150 = vsel %vm104, %v103, 0.0
    %151 = vadd.xlane.f32.xlu0 %v150
    %v152 = vpop.xlane.xlu0 %151
    %v153 = vrcp.pop 64.0
    %v154 = vmul.f32 %v107, %v153
    %v155 = vmul.f32 %v110, %v153
    %v156 = vmul.f32 %v113, %v153
    %v157 = vmul.f32 %v116, %v153
    %v158 = vmul.f32 %v119, %v153
    %v159 = vmul.f32 %v122, %v153
    %v160 = vmul.f32 %v125, %v153
    %v161 = vmul.f32 %v128, %v153
    %v162 = vmul.f32 %v131, %v153
    %v163 = vmul.f32 %v134, %v153
    %v164 = vmul.f32 %v137, %v153
    %v165 = vmul.f32 %v140, %v153
    %v166 = vmul.f32 %v143, %v153
    %v167 = vmul.f32 %v146, %v153
    %v168 = vmul.f32 %v149, %v153
    %v169 = vmul.f32 %v152, %v153
    %v170 = vadd.f32 %v154, 1e-05
    %v171 = vadd.f32 %v155, 1e-05
    %v172 = vadd.f32 %v156, 1e-05
    %v173 = vadd.f32 %v157, 1e-05
    %v174 = vadd.f32 %v158, 1e-05
    %v175 = vadd.f32 %v159, 1e-05
    %v176 = vadd.f32 %v160, 1e-05
    %v177 = vadd.f32 %v161, 1e-05
    %v178 = vadd.f32 %v162, 1e-05
    %v179 = vadd.f32 %v163, 1e-05
    %v180 = vadd.f32 %v164, 1e-05
    %v181 = vadd.f32 %v165, 1e-05
    %v182 = vadd.f32 %v166, 1e-05
    %v183 = vadd.f32 %v167, 1e-05
    %v184 = vadd.f32 %v168, 1e-05
    %v185 = vadd.f32 %v169, 1e-05
    %v186 = vrsqrt.pop %v170
    %v187 = vrsqrt.pop %v171
    %v188 = vrsqrt.pop %v172
    %v189 = vrsqrt.pop %v173
    %v190 = vrsqrt.pop %v174
    %v191 = vrsqrt.pop %v175
    %v192 = vrsqrt.pop %v176
    %v193 = vrsqrt.pop %v177
    %v194 = vrsqrt.pop %v178
    %v195 = vrsqrt.pop %v179
    %v196 = vrsqrt.pop %v180
    %v197 = vrsqrt.pop %v181
    %v198 = vrsqrt.pop %v182
    %v199 = vrsqrt.pop %v183
    %v200 = vrsqrt.pop %v184
    %v201 = vrsqrt.pop %v185
    %v202 = vmul.f32 %v71, %v186
    %v203 = vmul.f32 %v72, %v187
    %v204 = vmul.f32 %v73, %v188
    %v205 = vmul.f32 %v74, %v189
    %v206 = vmul.f32 %v75, %v190
    %v207 = vmul.f32 %v76, %v191
    %v208 = vmul.f32 %v77, %v192
    %v209 = vmul.f32 %v78, %v193
    %v210 = vmul.f32 %v79, %v194
    %v211 = vmul.f32 %v80, %v195
    %v212 = vmul.f32 %v81, %v196
    %v213 = vmul.f32 %v82, %v197
    %v214 = vmul.f32 %v83, %v198
    %v215 = vmul.f32 %v84, %v199
    %v216 = vmul.f32 %v85, %v200
    %v217 = vmul.f32 %v86, %v201
    %v218 = vlaneseq
    %v219 = vshrl.u32 %v218, 7
    %v220 = vsub.s32 0, %v219
    %v221 = vrot.slane %v87, %v220
    %v222 = vmul.f32 %v202, %v221
    %v223 = vmul.f32 %v203, %v221
    %v224 = vmul.f32 %v204, %v221
    %v225 = vmul.f32 %v205, %v221
    %v226 = vmul.f32 %v206, %v221
    %v227 = vmul.f32 %v207, %v221
    %v228 = vmul.f32 %v208, %v221
    %v229 = vmul.f32 %v209, %v221
    %v230 = vmul.f32 %v210, %v221
    %v231 = vmul.f32 %v211, %v221
    %v232 = vmul.f32 %v212, %v221
    %v233 = vmul.f32 %v213, %v221
    %v234 = vmul.f32 %v214, %v221
    %v235 = vmul.f32 %v215, %v221
    %v236 = vmul.f32 %v216, %v221
    %v237 = vmul.f32 %v217, %v221
    %v238 = vpack.c.bf16 %v223, %v222
    %v239 = vpack.c.bf16 %v225, %v224
    %v240 = vpack.c.bf16 %v227, %v226
    %v241 = vpack.c.bf16 %v229, %v228
    %v242 = vpack.c.bf16 %v231, %v230
    %v243 = vpack.c.bf16 %v233, %v232
    %v244 = vpack.c.bf16 %v235, %v234
    %v245 = vpack.c.bf16 %v237, %v236
    %v246 = vld [vmem:[#allocation2] sm:$0xf]
    %v247 = vld [vmem:[#allocation2 + $0x4] sm:$0xf]
    %v248 = vld [vmem:[#allocation2 + $0x8] sm:$0xf]
    %v249 = vld [vmem:[#allocation2 + $0xc] sm:$0xf]
    %v250 = vld [vmem:[#allocation2 + $0x10] sm:$0xf]
    %v251 = vld [vmem:[#allocation2 + $0x14] sm:$0xf]
    %v252 = vld [vmem:[#allocation2 + $0x18] sm:$0xf]
    %v253 = vld [vmem:[#allocation2 + $0x1c] sm:$0xf]
    %v262 = vunpack.c.l.b16 %v246
    %v263 = vunpack.c.l.b16 %v247
    %v264 = vunpack.c.l.b16 %v248
    %v265 = vunpack.c.l.b16 %v249
    %v266 = vunpack.c.l.b16 %v250
    %v267 = vunpack.c.l.b16 %v251
    %v268 = vunpack.c.l.b16 %v252
    %v269 = vunpack.c.l.b16 %v253
    %v270 = vpack.c.b16 %v263, %v262
    %v271 = vpack.c.b16 %v265, %v264
    %v272 = vpack.c.b16 %v267, %v266
    %v273 = vpack.c.b16 %v269, %v268
    %v279 = vsel %vm104, %v238, 0
    %v282 = vsel %vm104, %v239, 0
    %v285 = vsel %vm104, %v240, 0
    %v288 = vsel %vm104, %v241, 0
    %v291 = vsel %vm104, %v242, 0
    %v294 = vsel %vm104, %v243, 0
    %v297 = vsel %vm104, %v244, 0
    %v300 = vsel %vm104, %v245, 0
    %302 = vmatprep.subr.bf16.mxu0 0
    %303 = vmatpush1.bf16.msra.mxu0 %v270
    %304 = vmatprep.subr.bf16.mxu0 0
    %305 = vmatpush1.bf16.msra.mxu0 %v271
    %306 = vmatprep.subr.bf16.mxu0 0
    %307 = vmatpush1.bf16.msra.mxu0 %v272
    %308 = vmatprep.subr.bf16.mxu0 0
    %309 = vmatpush1.bf16.msra.mxu0 %v273
    %310 = vmatprep.subr.bf16.mxu0 0
    %311 = vmatpush1.bf16.msra.mxu0 0
    %312 = vmatprep.subr.bf16.mxu0 0
    %313 = vmatpush1.bf16.msra.mxu0 0
    %314 = vmatprep.subr.bf16.mxu0 0
    %315 = vmatpush1.bf16.msra.mxu0 0
    %316 = vmatprep.subr.bf16.mxu0 0
    %317 = vmatpush1.bf16.msra.mxu0 0
    %318 = vmatprep.subr.bf16.mxu0 0
    %319 = vmatpush1.bf16.msra.mxu0 0
    %320 = vmatprep.subr.bf16.mxu0 0
    %321 = vmatpush1.bf16.msra.mxu0 0
    %322 = vmatprep.subr.bf16.mxu0 0
    %323 = vmatpush1.bf16.msra.mxu0 0
    %324 = vmatprep.subr.bf16.mxu0 0
    %325 = vmatpush1.bf16.msra.mxu0 0
    %326 = vmatprep.subr.bf16.mxu0 0
    %327 = vmatpush1.bf16.msra.mxu0 0
    %328 = vmatprep.subr.bf16.mxu0 0
    %329 = vmatpush1.bf16.msra.mxu0 0
    %330 = vmatprep.subr.bf16.mxu0 0
    %331 = vmatpush1.bf16.msra.mxu0 0
    %332 = vmatprep.subr.bf16.mxu0 0
    %333 = vmatpush1.bf16.msra.mxu0 0
    %334 = vmatprep.mubr.bf16.mxu0 0
    %335 = vmatmul.mubr.bf16.gmra.mrb[0].mxu0 %v279
    %v336 = vpop.f32.mrb[0].mxu0
    %v337 = vadd.f32 0.0, %v336
    %v338 = vpop.f32.mrb[0].mxu0
    %v339 = vpop.f32.mrb[0].mxu0
    %v340 = vadd.f32 0.0, %v339
    %v341 = vpop.f32.mrb[0].mxu0
    %342 = vmatprep.mubr.bf16.mxu0 0
    %343 = vmatmul.mubr.bf16.gmra.mrb[0].mxu0 %v282
    %v344 = vpop.f32.mrb[0].mxu0
    %v345 = vadd.f32 0.0, %v344
    %v346 = vpop.f32.mrb[0].mxu0
    %v347 = vpop.f32.mrb[0].mxu0
    %v348 = vadd.f32 0.0, %v347
    %v349 = vpop.f32.mrb[0].mxu0
    %350 = vmatprep.mubr.bf16.mxu0 0
    %351 = vmatmul.mubr.bf16.gmra.mrb[0].mxu0 %v285
    %v352 = vpop.f32.mrb[0].mxu0
    %v353 = vadd.f32 0.0, %v352
    %v354 = vpop.f32.mrb[0].mxu0
    %v355 = vpop.f32.mrb[0].mxu0
    %v356 = vadd.f32 0.0, %v355
    %v357 = vpop.f32.mrb[0].mxu0
    %358 = vmatprep.mubr.bf16.mxu0 0
    %359 = vmatmul.mubr.bf16.gmra.mrb[0].mxu0 %v288
    %v360 = vpop.f32.mrb[0].mxu0
    %v361 = vadd.f32 0.0, %v360
    %v362 = vpop.f32.mrb[0].mxu0
    %v363 = vpop.f32.mrb[0].mxu0
    %v364 = vadd.f32 0.0, %v363
    %v365 = vpop.f32.mrb[0].mxu0
    %366 = vmatprep.mubr.bf16.mxu0 0
    %367 = vmatmul.mubr.bf16.gmra.mrb[0].mxu0 %v291
    %v368 = vpop.f32.mrb[0].mxu0
    %v369 = vadd.f32 0.0, %v368
    %v370 = vpop.f32.mrb[0].mxu0
    %v371 = vpop.f32.mrb[0].mxu0
    %v372 = vadd.f32 0.0, %v371
    %v373 = vpop.f32.mrb[0].mxu0
    %374 = vmatprep.mubr.bf16.mxu0 0
    %375 = vmatmul.mubr.bf16.gmra.mrb[0].mxu0 %v294
    %v376 = vpop.f32.mrb[0].mxu0
    %v377 = vadd.f32 0.0, %v376
    %v378 = vpop.f32.mrb[0].mxu0
    %v379 = vpop.f32.mrb[0].mxu0
    %v380 = vadd.f32 0.0, %v379
    %v381 = vpop.f32.mrb[0].mxu0
    %382 = vmatprep.mubr.bf16.mxu0 0
    %383 = vmatmul.mubr.bf16.gmra.mrb[0].mxu0 %v297
    %v384 = vpop.f32.mrb[0].mxu0
    %v385 = vadd.f32 0.0, %v384
    %v386 = vpop.f32.mrb[0].mxu0
    %v387 = vpop.f32.mrb[0].mxu0
    %v388 = vadd.f32 0.0, %v387
    %v389 = vpop.f32.mrb[0].mxu0
    %390 = vmatprep.mubr.bf16.mxu0 0
    %391 = vmatmul.mubr.bf16.gmra.mrb[0].mxu0 %v300
    %v392 = vpop.f32.mrb[0].mxu0
    %v393 = vadd.f32 0.0, %v392
    %v394 = vpop.f32.mrb[0].mxu0
    %v395 = vpop.f32.mrb[0].mxu0
    %v396 = vadd.f32 0.0, %v395
    %v397 = vpop.f32.mrb[0].mxu0
    %398 = vdwg.mxu0
    %v399 = vld [vmem:[%s1] sm:$0xff]
    %v400 = vld [vmem:[%s1 + $0x8] sm:$0xff]
    %v401 = vld [vmem:[%s1 + $0x10] sm:$0xff]
    %v402 = vld [vmem:[%s1 + $0x18] sm:$0xff]
    %v403 = vld [vmem:[%s1 + $0x20] sm:$0xff]
    %v404 = vld [vmem:[%s1 + $0x28] sm:$0xff]
    %v405 = vld [vmem:[%s1 + $0x30] sm:$0xff]
    %v406 = vld [vmem:[%s1 + $0x38] sm:$0xff]
    %s407 = scalar_lea.vmem %s1, 64
    %v408 = vld [vmem:[%s407] sm:$0xff]
    %v409 = vld [vmem:[%s407 + $0x8] sm:$0xff]
    %v410 = vld [vmem:[%s407 + $0x10] sm:$0xff]
    %v411 = vld [vmem:[%s407 + $0x18] sm:$0xff]
    %v412 = vld [vmem:[%s407 + $0x20] sm:$0xff]
    %v413 = vld [vmem:[%s407 + $0x28] sm:$0xff]
    %v414 = vld [vmem:[%s407 + $0x30] sm:$0xff]
    %v415 = vld [vmem:[%s407 + $0x38] sm:$0xff]
    %s416 = scalar_lea.vmem %s1, 128
    %v417 = vld [vmem:[%s416] sm:$0xff]
    %v418 = vld [vmem:[%s416 + $0x8] sm:$0xff]
    %v419 = vld [vmem:[%s416 + $0x10] sm:$0xff]
    %v420 = vld [vmem:[%s416 + $0x18] sm:$0xff]
    %v421 = vld [vmem:[%s416 + $0x20] sm:$0xff]
    %v422 = vld [vmem:[%s416 + $0x28] sm:$0xff]
    %v423 = vld [vmem:[%s416 + $0x30] sm:$0xff]
    %v424 = vld [vmem:[%s416 + $0x38] sm:$0xff]
    %v425 = vmul.f32 %v337, %v399
    %v426 = vmul.f32 %v340, %v400
    %v427 = vmul.f32 %v345, %v401
    %v428 = vmul.f32 %v348, %v402
    %v429 = vmul.f32 %v353, %v403
    %v430 = vmul.f32 %v356, %v404
    %v431 = vmul.f32 %v361, %v405
    %v432 = vmul.f32 %v364, %v406
    %v433 = vmul.f32 %v369, %v399
    %v434 = vmul.f32 %v372, %v400
    %v435 = vmul.f32 %v377, %v401
    %v436 = vmul.f32 %v380, %v402
    %v437 = vmul.f32 %v385, %v403
    %v438 = vmul.f32 %v388, %v404
    %v439 = vmul.f32 %v393, %v405
    %v440 = vmul.f32 %v396, %v406
    %441 = vrot.lane.b32.xlu0 %v337, 127
    %v442 = vpop.permute.xlu0 %441
    %443 = vrot.lane.b32.xlu0 %v340, 127
    %v444 = vpop.permute.xlu0 %443
    %445 = vrot.lane.b32.xlu0 %v345, 127
    %v446 = vpop.permute.xlu0 %445
    %447 = vrot.lane.b32.xlu0 %v348, 127
    %v448 = vpop.permute.xlu0 %447
    %449 = vrot.lane.b32.xlu0 %v353, 127
    %v450 = vpop.permute.xlu0 %449
    %451 = vrot.lane.b32.xlu0 %v356, 127
    %v452 = vpop.permute.xlu0 %451
    %453 = vrot.lane.b32.xlu0 %v361, 127
    %v454 = vpop.permute.xlu0 %453
    %455 = vrot.lane.b32.xlu0 %v364, 127
    %v456 = vpop.permute.xlu0 %455
    %457 = vrot.lane.b32.xlu0 %v369, 127
    %v458 = vpop.permute.xlu0 %457
    %459 = vrot.lane.b32.xlu0 %v372, 127
    %v460 = vpop.permute.xlu0 %459
    %461 = vrot.lane.b32.xlu0 %v377, 127
    %v462 = vpop.permute.xlu0 %461
    %463 = vrot.lane.b32.xlu0 %v380, 127
    %v464 = vpop.permute.xlu0 %463
    %465 = vrot.lane.b32.xlu0 %v385, 127
    %v466 = vpop.permute.xlu0 %465
    %467 = vrot.lane.b32.xlu0 %v388, 127
    %v468 = vpop.permute.xlu0 %467
    %469 = vrot.lane.b32.xlu0 %v393, 127
    %v470 = vpop.permute.xlu0 %469
    %471 = vrot.lane.b32.xlu0 %v396, 127
    %v472 = vpop.permute.xlu0 %471
    %v473 = vmul.f32 %v442, %v408
    %v474 = vmul.f32 %v444, %v409
    %v475 = vmul.f32 %v446, %v410
    %v476 = vmul.f32 %v448, %v411
    %v477 = vmul.f32 %v450, %v412
    %v478 = vmul.f32 %v452, %v413
    %v479 = vmul.f32 %v454, %v414
    %v480 = vmul.f32 %v456, %v415
    %v481 = vmul.f32 %v458, %v408
    %v482 = vmul.f32 %v460, %v409
    %v483 = vmul.f32 %v462, %v410
    %v484 = vmul.f32 %v464, %v411
    %v485 = vmul.f32 %v466, %v412
    %v486 = vmul.f32 %v468, %v413
    %v487 = vmul.f32 %v470, %v414
    %v488 = vmul.f32 %v472, %v415
    %v489 = vadd.f32 %v425, %v473
    %v490 = vadd.f32 %v426, %v474
    %v491 = vadd.f32 %v427, %v475
    %v492 = vadd.f32 %v428, %v476
    %v493 = vadd.f32 %v429, %v477
    %v494 = vadd.f32 %v430, %v478
    %v495 = vadd.f32 %v431, %v479
    %v496 = vadd.f32 %v432, %v480
    %v497 = vadd.f32 %v433, %v481
    %v498 = vadd.f32 %v434, %v482
    %v499 = vadd.f32 %v435, %v483
    %v500 = vadd.f32 %v436, %v484
    %v501 = vadd.f32 %v437, %v485
    %v502 = vadd.f32 %v438, %v486
    %v503 = vadd.f32 %v439, %v487
    %v504 = vadd.f32 %v440, %v488
    %505 = vrot.lane.b32.xlu0 %v337, 1
    %v506 = vpop.permute.xlu0 %505
    %507 = vrot.lane.b32.xlu0 %v340, 1
    %v508 = vpop.permute.xlu0 %507
    %509 = vrot.lane.b32.xlu0 %v345, 1
    %v510 = vpop.permute.xlu0 %509
    %511 = vrot.lane.b32.xlu0 %v348, 1
    %v512 = vpop.permute.xlu0 %511
    %513 = vrot.lane.b32.xlu0 %v353, 1
    %v514 = vpop.permute.xlu0 %513
    %515 = vrot.lane.b32.xlu0 %v356, 1
    %v516 = vpop.permute.xlu0 %515
    %517 = vrot.lane.b32.xlu0 %v361, 1
    %v518 = vpop.permute.xlu0 %517
    %519 = vrot.lane.b32.xlu0 %v364, 1
    %v520 = vpop.permute.xlu0 %519
    %521 = vrot.lane.b32.xlu0 %v369, 1
    %v522 = vpop.permute.xlu0 %521
    %523 = vrot.lane.b32.xlu0 %v372, 1
    %v524 = vpop.permute.xlu0 %523
    %525 = vrot.lane.b32.xlu0 %v377, 1
    %v526 = vpop.permute.xlu0 %525
    %527 = vrot.lane.b32.xlu0 %v380, 1
    %v528 = vpop.permute.xlu0 %527
    %529 = vrot.lane.b32.xlu0 %v385, 1
    %v530 = vpop.permute.xlu0 %529
    %531 = vrot.lane.b32.xlu0 %v388, 1
    %v532 = vpop.permute.xlu0 %531
    %533 = vrot.lane.b32.xlu0 %v393, 1
    %v534 = vpop.permute.xlu0 %533
    %535 = vrot.lane.b32.xlu0 %v396, 1
    %v536 = vpop.permute.xlu0 %535
    %v537 = vmul.f32 %v506, %v417
    %v538 = vmul.f32 %v508, %v418
    %v539 = vmul.f32 %v510, %v419
    %v540 = vmul.f32 %v512, %v420
    %v541 = vmul.f32 %v514, %v421
    %v542 = vmul.f32 %v516, %v422
    %v543 = vmul.f32 %v518, %v423
    %v544 = vmul.f32 %v520, %v424
    %v545 = vmul.f32 %v522, %v417
    %v546 = vmul.f32 %v524, %v418
    %v547 = vmul.f32 %v526, %v419
    %v548 = vmul.f32 %v528, %v420
    %v549 = vmul.f32 %v530, %v421
    %v550 = vmul.f32 %v532, %v422
    %v551 = vmul.f32 %v534, %v423
    %v552 = vmul.f32 %v536, %v424
    %v553 = vadd.f32 %v489, %v537
    %v554 = vadd.f32 %v490, %v538
    %v555 = vadd.f32 %v491, %v539
    %v556 = vadd.f32 %v492, %v540
    %v557 = vadd.f32 %v493, %v541
    %v558 = vadd.f32 %v494, %v542
    %v559 = vadd.f32 %v495, %v543
    %v560 = vadd.f32 %v496, %v544
    %v561 = vadd.f32 %v497, %v545
    %v562 = vadd.f32 %v498, %v546
    %v563 = vadd.f32 %v499, %v547
    %v564 = vadd.f32 %v500, %v548
    %v565 = vadd.f32 %v501, %v549
    %v566 = vadd.f32 %v502, %v550
    %v567 = vadd.f32 %v503, %v551
    %v568 = vadd.f32 %v504, %v552
    %v569 = vpack.c.bf16 %v554, %v553
    %v570 = vpack.c.bf16 %v556, %v555
    %v571 = vpack.c.bf16 %v558, %v557
    %v572 = vpack.c.bf16 %v560, %v559
    %v573 = vpack.c.bf16 %v562, %v561
    %v574 = vpack.c.bf16 %v564, %v563
    %v575 = vpack.c.bf16 %v566, %v565
    %v576 = vpack.c.bf16 %v568, %v567
    %v577 = vld [vmem:[%s2] sm:$0xff]
    %v578 = vld [vmem:[%s2 + $0x8] sm:$0xff]
    %v579 = vld [vmem:[%s2 + $0x10] sm:$0xff]
    %v580 = vld [vmem:[%s2 + $0x18] sm:$0xff]
    %v581 = vld [vmem:[%s2 + $0x20] sm:$0xff]
    %v582 = vld [vmem:[%s2 + $0x28] sm:$0xff]
    %v583 = vld [vmem:[%s2 + $0x30] sm:$0xff]
    %v584 = vld [vmem:[%s2 + $0x38] sm:$0xff]
    %v585 = vld [vmem:[%s2 + $0x40] sm:$0xff]
    %v586 = vld [vmem:[%s2 + $0x48] sm:$0xff]
    %v587 = vld [vmem:[%s2 + $0x50] sm:$0xff]
    %v588 = vld [vmem:[%s2 + $0x58] sm:$0xff]
    %v589 = vld [vmem:[%s2 + $0x60] sm:$0xff]
    %v590 = vld [vmem:[%s2 + $0x68] sm:$0xff]
    %v591 = vld [vmem:[%s2 + $0x70] sm:$0xff]
    %v592 = vld [vmem:[%s2 + $0x78] sm:$0xff]
    %601 = vrot.lane.b32.xlu0 %v569, 64
    %v602 = vpop.permute.xlu0 %601
    %603 = vrot.lane.b32.xlu0 %v570, 64
    %v604 = vpop.permute.xlu0 %603
    %605 = vrot.lane.b32.xlu0 %v571, 64
    %v606 = vpop.permute.xlu0 %605
    %607 = vrot.lane.b32.xlu0 %v572, 64
    %v608 = vpop.permute.xlu0 %607
    %609 = vrot.lane.b32.xlu0 %v573, 64
    %v610 = vpop.permute.xlu0 %609
    %611 = vrot.lane.b32.xlu0 %v574, 64
    %v612 = vpop.permute.xlu0 %611
    %613 = vrot.lane.b32.xlu0 %v575, 64
    %v614 = vpop.permute.xlu0 %613
    %615 = vrot.lane.b32.xlu0 %v576, 64
    %v616 = vpop.permute.xlu0 %615
    %vm617 = vcmask 130048
    %v619 = vsel %vm617, %v569, 0
    %v622 = vsel %vm617, %v570, 0
    %v625 = vsel %vm617, %v571, 0
    %v628 = vsel %vm617, %v572, 0
    %v631 = vsel %vm617, %v573, 0
    %v634 = vsel %vm617, %v574, 0
    %v637 = vsel %vm617, %v575, 0
    %v640 = vsel %vm617, %v576, 0
    %v643 = vsel %vm617, %v602, 0
    %v646 = vsel %vm617, %v604, 0
    %v649 = vsel %vm617, %v606, 0
    %v652 = vsel %vm617, %v608, 0
    %v655 = vsel %vm617, %v610, 0
    %v658 = vsel %vm617, %v612, 0
    %v661 = vsel %vm617, %v614, 0
    %v664 = vsel %vm617, %v616, 0
    %666 = vmatprep.subr.bf16.mxu0 0
    %667 = vmatpush1.bf16.xpose.msra.mxu0 %v643
    %668 = vmatprep.subr.bf16.mxu0 0
    %669 = vmatpush1.bf16.xpose.msra.mxu0 %v646
    %670 = vmatprep.subr.bf16.mxu0 0
    %671 = vmatpush1.bf16.xpose.msra.mxu0 %v649
    %672 = vmatprep.subr.bf16.mxu0 0
    %673 = vmatpush1.bf16.xpose.msra.mxu0 %v652
    %674 = vmatprep.subr.bf16.mxu0 0
    %675 = vmatpush1.bf16.xpose.msra.mxu0 %v655
    %676 = vmatprep.subr.bf16.mxu0 0
    %677 = vmatpush1.bf16.xpose.msra.mxu0 %v658
    %678 = vmatprep.subr.bf16.mxu0 0
    %679 = vmatpush1.bf16.xpose.msra.mxu0 %v661
    %680 = vmatprep.subr.bf16.mxu0 0
    %681 = vmatpush1.bf16.xpose.msra.mxu0 %v664
    %682 = vmatprep.subr.bf16.mxu0 0
    %683 = vmatpush1.bf16.xpose.msra.mxu0 0
    %684 = vmatprep.subr.bf16.mxu0 0
    %685 = vmatpush1.bf16.xpose.msra.mxu0 0
    %686 = vmatprep.subr.bf16.mxu0 0
    %687 = vmatpush1.bf16.xpose.msra.mxu0 0
    %688 = vmatprep.subr.bf16.mxu0 0
    %689 = vmatpush1.bf16.xpose.msra.mxu0 0
    %690 = vmatprep.subr.bf16.mxu0 0
    %691 = vmatpush1.bf16.xpose.msra.mxu0 0
    %692 = vmatprep.subr.bf16.mxu0 0
    %693 = vmatpush1.bf16.xpose.msra.mxu0 0
    %694 = vmatprep.subr.bf16.mxu0 0
    %695 = vmatpush1.bf16.xpose.msra.mxu0 0
    %696 = vmatprep.subr.bf16.mxu0 0
    %697 = vmatpush1.bf16.xpose.msra.mxu0 0
    %698 = vmatprep.mubr.bf16.mxu0 0
    %699 = vmatmul.mubr.bf16.gmra.mrb[0].mxu0 %v619
    %v700 = vpop.f32.mrb[0].mxu0
    %v701 = vadd.f32 %v577, %v700
    %v702 = vpop.f32.mrb[0].mxu0
    %v703 = vpop.f32.mrb[0].mxu0
    %v704 = vadd.f32 %v578, %v703
    %v705 = vpop.f32.mrb[0].mxu0
    %706 = vmatprep.mubr.bf16.mxu0 0
    %707 = vmatmul.mubr.bf16.gmra.mrb[0].mxu0 %v622
    %v708 = vpop.f32.mrb[0].mxu0
    %v709 = vadd.f32 %v579, %v708
    %v710 = vpop.f32.mrb[0].mxu0
    %v711 = vpop.f32.mrb[0].mxu0
    %v712 = vadd.f32 %v580, %v711
    %v713 = vpop.f32.mrb[0].mxu0
    %714 = vmatprep.mubr.bf16.mxu0 0
    %715 = vmatmul.mubr.bf16.gmra.mrb[0].mxu0 %v625
    %v716 = vpop.f32.mrb[0].mxu0
    %v717 = vadd.f32 %v581, %v716
    %v718 = vpop.f32.mrb[0].mxu0
    %v719 = vpop.f32.mrb[0].mxu0
    %v720 = vadd.f32 %v582, %v719
    %v721 = vpop.f32.mrb[0].mxu0
    %722 = vmatprep.mubr.bf16.mxu0 0
    %723 = vmatmul.mubr.bf16.gmra.mrb[0].mxu0 %v628
    %v724 = vpop.f32.mrb[0].mxu0
    %v725 = vadd.f32 %v583, %v724
    %v726 = vpop.f32.mrb[0].mxu0
    %v727 = vpop.f32.mrb[0].mxu0
    %v728 = vadd.f32 %v584, %v727
    %v729 = vpop.f32.mrb[0].mxu0
    %730 = vmatprep.mubr.bf16.mxu0 0
    %731 = vmatmul.mubr.bf16.gmra.mrb[0].mxu0 %v631
    %v732 = vpop.f32.mrb[0].mxu0
    %v733 = vadd.f32 %v585, %v732
    %v734 = vpop.f32.mrb[0].mxu0
    %v735 = vpop.f32.mrb[0].mxu0
    %v736 = vadd.f32 %v586, %v735
    %v737 = vpop.f32.mrb[0].mxu0
    %738 = vmatprep.mubr.bf16.mxu0 0
    %739 = vmatmul.mubr.bf16.gmra.mrb[0].mxu0 %v634
    %v740 = vpop.f32.mrb[0].mxu0
    %v741 = vadd.f32 %v587, %v740
    %v742 = vpop.f32.mrb[0].mxu0
    %v743 = vpop.f32.mrb[0].mxu0
    %v744 = vadd.f32 %v588, %v743
    %v745 = vpop.f32.mrb[0].mxu0
    %746 = vmatprep.mubr.bf16.mxu0 0
    %747 = vmatmul.mubr.bf16.gmra.mrb[0].mxu0 %v637
    %v748 = vpop.f32.mrb[0].mxu0
    %v749 = vadd.f32 %v589, %v748
    %v750 = vpop.f32.mrb[0].mxu0
    %v751 = vpop.f32.mrb[0].mxu0
    %v752 = vadd.f32 %v590, %v751
    %v753 = vpop.f32.mrb[0].mxu0
    %754 = vmatprep.mubr.bf16.mxu0 0
    %755 = vmatmul.mubr.bf16.gmra.mrb[0].mxu0 %v640
    %v756 = vpop.f32.mrb[0].mxu0
    %v757 = vadd.f32 %v591, %v756
    %v758 = vpop.f32.mrb[0].mxu0
    %v759 = vpop.f32.mrb[0].mxu0
    %v760 = vadd.f32 %v592, %v759
    %v761 = vpop.f32.mrb[0].mxu0
    %762 = vdwg.mxu0
    %763 = vmax.xlane.f32.xlu0 %v701
    %v764 = vpop.xlane.xlu0 %763
    %765 = vmax.xlane.f32.xlu0 %v704
    %v766 = vpop.xlane.xlu0 %765
    %767 = vmax.xlane.f32.xlu0 %v709
    %v768 = vpop.xlane.xlu0 %767
    %769 = vmax.xlane.f32.xlu0 %v712
    %v770 = vpop.xlane.xlu0 %769
    %771 = vmax.xlane.f32.xlu0 %v717
    %v772 = vpop.xlane.xlu0 %771
    %773 = vmax.xlane.f32.xlu0 %v720
    %v774 = vpop.xlane.xlu0 %773
    %775 = vmax.xlane.f32.xlu0 %v725
    %v776 = vpop.xlane.xlu0 %775
    %777 = vmax.xlane.f32.xlu0 %v728
    %v778 = vpop.xlane.xlu0 %777
    %779 = vmax.xlane.f32.xlu0 %v733
    %v780 = vpop.xlane.xlu0 %779
    %781 = vmax.xlane.f32.xlu0 %v736
    %v782 = vpop.xlane.xlu0 %781
    %783 = vmax.xlane.f32.xlu0 %v741
    %v784 = vpop.xlane.xlu0 %783
    %785 = vmax.xlane.f32.xlu0 %v744
    %v786 = vpop.xlane.xlu0 %785
    %787 = vmax.xlane.f32.xlu0 %v749
    %v788 = vpop.xlane.xlu0 %787
    %789 = vmax.xlane.f32.xlu0 %v752
    %v790 = vpop.xlane.xlu0 %789
    %791 = vmax.xlane.f32.xlu0 %v757
    %v792 = vpop.xlane.xlu0 %791
    %793 = vmax.xlane.f32.xlu0 %v760
    %v794 = vpop.xlane.xlu0 %793
    %v795 = vsub.f32 %v701, %v764
    %v796 = vsub.f32 %v704, %v766
    %v797 = vsub.f32 %v709, %v768
    %v798 = vsub.f32 %v712, %v770
    %v799 = vsub.f32 %v717, %v772
    %v800 = vsub.f32 %v720, %v774
    %v801 = vsub.f32 %v725, %v776
    %v802 = vsub.f32 %v728, %v778
    %v803 = vsub.f32 %v733, %v780
    %v804 = vsub.f32 %v736, %v782
    %v805 = vsub.f32 %v741, %v784
    %v806 = vsub.f32 %v744, %v786
    %v807 = vsub.f32 %v749, %v788
    %v808 = vsub.f32 %v752, %v790
    %v809 = vsub.f32 %v757, %v792
    %v810 = vsub.f32 %v760, %v794
    %v811 = vmul.f32 %v795, 1.442695
    %v812 = vpow.pop %v811
    %v813 = vmul.f32 %v796, 1.442695
    %v814 = vpow.pop %v813
    %v815 = vmul.f32 %v797, 1.442695
    %v816 = vpow.pop %v815
    %v817 = vmul.f32 %v798, 1.442695
    %v818 = vpow.pop %v817
    %v819 = vmul.f32 %v799, 1.442695
    %v820 = vpow.pop %v819
    %v821 = vmul.f32 %v800, 1.442695
    %v822 = vpow.pop %v821
    %v823 = vmul.f32 %v801, 1.442695
    %v824 = vpow.pop %v823
    %v825 = vmul.f32 %v802, 1.442695
    %v826 = vpow.pop %v825
    %v827 = vmul.f32 %v803, 1.442695
    %v828 = vpow.pop %v827
    %v829 = vmul.f32 %v804, 1.442695
    %v830 = vpow.pop %v829
    %v831 = vmul.f32 %v805, 1.442695
    %v832 = vpow.pop %v831
    %v833 = vmul.f32 %v806, 1.442695
    %v834 = vpow.pop %v833
    %v835 = vmul.f32 %v807, 1.442695
    %v836 = vpow.pop %v835
    %v837 = vmul.f32 %v808, 1.442695
    %v838 = vpow.pop %v837
    %v839 = vmul.f32 %v809, 1.442695
    %v840 = vpow.pop %v839
    %v841 = vmul.f32 %v810, 1.442695
    %v842 = vpow.pop %v841
    %843 = vadd.xlane.f32.xlu0 %v812
    %v844 = vpop.xlane.xlu0 %843
    %845 = vadd.xlane.f32.xlu0 %v814
    %v846 = vpop.xlane.xlu0 %845
    %847 = vadd.xlane.f32.xlu0 %v816
    %v848 = vpop.xlane.xlu0 %847
    %849 = vadd.xlane.f32.xlu0 %v818
    %v850 = vpop.xlane.xlu0 %849
    %851 = vadd.xlane.f32.xlu0 %v820
    %v852 = vpop.xlane.xlu0 %851
    %853 = vadd.xlane.f32.xlu0 %v822
    %v854 = vpop.xlane.xlu0 %853
    %855 = vadd.xlane.f32.xlu0 %v824
    %v856 = vpop.xlane.xlu0 %855
    %857 = vadd.xlane.f32.xlu0 %v826
    %v858 = vpop.xlane.xlu0 %857
    %859 = vadd.xlane.f32.xlu0 %v828
    %v860 = vpop.xlane.xlu0 %859
    %861 = vadd.xlane.f32.xlu0 %v830
    %v862 = vpop.xlane.xlu0 %861
    %863 = vadd.xlane.f32.xlu0 %v832
    %v864 = vpop.xlane.xlu0 %863
    %865 = vadd.xlane.f32.xlu0 %v834
    %v866 = vpop.xlane.xlu0 %865
    %867 = vadd.xlane.f32.xlu0 %v836
    %v868 = vpop.xlane.xlu0 %867
    %869 = vadd.xlane.f32.xlu0 %v838
    %v870 = vpop.xlane.xlu0 %869
    %871 = vadd.xlane.f32.xlu0 %v840
    %v872 = vpop.xlane.xlu0 %871
    %873 = vadd.xlane.f32.xlu0 %v842
    %v874 = vpop.xlane.xlu0 %873
    %v875 = vrcp.pop %v844
    %v876 = vrcp.pop %v846
    %v877 = vrcp.pop %v848
    %v878 = vrcp.pop %v850
    %v879 = vrcp.pop %v852
    %v880 = vrcp.pop %v854
    %v881 = vrcp.pop %v856
    %v882 = vrcp.pop %v858
    %v883 = vrcp.pop %v860
    %v884 = vrcp.pop %v862
    %v885 = vrcp.pop %v864
    %v886 = vrcp.pop %v866
    %v887 = vrcp.pop %v868
    %v888 = vrcp.pop %v870
    %v889 = vrcp.pop %v872
    %v890 = vrcp.pop %v874
    %v891 = vmul.f32 %v812, %v875
    %v892 = vmul.f32 %v814, %v876
    %v893 = vmul.f32 %v816, %v877
    %v894 = vmul.f32 %v818, %v878
    %v895 = vmul.f32 %v820, %v879
    %v896 = vmul.f32 %v822, %v880
    %v897 = vmul.f32 %v824, %v881
    %v898 = vmul.f32 %v826, %v882
    %v899 = vmul.f32 %v828, %v883
    %v900 = vmul.f32 %v830, %v884
    %v901 = vmul.f32 %v832, %v885
    %v902 = vmul.f32 %v834, %v886
    %v903 = vmul.f32 %v836, %v887
    %v904 = vmul.f32 %v838, %v888
    %v905 = vmul.f32 %v840, %v889
    %v906 = vmul.f32 %v842, %v890
    %v907 = vpack.c.bf16 %v892, %v891
    %v908 = vpack.c.bf16 %v894, %v893
    %v909 = vpack.c.bf16 %v896, %v895
    %v910 = vpack.c.bf16 %v898, %v897
    %v911 = vpack.c.bf16 %v900, %v899
    %v912 = vpack.c.bf16 %v902, %v901
    %v913 = vpack.c.bf16 %v904, %v903
    %v914 = vpack.c.bf16 %v906, %v905
    %923 = vmatprep.subr.bf16.mxu0 0
    %924 = vmatpush1.bf16.msra.mxu0 %v602
    %925 = vmatprep.subr.bf16.mxu0 0
    %926 = vmatpush1.bf16.msra.mxu0 %v604
    %927 = vmatprep.subr.bf16.mxu0 0
    %928 = vmatpush1.bf16.msra.mxu0 %v606
    %929 = vmatprep.subr.bf16.mxu0 0
    %930 = vmatpush1.bf16.msra.mxu0 %v608
    %931 = vmatprep.subr.bf16.mxu0 0
    %932 = vmatpush1.bf16.msra.mxu0 %v610
    %933 = vmatprep.subr.bf16.mxu0 0
    %934 = vmatpush1.bf16.msra.mxu0 %v612
    %935 = vmatprep.subr.bf16.mxu0 0
    %936 = vmatpush1.bf16.msra.mxu0 %v614
    %937 = vmatprep.subr.bf16.mxu0 0
    %938 = vmatpush1.bf16.msra.mxu0 %v616
    %939 = vmatprep.subr.bf16.mxu0 0
    %940 = vmatpush1.bf16.msra.mxu0 0
    %941 = vmatprep.subr.bf16.mxu0 0
    %942 = vmatpush1.bf16.msra.mxu0 0
    %943 = vmatprep.subr.bf16.mxu0 0
    %944 = vmatpush1.bf16.msra.mxu0 0
    %945 = vmatprep.subr.bf16.mxu0 0
    %946 = vmatpush1.bf16.msra.mxu0 0
    %947 = vmatprep.subr.bf16.mxu0 0
    %948 = vmatpush1.bf16.msra.mxu0 0
    %949 = vmatprep.subr.bf16.mxu0 0
    %950 = vmatpush1.bf16.msra.mxu0 0
    %951 = vmatprep.subr.bf16.mxu0 0
    %952 = vmatpush1.bf16.msra.mxu0 0
    %953 = vmatprep.subr.bf16.mxu0 0
    %954 = vmatpush1.bf16.msra.mxu0 0
    %955 = vmatprep.mubr.bf16.mxu0 0
    %956 = vmatmul.mubr.bf16.gmra.mrb[0].mxu0 %v907
    %v957 = vpop.f32.mrb[0].mxu0
    %v958 = vadd.f32 0.0, %v957
    %v959 = vpop.f32.mrb[0].mxu0
    %v960 = vpop.f32.mrb[0].mxu0
    %v961 = vadd.f32 0.0, %v960
    %v962 = vpop.f32.mrb[0].mxu0
    %963 = vmatprep.mubr.bf16.mxu0 0
    %964 = vmatmul.mubr.bf16.gmra.mrb[0].mxu0 %v908
    %v965 = vpop.f32.mrb[0].mxu0
    %v966 = vadd.f32 0.0, %v965
    %v967 = vpop.f32.mrb[0].mxu0
    %v968 = vpop.f32.mrb[0].mxu0
    %v969 = vadd.f32 0.0, %v968
    %v970 = vpop.f32.mrb[0].mxu0
    %971 = vmatprep.mubr.bf16.mxu0 0
    %972 = vmatmul.mubr.bf16.gmra.mrb[0].mxu0 %v909
    %v973 = vpop.f32.mrb[0].mxu0
    %v974 = vadd.f32 0.0, %v973
    %v975 = vpop.f32.mrb[0].mxu0
    %v976 = vpop.f32.mrb[0].mxu0
    %v977 = vadd.f32 0.0, %v976
    %v978 = vpop.f32.mrb[0].mxu0
    %979 = vmatprep.mubr.bf16.mxu0 0
    %980 = vmatmul.mubr.bf16.gmra.mrb[0].mxu0 %v910
    %v981 = vpop.f32.mrb[0].mxu0
    %v982 = vadd.f32 0.0, %v981
    %v983 = vpop.f32.mrb[0].mxu0
    %v984 = vpop.f32.mrb[0].mxu0
    %v985 = vadd.f32 0.0, %v984
    %v986 = vpop.f32.mrb[0].mxu0
    %987 = vmatprep.mubr.bf16.mxu0 0
    %988 = vmatmul.mubr.bf16.gmra.mrb[0].mxu0 %v911
    %v989 = vpop.f32.mrb[0].mxu0
    %v990 = vadd.f32 0.0, %v989
    %v991 = vpop.f32.mrb[0].mxu0
    %v992 = vpop.f32.mrb[0].mxu0
    %v993 = vadd.f32 0.0, %v992
    %v994 = vpop.f32.mrb[0].mxu0
    %995 = vmatprep.mubr.bf16.mxu0 0
    %996 = vmatmul.mubr.bf16.gmra.mrb[0].mxu0 %v912
    %v997 = vpop.f32.mrb[0].mxu0
    %v998 = vadd.f32 0.0, %v997
    %v999 = vpop.f32.mrb[0].mxu0
    %v1000 = vpop.f32.mrb[0].mxu0
    %v1001 = vadd.f32 0.0, %v1000
    %v1002 = vpop.f32.mrb[0].mxu0
    %1003 = vmatprep.mubr.bf16.mxu0 0
    %1004 = vmatmul.mubr.bf16.gmra.mrb[0].mxu0 %v913
    %v1005 = vpop.f32.mrb[0].mxu0
    %v1006 = vadd.f32 0.0, %v1005
    %v1007 = vpop.f32.mrb[0].mxu0
    %v1008 = vpop.f32.mrb[0].mxu0
    %v1009 = vadd.f32 0.0, %v1008
    %v1010 = vpop.f32.mrb[0].mxu0
    %1011 = vmatprep.mubr.bf16.mxu0 0
    %1012 = vmatmul.mubr.bf16.gmra.mrb[0].mxu0 %v914
    %v1013 = vpop.f32.mrb[0].mxu0
    %v1014 = vadd.f32 0.0, %v1013
    %v1015 = vpop.f32.mrb[0].mxu0
    %v1016 = vpop.f32.mrb[0].mxu0
    %v1017 = vadd.f32 0.0, %v1016
    %v1018 = vpop.f32.mrb[0].mxu0
    %1019 = vdwg.mxu0
    %1020 = vrot.lane.b32.xlu0 %v569, 112
    %v1021 = vpop.permute.xlu0 %1020
    %1022 = vrot.lane.b32.xlu0 %v570, 112
    %v1023 = vpop.permute.xlu0 %1022
    %1024 = vrot.lane.b32.xlu0 %v571, 112
    %v1025 = vpop.permute.xlu0 %1024
    %1026 = vrot.lane.b32.xlu0 %v572, 112
    %v1027 = vpop.permute.xlu0 %1026
    %1028 = vrot.lane.b32.xlu0 %v573, 112
    %v1029 = vpop.permute.xlu0 %1028
    %1030 = vrot.lane.b32.xlu0 %v574, 112
    %v1031 = vpop.permute.xlu0 %1030
    %1032 = vrot.lane.b32.xlu0 %v575, 112
    %v1033 = vpop.permute.xlu0 %1032
    %1034 = vrot.lane.b32.xlu0 %v576, 112
    %v1035 = vpop.permute.xlu0 %1034
    %1036 = vrot.lane.b32.xlu0 %v569, 48
    %v1037 = vpop.permute.xlu0 %1036
    %1038 = vrot.lane.b32.xlu0 %v570, 48
    %v1039 = vpop.permute.xlu0 %1038
    %1040 = vrot.lane.b32.xlu0 %v571, 48
    %v1041 = vpop.permute.xlu0 %1040
    %1042 = vrot.lane.b32.xlu0 %v572, 48
    %v1043 = vpop.permute.xlu0 %1042
    %1044 = vrot.lane.b32.xlu0 %v573, 48
    %v1045 = vpop.permute.xlu0 %1044
    %1046 = vrot.lane.b32.xlu0 %v574, 48
    %v1047 = vpop.permute.xlu0 %1046
    %1048 = vrot.lane.b32.xlu0 %v575, 48
    %v1049 = vpop.permute.xlu0 %1048
    %1050 = vrot.lane.b32.xlu0 %v576, 48
    %v1051 = vpop.permute.xlu0 %1050
    %v1053 = vsel %vm617, %v1021, 0
    %v1056 = vsel %vm617, %v1023, 0
    %v1059 = vsel %vm617, %v1025, 0
    %v1062 = vsel %vm617, %v1027, 0
    %v1065 = vsel %vm617, %v1029, 0
    %v1068 = vsel %vm617, %v1031, 0
    %v1071 = vsel %vm617, %v1033, 0
    %v1074 = vsel %vm617, %v1035, 0
    %v1077 = vsel %vm617, %v1037, 0
    %v1080 = vsel %vm617, %v1039, 0
    %v1083 = vsel %vm617, %v1041, 0
    %v1086 = vsel %vm617, %v1043, 0
    %v1089 = vsel %vm617, %v1045, 0
    %v1092 = vsel %vm617, %v1047, 0
    %v1095 = vsel %vm617, %v1049, 0
    %v1098 = vsel %vm617, %v1051, 0
    %1100 = vmatprep.subr.bf16.mxu0 0
    %1101 = vmatpush1.bf16.xpose.msra.mxu0 %v1077
    %1102 = vmatprep.subr.bf16.mxu0 0
    %1103 = vmatpush1.bf16.xpose.msra.mxu0 %v1080
    %1104 = vmatprep.subr.bf16.mxu0 0
    %1105 = vmatpush1.bf16.xpose.msra.mxu0 %v1083
    %1106 = vmatprep.subr.bf16.mxu0 0
    %1107 = vmatpush1.bf16.xpose.msra.mxu0 %v1086
    %1108 = vmatprep.subr.bf16.mxu0 0
    %1109 = vmatpush1.bf16.xpose.msra.mxu0 %v1089
    %1110 = vmatprep.subr.bf16.mxu0 0
    %1111 = vmatpush1.bf16.xpose.msra.mxu0 %v1092
    %1112 = vmatprep.subr.bf16.mxu0 0
    %1113 = vmatpush1.bf16.xpose.msra.mxu0 %v1095
    %1114 = vmatprep.subr.bf16.mxu0 0
    %1115 = vmatpush1.bf16.xpose.msra.mxu0 %v1098
    %1116 = vmatprep.subr.bf16.mxu0 0
    %1117 = vmatpush1.bf16.xpose.msra.mxu0 0
    %1118 = vmatprep.subr.bf16.mxu0 0
    %1119 = vmatpush1.bf16.xpose.msra.mxu0 0
    %1120 = vmatprep.subr.bf16.mxu0 0
    %1121 = vmatpush1.bf16.xpose.msra.mxu0 0
    %1122 = vmatprep.subr.bf16.mxu0 0
    %1123 = vmatpush1.bf16.xpose.msra.mxu0 0
    %1124 = vmatprep.subr.bf16.mxu0 0
    %1125 = vmatpush1.bf16.xpose.msra.mxu0 0
    %1126 = vmatprep.subr.bf16.mxu0 0
    %1127 = vmatpush1.bf16.xpose.msra.mxu0 0
    %1128 = vmatprep.subr.bf16.mxu0 0
    %1129 = vmatpush1.bf16.xpose.msra.mxu0 0
    %1130 = vmatprep.subr.bf16.mxu0 0
    %1131 = vmatpush1.bf16.xpose.msra.mxu0 0
    %1132 = vmatprep.mubr.bf16.mxu0 0
    %1133 = vmatmul.mubr.bf16.gmra.mrb[0].mxu0 %v1053
    %v1134 = vpop.f32.mrb[0].mxu0
    %v1135 = vadd.f32 %v577, %v1134
    %v1136 = vpop.f32.mrb[0].mxu0
    %v1137 = vpop.f32.mrb[0].mxu0
    %v1138 = vadd.f32 %v578, %v1137
    %v1139 = vpop.f32.mrb[0].mxu0
    %1140 = vmatprep.mubr.bf16.mxu0 0
    %1141 = vmatmul.mubr.bf16.gmra.mrb[0].mxu0 %v1056
    %v1142 = vpop.f32.mrb[0].mxu0
    %v1143 = vadd.f32 %v579, %v1142
    %v1144 = vpop.f32.mrb[0].mxu0
    %v1145 = vpop.f32.mrb[0].mxu0
    %v1146 = vadd.f32 %v580, %v1145
    %v1147 = vpop.f32.mrb[0].mxu0
    %1148 = vmatprep.mubr.bf16.mxu0 0
    %1149 = vmatmul.mubr.bf16.gmra.mrb[0].mxu0 %v1059
    %v1150 = vpop.f32.mrb[0].mxu0
    %v1151 = vadd.f32 %v581, %v1150
    %v1152 = vpop.f32.mrb[0].mxu0
    %v1153 = vpop.f32.mrb[0].mxu0
    %v1154 = vadd.f32 %v582, %v1153
    %v1155 = vpop.f32.mrb[0].mxu0
    %1156 = vmatprep.mubr.bf16.mxu0 0
    %1157 = vmatmul.mubr.bf16.gmra.mrb[0].mxu0 %v1062
    %v1158 = vpop.f32.mrb[0].mxu0
    %v1159 = vadd.f32 %v583, %v1158
    %v1160 = vpop.f32.mrb[0].mxu0
    %v1161 = vpop.f32.mrb[0].mxu0
    %v1162 = vadd.f32 %v584, %v1161
    %v1163 = vpop.f32.mrb[0].mxu0
    %1164 = vmatprep.mubr.bf16.mxu0 0
    %1165 = vmatmul.mubr.bf16.gmra.mrb[0].mxu0 %v1065
    %v1166 = vpop.f32.mrb[0].mxu0
    %v1167 = vadd.f32 %v585, %v1166
    %v1168 = vpop.f32.mrb[0].mxu0
    %v1169 = vpop.f32.mrb[0].mxu0
    %v1170 = vadd.f32 %v586, %v1169
    %v1171 = vpop.f32.mrb[0].mxu0
    %1172 = vmatprep.mubr.bf16.mxu0 0
    %1173 = vmatmul.mubr.bf16.gmra.mrb[0].mxu0 %v1068
    %v1174 = vpop.f32.mrb[0].mxu0
    %v1175 = vadd.f32 %v587, %v1174
    %v1176 = vpop.f32.mrb[0].mxu0
    %v1177 = vpop.f32.mrb[0].mxu0
    %v1178 = vadd.f32 %v588, %v1177
    %v1179 = vpop.f32.mrb[0].mxu0
    %1180 = vmatprep.mubr.bf16.mxu0 0
    %1181 = vmatmul.mubr.bf16.gmra.mrb[0].mxu0 %v1071
    %v1182 = vpop.f32.mrb[0].mxu0
    %v1183 = vadd.f32 %v589, %v1182
    %v1184 = vpop.f32.mrb[0].mxu0
    %v1185 = vpop.f32.mrb[0].mxu0
    %v1186 = vadd.f32 %v590, %v1185
    %v1187 = vpop.f32.mrb[0].mxu0
    %1188 = vmatprep.mubr.bf16.mxu0 0
    %1189 = vmatmul.mubr.bf16.gmra.mrb[0].mxu0 %v1074
    %v1190 = vpop.f32.mrb[0].mxu0
    %v1191 = vadd.f32 %v591, %v1190
    %v1192 = vpop.f32.mrb[0].mxu0
    %v1193 = vpop.f32.mrb[0].mxu0
    %v1194 = vadd.f32 %v592, %v1193
    %v1195 = vpop.f32.mrb[0].mxu0
    %1196 = vdwg.mxu0
    %1197 = vmax.xlane.f32.xlu0 %v1135
    %v1198 = vpop.xlane.xlu0 %1197
    %1199 = vmax.xlane.f32.xlu0 %v1138
    %v1200 = vpop.xlane.xlu0 %1199
    %1201 = vmax.xlane.f32.xlu0 %v1143
    %v1202 = vpop.xlane.xlu0 %1201
    %1203 = vmax.xlane.f32.xlu0 %v1146
    %v1204 = vpop.xlane.xlu0 %1203
    %1205 = vmax.xlane.f32.xlu0 %v1151
    %v1206 = vpop.xlane.xlu0 %1205
    %1207 = vmax.xlane.f32.xlu0 %v1154
    %v1208 = vpop.xlane.xlu0 %1207
    %1209 = vmax.xlane.f32.xlu0 %v1159
    %v1210 = vpop.xlane.xlu0 %1209
    %1211 = vmax.xlane.f32.xlu0 %v1162
    %v1212 = vpop.xlane.xlu0 %1211
    %1213 = vmax.xlane.f32.xlu0 %v1167
    %v1214 = vpop.xlane.xlu0 %1213
    %1215 = vmax.xlane.f32.xlu0 %v1170
    %v1216 = vpop.xlane.xlu0 %1215
    %1217 = vmax.xlane.f32.xlu0 %v1175
    %v1218 = vpop.xlane.xlu0 %1217
    %1219 = vmax.xlane.f32.xlu0 %v1178
    %v1220 = vpop.xlane.xlu0 %1219
    %1221 = vmax.xlane.f32.xlu0 %v1183
    %v1222 = vpop.xlane.xlu0 %1221
    %1223 = vmax.xlane.f32.xlu0 %v1186
    %v1224 = vpop.xlane.xlu0 %1223
    %1225 = vmax.xlane.f32.xlu0 %v1191
    %v1226 = vpop.xlane.xlu0 %1225
    %1227 = vmax.xlane.f32.xlu0 %v1194
    %v1228 = vpop.xlane.xlu0 %1227
    %v1229 = vsub.f32 %v1135, %v1198
    %v1230 = vsub.f32 %v1138, %v1200
    %v1231 = vsub.f32 %v1143, %v1202
    %v1232 = vsub.f32 %v1146, %v1204
    %v1233 = vsub.f32 %v1151, %v1206
    %v1234 = vsub.f32 %v1154, %v1208
    %v1235 = vsub.f32 %v1159, %v1210
    %v1236 = vsub.f32 %v1162, %v1212
    %v1237 = vsub.f32 %v1167, %v1214
    %v1238 = vsub.f32 %v1170, %v1216
    %v1239 = vsub.f32 %v1175, %v1218
    %v1240 = vsub.f32 %v1178, %v1220
    %v1241 = vsub.f32 %v1183, %v1222
    %v1242 = vsub.f32 %v1186, %v1224
    %v1243 = vsub.f32 %v1191, %v1226
    %v1244 = vsub.f32 %v1194, %v1228
    %v1245 = vmul.f32 %v1229, 1.442695
    %v1246 = vpow.pop %v1245
    %v1247 = vmul.f32 %v1230, 1.442695
    %v1248 = vpow.pop %v1247
    %v1249 = vmul.f32 %v1231, 1.442695
    %v1250 = vpow.pop %v1249
    %v1251 = vmul.f32 %v1232, 1.442695
    %v1252 = vpow.pop %v1251
    %v1253 = vmul.f32 %v1233, 1.442695
    %v1254 = vpow.pop %v1253
    %v1255 = vmul.f32 %v1234, 1.442695
    %v1256 = vpow.pop %v1255
    %v1257 = vmul.f32 %v1235, 1.442695
    %v1258 = vpow.pop %v1257
    %v1259 = vmul.f32 %v1236, 1.442695
    %v1260 = vpow.pop %v1259
    %v1261 = vmul.f32 %v1237, 1.442695
    %v1262 = vpow.pop %v1261
    %v1263 = vmul.f32 %v1238, 1.442695
    %v1264 = vpow.pop %v1263
    %v1265 = vmul.f32 %v1239, 1.442695
    %v1266 = vpow.pop %v1265
    %v1267 = vmul.f32 %v1240, 1.442695
    %v1268 = vpow.pop %v1267
    %v1269 = vmul.f32 %v1241, 1.442695
    %v1270 = vpow.pop %v1269
    %v1271 = vmul.f32 %v1242, 1.442695
    %v1272 = vpow.pop %v1271
    %v1273 = vmul.f32 %v1243, 1.442695
    %v1274 = vpow.pop %v1273
    %v1275 = vmul.f32 %v1244, 1.442695
    %v1276 = vpow.pop %v1275
    %1277 = vadd.xlane.f32.xlu0 %v1246
    %v1278 = vpop.xlane.xlu0 %1277
    %1279 = vadd.xlane.f32.xlu0 %v1248
    %v1280 = vpop.xlane.xlu0 %1279
    %1281 = vadd.xlane.f32.xlu0 %v1250
    %v1282 = vpop.xlane.xlu0 %1281
    %1283 = vadd.xlane.f32.xlu0 %v1252
    %v1284 = vpop.xlane.xlu0 %1283
    %1285 = vadd.xlane.f32.xlu0 %v1254
    %v1286 = vpop.xlane.xlu0 %1285
    %1287 = vadd.xlane.f32.xlu0 %v1256
    %v1288 = vpop.xlane.xlu0 %1287
    %1289 = vadd.xlane.f32.xlu0 %v1258
    %v1290 = vpop.xlane.xlu0 %1289
    %1291 = vadd.xlane.f32.xlu0 %v1260
    %v1292 = vpop.xlane.xlu0 %1291
    %1293 = vadd.xlane.f32.xlu0 %v1262
    %v1294 = vpop.xlane.xlu0 %1293
    %1295 = vadd.xlane.f32.xlu0 %v1264
    %v1296 = vpop.xlane.xlu0 %1295
    %1297 = vadd.xlane.f32.xlu0 %v1266
    %v1298 = vpop.xlane.xlu0 %1297
    %1299 = vadd.xlane.f32.xlu0 %v1268
    %v1300 = vpop.xlane.xlu0 %1299
    %1301 = vadd.xlane.f32.xlu0 %v1270
    %v1302 = vpop.xlane.xlu0 %1301
    %1303 = vadd.xlane.f32.xlu0 %v1272
    %v1304 = vpop.xlane.xlu0 %1303
    %1305 = vadd.xlane.f32.xlu0 %v1274
    %v1306 = vpop.xlane.xlu0 %1305
    %1307 = vadd.xlane.f32.xlu0 %v1276
    %v1308 = vpop.xlane.xlu0 %1307
    %v1309 = vrcp.pop %v1278
    %v1310 = vrcp.pop %v1280
    %v1311 = vrcp.pop %v1282
    %v1312 = vrcp.pop %v1284
    %v1313 = vrcp.pop %v1286
    %v1314 = vrcp.pop %v1288
    %v1315 = vrcp.pop %v1290
    %v1316 = vrcp.pop %v1292
    %v1317 = vrcp.pop %v1294
    %v1318 = vrcp.pop %v1296
    %v1319 = vrcp.pop %v1298
    %v1320 = vrcp.pop %v1300
    %v1321 = vrcp.pop %v1302
    %v1322 = vrcp.pop %v1304
    %v1323 = vrcp.pop %v1306
    %v1324 = vrcp.pop %v1308
    %v1325 = vmul.f32 %v1246, %v1309
    %v1326 = vmul.f32 %v1248, %v1310
    %v1327 = vmul.f32 %v1250, %v1311
    %v1328 = vmul.f32 %v1252, %v1312
    %v1329 = vmul.f32 %v1254, %v1313
    %v1330 = vmul.f32 %v1256, %v1314
    %v1331 = vmul.f32 %v1258, %v1315
    %v1332 = vmul.f32 %v1260, %v1316
    %v1333 = vmul.f32 %v1262, %v1317
    %v1334 = vmul.f32 %v1264, %v1318
    %v1335 = vmul.f32 %v1266, %v1319
    %v1336 = vmul.f32 %v1268, %v1320
    %v1337 = vmul.f32 %v1270, %v1321
    %v1338 = vmul.f32 %v1272, %v1322
    %v1339 = vmul.f32 %v1274, %v1323
    %v1340 = vmul.f32 %v1276, %v1324
    %v1341 = vpack.c.bf16 %v1326, %v1325
    %v1342 = vpack.c.bf16 %v1328, %v1327
    %v1343 = vpack.c.bf16 %v1330, %v1329
    %v1344 = vpack.c.bf16 %v1332, %v1331
    %v1345 = vpack.c.bf16 %v1334, %v1333
    %v1346 = vpack.c.bf16 %v1336, %v1335
    %v1347 = vpack.c.bf16 %v1338, %v1337
    %v1348 = vpack.c.bf16 %v1340, %v1339
    %1357 = vmatprep.subr.bf16.mxu0 0
    %1358 = vmatpush1.bf16.msra.mxu0 %v1037
    %1359 = vmatprep.subr.bf16.mxu0 0
    %1360 = vmatpush1.bf16.msra.mxu0 %v1039
    %1361 = vmatprep.subr.bf16.mxu0 0
    %1362 = vmatpush1.bf16.msra.mxu0 %v1041
    %1363 = vmatprep.subr.bf16.mxu0 0
    %1364 = vmatpush1.bf16.msra.mxu0 %v1043
    %1365 = vmatprep.subr.bf16.mxu0 0
    %1366 = vmatpush1.bf16.msra.mxu0 %v1045
    %1367 = vmatprep.subr.bf16.mxu0 0
    %1368 = vmatpush1.bf16.msra.mxu0 %v1047
    %1369 = vmatprep.subr.bf16.mxu0 0
    %1370 = vmatpush1.bf16.msra.mxu0 %v1049
    %1371 = vmatprep.subr.bf16.mxu0 0
    %1372 = vmatpush1.bf16.msra.mxu0 %v1051
    %1373 = vmatprep.subr.bf16.mxu0 0
    %1374 = vmatpush1.bf16.msra.mxu0 0
    %1375 = vmatprep.subr.bf16.mxu0 0
    %1376 = vmatpush1.bf16.msra.mxu0 0
    %1377 = vmatprep.subr.bf16.mxu0 0
    %1378 = vmatpush1.bf16.msra.mxu0 0
    %1379 = vmatprep.subr.bf16.mxu0 0
    %1380 = vmatpush1.bf16.msra.mxu0 0
    %1381 = vmatprep.subr.bf16.mxu0 0
    %1382 = vmatpush1.bf16.msra.mxu0 0
    %1383 = vmatprep.subr.bf16.mxu0 0
    %1384 = vmatpush1.bf16.msra.mxu0 0
    %1385 = vmatprep.subr.bf16.mxu0 0
    %1386 = vmatpush1.bf16.msra.mxu0 0
    %1387 = vmatprep.subr.bf16.mxu0 0
    %1388 = vmatpush1.bf16.msra.mxu0 0
    %1389 = vmatprep.mubr.bf16.mxu0 0
    %1390 = vmatmul.mubr.bf16.gmra.mrb[0].mxu0 %v1341
    %v1391 = vpop.f32.mrb[0].mxu0
    %v1392 = vadd.f32 0.0, %v1391
    %v1393 = vpop.f32.mrb[0].mxu0
    %v1394 = vpop.f32.mrb[0].mxu0
    %v1395 = vadd.f32 0.0, %v1394
    %v1396 = vpop.f32.mrb[0].mxu0
    %1397 = vmatprep.mubr.bf16.mxu0 0
    %1398 = vmatmul.mubr.bf16.gmra.mrb[0].mxu0 %v1342
    %v1399 = vpop.f32.mrb[0].mxu0
    %v1400 = vadd.f32 0.0, %v1399
    %v1401 = vpop.f32.mrb[0].mxu0
    %v1402 = vpop.f32.mrb[0].mxu0
    %v1403 = vadd.f32 0.0, %v1402
    %v1404 = vpop.f32.mrb[0].mxu0
    %1405 = vmatprep.mubr.bf16.mxu0 0
    %1406 = vmatmul.mubr.bf16.gmra.mrb[0].mxu0 %v1343
    %v1407 = vpop.f32.mrb[0].mxu0
    %v1408 = vadd.f32 0.0, %v1407
    %v1409 = vpop.f32.mrb[0].mxu0
    %v1410 = vpop.f32.mrb[0].mxu0
    %v1411 = vadd.f32 0.0, %v1410
    %v1412 = vpop.f32.mrb[0].mxu0
    %1413 = vmatprep.mubr.bf16.mxu0 0
    %1414 = vmatmul.mubr.bf16.gmra.mrb[0].mxu0 %v1344
    %v1415 = vpop.f32.mrb[0].mxu0
    %v1416 = vadd.f32 0.0, %v1415
    %v1417 = vpop.f32.mrb[0].mxu0
    %v1418 = vpop.f32.mrb[0].mxu0
    %v1419 = vadd.f32 0.0, %v1418
    %v1420 = vpop.f32.mrb[0].mxu0
    %1421 = vmatprep.mubr.bf16.mxu0 0
    %1422 = vmatmul.mubr.bf16.gmra.mrb[0].mxu0 %v1345
    %v1423 = vpop.f32.mrb[0].mxu0
    %v1424 = vadd.f32 0.0, %v1423
    %v1425 = vpop.f32.mrb[0].mxu0
    %v1426 = vpop.f32.mrb[0].mxu0
    %v1427 = vadd.f32 0.0, %v1426
    %v1428 = vpop.f32.mrb[0].mxu0
    %1429 = vmatprep.mubr.bf16.mxu0 0
    %1430 = vmatmul.mubr.bf16.gmra.mrb[0].mxu0 %v1346
    %v1431 = vpop.f32.mrb[0].mxu0
    %v1432 = vadd.f32 0.0, %v1431
    %v1433 = vpop.f32.mrb[0].mxu0
    %v1434 = vpop.f32.mrb[0].mxu0
    %v1435 = vadd.f32 0.0, %v1434
    %v1436 = vpop.f32.mrb[0].mxu0
    %1437 = vmatprep.mubr.bf16.mxu0 0
    %1438 = vmatmul.mubr.bf16.gmra.mrb[0].mxu0 %v1347
    %v1439 = vpop.f32.mrb[0].mxu0
    %v1440 = vadd.f32 0.0, %v1439
    %v1441 = vpop.f32.mrb[0].mxu0
    %v1442 = vpop.f32.mrb[0].mxu0
    %v1443 = vadd.f32 0.0, %v1442
    %v1444 = vpop.f32.mrb[0].mxu0
    %1445 = vmatprep.mubr.bf16.mxu0 0
    %1446 = vmatmul.mubr.bf16.gmra.mrb[0].mxu0 %v1348
    %v1447 = vpop.f32.mrb[0].mxu0
    %v1448 = vadd.f32 0.0, %v1447
    %v1449 = vpop.f32.mrb[0].mxu0
    %v1450 = vpop.f32.mrb[0].mxu0
    %v1451 = vadd.f32 0.0, %v1450
    %v1452 = vpop.f32.mrb[0].mxu0
    %1453 = vdwg.mxu0
    %1454 = vrot.lane.b32.xlu0 %v569, 96
    %v1455 = vpop.permute.xlu0 %1454
    %1456 = vrot.lane.b32.xlu0 %v570, 96
    %v1457 = vpop.permute.xlu0 %1456
    %1458 = vrot.lane.b32.xlu0 %v571, 96
    %v1459 = vpop.permute.xlu0 %1458
    %1460 = vrot.lane.b32.xlu0 %v572, 96
    %v1461 = vpop.permute.xlu0 %1460
    %1462 = vrot.lane.b32.xlu0 %v573, 96
    %v1463 = vpop.permute.xlu0 %1462
    %1464 = vrot.lane.b32.xlu0 %v574, 96
    %v1465 = vpop.permute.xlu0 %1464
    %1466 = vrot.lane.b32.xlu0 %v575, 96
    %v1467 = vpop.permute.xlu0 %1466
    %1468 = vrot.lane.b32.xlu0 %v576, 96
    %v1469 = vpop.permute.xlu0 %1468
    %1470 = vrot.lane.b32.xlu0 %v569, 32
    %v1471 = vpop.permute.xlu0 %1470
    %1472 = vrot.lane.b32.xlu0 %v570, 32
    %v1473 = vpop.permute.xlu0 %1472
    %1474 = vrot.lane.b32.xlu0 %v571, 32
    %v1475 = vpop.permute.xlu0 %1474
    %1476 = vrot.lane.b32.xlu0 %v572, 32
    %v1477 = vpop.permute.xlu0 %1476
    %1478 = vrot.lane.b32.xlu0 %v573, 32
    %v1479 = vpop.permute.xlu0 %1478
    %1480 = vrot.lane.b32.xlu0 %v574, 32
    %v1481 = vpop.permute.xlu0 %1480
    %1482 = vrot.lane.b32.xlu0 %v575, 32
    %v1483 = vpop.permute.xlu0 %1482
    %1484 = vrot.lane.b32.xlu0 %v576, 32
    %v1485 = vpop.permute.xlu0 %1484
    %v1487 = vsel %vm617, %v1455, 0
    %v1490 = vsel %vm617, %v1457, 0
    %v1493 = vsel %vm617, %v1459, 0
    %v1496 = vsel %vm617, %v1461, 0
    %v1499 = vsel %vm617, %v1463, 0
    %v1502 = vsel %vm617, %v1465, 0
    %v1505 = vsel %vm617, %v1467, 0
    %v1508 = vsel %vm617, %v1469, 0
    %v1511 = vsel %vm617, %v1471, 0
    %v1514 = vsel %vm617, %v1473, 0
    %v1517 = vsel %vm617, %v1475, 0
    %v1520 = vsel %vm617, %v1477, 0
    %v1523 = vsel %vm617, %v1479, 0
    %v1526 = vsel %vm617, %v1481, 0
    %v1529 = vsel %vm617, %v1483, 0
    %v1532 = vsel %vm617, %v1485, 0
    %1534 = vmatprep.subr.bf16.mxu0 0
    %1535 = vmatpush1.bf16.xpose.msra.mxu0 %v1511
    %1536 = vmatprep.subr.bf16.mxu0 0
    %1537 = vmatpush1.bf16.xpose.msra.mxu0 %v1514
    %1538 = vmatprep.subr.bf16.mxu0 0
    %1539 = vmatpush1.bf16.xpose.msra.mxu0 %v1517
    %1540 = vmatprep.subr.bf16.mxu0 0
    %1541 = vmatpush1.bf16.xpose.msra.mxu0 %v1520
    %1542 = vmatprep.subr.bf16.mxu0 0
    %1543 = vmatpush1.bf16.xpose.msra.mxu0 %v1523
    %1544 = vmatprep.subr.bf16.mxu0 0
    %1545 = vmatpush1.bf16.xpose.msra.mxu0 %v1526
    %1546 = vmatprep.subr.bf16.mxu0 0
    %1547 = vmatpush1.bf16.xpose.msra.mxu0 %v1529
    %1548 = vmatprep.subr.bf16.mxu0 0
    %1549 = vmatpush1.bf16.xpose.msra.mxu0 %v1532
    %1550 = vmatprep.subr.bf16.mxu0 0
    %1551 = vmatpush1.bf16.xpose.msra.mxu0 0
    %1552 = vmatprep.subr.bf16.mxu0 0
    %1553 = vmatpush1.bf16.xpose.msra.mxu0 0
    %1554 = vmatprep.subr.bf16.mxu0 0
    %1555 = vmatpush1.bf16.xpose.msra.mxu0 0
    %1556 = vmatprep.subr.bf16.mxu0 0
    %1557 = vmatpush1.bf16.xpose.msra.mxu0 0
    %1558 = vmatprep.subr.bf16.mxu0 0
    %1559 = vmatpush1.bf16.xpose.msra.mxu0 0
    %1560 = vmatprep.subr.bf16.mxu0 0
    %1561 = vmatpush1.bf16.xpose.msra.mxu0 0
    %1562 = vmatprep.subr.bf16.mxu0 0
    %1563 = vmatpush1.bf16.xpose.msra.mxu0 0
    %1564 = vmatprep.subr.bf16.mxu0 0
    %1565 = vmatpush1.bf16.xpose.msra.mxu0 0
    %1566 = vmatprep.mubr.bf16.mxu0 0
    %1567 = vmatmul.mubr.bf16.gmra.mrb[0].mxu0 %v1487
    %v1568 = vpop.f32.mrb[0].mxu0
    %v1569 = vadd.f32 %v577, %v1568
    %v1570 = vpop.f32.mrb[0].mxu0
    %v1571 = vpop.f32.mrb[0].mxu0
    %v1572 = vadd.f32 %v578, %v1571
    %v1573 = vpop.f32.mrb[0].mxu0
    %1574 = vmatprep.mubr.bf16.mxu0 0
    %1575 = vmatmul.mubr.bf16.gmra.mrb[0].mxu0 %v1490
    %v1576 = vpop.f32.mrb[0].mxu0
    %v1577 = vadd.f32 %v579, %v1576
    %v1578 = vpop.f32.mrb[0].mxu0
    %v1579 = vpop.f32.mrb[0].mxu0
    %v1580 = vadd.f32 %v580, %v1579
    %v1581 = vpop.f32.mrb[0].mxu0
    %1582 = vmatprep.mubr.bf16.mxu0 0
    %1583 = vmatmul.mubr.bf16.gmra.mrb[0].mxu0 %v1493
    %v1584 = vpop.f32.mrb[0].mxu0
    %v1585 = vadd.f32 %v581, %v1584
    %v1586 = vpop.f32.mrb[0].mxu0
    %v1587 = vpop.f32.mrb[0].mxu0
    %v1588 = vadd.f32 %v582, %v1587
    %v1589 = vpop.f32.mrb[0].mxu0
    %1590 = vmatprep.mubr.bf16.mxu0 0
    %1591 = vmatmul.mubr.bf16.gmra.mrb[0].mxu0 %v1496
    %v1592 = vpop.f32.mrb[0].mxu0
    %v1593 = vadd.f32 %v583, %v1592
    %v1594 = vpop.f32.mrb[0].mxu0
    %v1595 = vpop.f32.mrb[0].mxu0
    %v1596 = vadd.f32 %v584, %v1595
    %v1597 = vpop.f32.mrb[0].mxu0
    %1598 = vmatprep.mubr.bf16.mxu0 0
    %1599 = vmatmul.mubr.bf16.gmra.mrb[0].mxu0 %v1499
    %v1600 = vpop.f32.mrb[0].mxu0
    %v1601 = vadd.f32 %v585, %v1600
    %v1602 = vpop.f32.mrb[0].mxu0
    %v1603 = vpop.f32.mrb[0].mxu0
    %v1604 = vadd.f32 %v586, %v1603
    %v1605 = vpop.f32.mrb[0].mxu0
    %1606 = vmatprep.mubr.bf16.mxu0 0
    %1607 = vmatmul.mubr.bf16.gmra.mrb[0].mxu0 %v1502
    %v1608 = vpop.f32.mrb[0].mxu0
    %v1609 = vadd.f32 %v587, %v1608
    %v1610 = vpop.f32.mrb[0].mxu0
    %v1611 = vpop.f32.mrb[0].mxu0
    %v1612 = vadd.f32 %v588, %v1611
    %v1613 = vpop.f32.mrb[0].mxu0
    %1614 = vmatprep.mubr.bf16.mxu0 0
    %1615 = vmatmul.mubr.bf16.gmra.mrb[0].mxu0 %v1505
    %v1616 = vpop.f32.mrb[0].mxu0
    %v1617 = vadd.f32 %v589, %v1616
    %v1618 = vpop.f32.mrb[0].mxu0
    %v1619 = vpop.f32.mrb[0].mxu0
    %v1620 = vadd.f32 %v590, %v1619
    %v1621 = vpop.f32.mrb[0].mxu0
    %1622 = vmatprep.mubr.bf16.mxu0 0
    %1623 = vmatmul.mubr.bf16.gmra.mrb[0].mxu0 %v1508
    %v1624 = vpop.f32.mrb[0].mxu0
    %v1625 = vadd.f32 %v591, %v1624
    %v1626 = vpop.f32.mrb[0].mxu0
    %v1627 = vpop.f32.mrb[0].mxu0
    %v1628 = vadd.f32 %v592, %v1627
    %v1629 = vpop.f32.mrb[0].mxu0
    %1630 = vdwg.mxu0
    %1631 = vmax.xlane.f32.xlu0 %v1569
    %v1632 = vpop.xlane.xlu0 %1631
    %1633 = vmax.xlane.f32.xlu0 %v1572
    %v1634 = vpop.xlane.xlu0 %1633
    %1635 = vmax.xlane.f32.xlu0 %v1577
    %v1636 = vpop.xlane.xlu0 %1635
    %1637 = vmax.xlane.f32.xlu0 %v1580
    %v1638 = vpop.xlane.xlu0 %1637
    %1639 = vmax.xlane.f32.xlu0 %v1585
    %v1640 = vpop.xlane.xlu0 %1639
    %1641 = vmax.xlane.f32.xlu0 %v1588
    %v1642 = vpop.xlane.xlu0 %1641
    %1643 = vmax.xlane.f32.xlu0 %v1593
    %v1644 = vpop.xlane.xlu0 %1643
    %1645 = vmax.xlane.f32.xlu0 %v1596
    %v1646 = vpop.xlane.xlu0 %1645
    %1647 = vmax.xlane.f32.xlu0 %v1601
    %v1648 = vpop.xlane.xlu0 %1647
    %1649 = vmax.xlane.f32.xlu0 %v1604
    %v1650 = vpop.xlane.xlu0 %1649
    %1651 = vmax.xlane.f32.xlu0 %v1609
    %v1652 = vpop.xlane.xlu0 %1651
    %1653 = vmax.xlane.f32.xlu0 %v1612
    %v1654 = vpop.xlane.xlu0 %1653
    %1655 = vmax.xlane.f32.xlu0 %v1617
    %v1656 = vpop.xlane.xlu0 %1655
    %1657 = vmax.xlane.f32.xlu0 %v1620
    %v1658 = vpop.xlane.xlu0 %1657
    %1659 = vmax.xlane.f32.xlu0 %v1625
    %v1660 = vpop.xlane.xlu0 %1659
    %1661 = vmax.xlane.f32.xlu0 %v1628
    %v1662 = vpop.xlane.xlu0 %1661
    %v1663 = vsub.f32 %v1569, %v1632
    %v1664 = vsub.f32 %v1572, %v1634
    %v1665 = vsub.f32 %v1577, %v1636
    %v1666 = vsub.f32 %v1580, %v1638
    %v1667 = vsub.f32 %v1585, %v1640
    %v1668 = vsub.f32 %v1588, %v1642
    %v1669 = vsub.f32 %v1593, %v1644
    %v1670 = vsub.f32 %v1596, %v1646
    %v1671 = vsub.f32 %v1601, %v1648
    %v1672 = vsub.f32 %v1604, %v1650
    %v1673 = vsub.f32 %v1609, %v1652
    %v1674 = vsub.f32 %v1612, %v1654
    %v1675 = vsub.f32 %v1617, %v1656
    %v1676 = vsub.f32 %v1620, %v1658
    %v1677 = vsub.f32 %v1625, %v1660
    %v1678 = vsub.f32 %v1628, %v1662
    %v1679 = vmul.f32 %v1663, 1.442695
    %v1680 = vpow.pop %v1679
    %v1681 = vmul.f32 %v1664, 1.442695
    %v1682 = vpow.pop %v1681
    %v1683 = vmul.f32 %v1665, 1.442695
    %v1684 = vpow.pop %v1683
    %v1685 = vmul.f32 %v1666, 1.442695
    %v1686 = vpow.pop %v1685
    %v1687 = vmul.f32 %v1667, 1.442695
    %v1688 = vpow.pop %v1687
    %v1689 = vmul.f32 %v1668, 1.442695
    %v1690 = vpow.pop %v1689
    %v1691 = vmul.f32 %v1669, 1.442695
    %v1692 = vpow.pop %v1691
    %v1693 = vmul.f32 %v1670, 1.442695
    %v1694 = vpow.pop %v1693
    %v1695 = vmul.f32 %v1671, 1.442695
    %v1696 = vpow.pop %v1695
    %v1697 = vmul.f32 %v1672, 1.442695
    %v1698 = vpow.pop %v1697
    %v1699 = vmul.f32 %v1673, 1.442695
    %v1700 = vpow.pop %v1699
    %v1701 = vmul.f32 %v1674, 1.442695
    %v1702 = vpow.pop %v1701
    %v1703 = vmul.f32 %v1675, 1.442695
    %v1704 = vpow.pop %v1703
    %v1705 = vmul.f32 %v1676, 1.442695
    %v1706 = vpow.pop %v1705
    %v1707 = vmul.f32 %v1677, 1.442695
    %v1708 = vpow.pop %v1707
    %v1709 = vmul.f32 %v1678, 1.442695
    %v1710 = vpow.pop %v1709
    %1711 = vadd.xlane.f32.xlu0 %v1680
    %v1712 = vpop.xlane.xlu0 %1711
    %1713 = vadd.xlane.f32.xlu0 %v1682
    %v1714 = vpop.xlane.xlu0 %1713
    %1715 = vadd.xlane.f32.xlu0 %v1684
    %v1716 = vpop.xlane.xlu0 %1715
    %1717 = vadd.xlane.f32.xlu0 %v1686
    %v1718 = vpop.xlane.xlu0 %1717
    %1719 = vadd.xlane.f32.xlu0 %v1688
    %v1720 = vpop.xlane.xlu0 %1719
    %1721 = vadd.xlane.f32.xlu0 %v1690
    %v1722 = vpop.xlane.xlu0 %1721
    %1723 = vadd.xlane.f32.xlu0 %v1692
    %v1724 = vpop.xlane.xlu0 %1723
    %1725 = vadd.xlane.f32.xlu0 %v1694
    %v1726 = vpop.xlane.xlu0 %1725
    %1727 = vadd.xlane.f32.xlu0 %v1696
    %v1728 = vpop.xlane.xlu0 %1727
    %1729 = vadd.xlane.f32.xlu0 %v1698
    %v1730 = vpop.xlane.xlu0 %1729
    %1731 = vadd.xlane.f32.xlu0 %v1700
    %v1732 = vpop.xlane.xlu0 %1731
    %1733 = vadd.xlane.f32.xlu0 %v1702
    %v1734 = vpop.xlane.xlu0 %1733
    %1735 = vadd.xlane.f32.xlu0 %v1704
    %v1736 = vpop.xlane.xlu0 %1735
    %1737 = vadd.xlane.f32.xlu0 %v1706
    %v1738 = vpop.xlane.xlu0 %1737
    %1739 = vadd.xlane.f32.xlu0 %v1708
    %v1740 = vpop.xlane.xlu0 %1739
    %1741 = vadd.xlane.f32.xlu0 %v1710
    %v1742 = vpop.xlane.xlu0 %1741
    %v1743 = vrcp.pop %v1712
    %v1744 = vrcp.pop %v1714
    %v1745 = vrcp.pop %v1716
    %v1746 = vrcp.pop %v1718
    %v1747 = vrcp.pop %v1720
    %v1748 = vrcp.pop %v1722
    %v1749 = vrcp.pop %v1724
    %v1750 = vrcp.pop %v1726
    %v1751 = vrcp.pop %v1728
    %v1752 = vrcp.pop %v1730
    %v1753 = vrcp.pop %v1732
    %v1754 = vrcp.pop %v1734
    %v1755 = vrcp.pop %v1736
    %v1756 = vrcp.pop %v1738
    %v1757 = vrcp.pop %v1740
    %v1758 = vrcp.pop %v1742
    %v1759 = vmul.f32 %v1680, %v1743
    %v1760 = vmul.f32 %v1682, %v1744
    %v1761 = vmul.f32 %v1684, %v1745
    %v1762 = vmul.f32 %v1686, %v1746
    %v1763 = vmul.f32 %v1688, %v1747
    %v1764 = vmul.f32 %v1690, %v1748
    %v1765 = vmul.f32 %v1692, %v1749
    %v1766 = vmul.f32 %v1694, %v1750
    %v1767 = vmul.f32 %v1696, %v1751
    %v1768 = vmul.f32 %v1698, %v1752
    %v1769 = vmul.f32 %v1700, %v1753
    %v1770 = vmul.f32 %v1702, %v1754
    %v1771 = vmul.f32 %v1704, %v1755
    %v1772 = vmul.f32 %v1706, %v1756
    %v1773 = vmul.f32 %v1708, %v1757
    %v1774 = vmul.f32 %v1710, %v1758
    %v1775 = vpack.c.bf16 %v1760, %v1759
    %v1776 = vpack.c.bf16 %v1762, %v1761
    %v1777 = vpack.c.bf16 %v1764, %v1763
    %v1778 = vpack.c.bf16 %v1766, %v1765
    %v1779 = vpack.c.bf16 %v1768, %v1767
    %v1780 = vpack.c.bf16 %v1770, %v1769
    %v1781 = vpack.c.bf16 %v1772, %v1771
    %v1782 = vpack.c.bf16 %v1774, %v1773
    %1791 = vmatprep.subr.bf16.mxu0 0
    %1792 = vmatpush1.bf16.msra.mxu0 %v1471
    %1793 = vmatprep.subr.bf16.mxu0 0
    %1794 = vmatpush1.bf16.msra.mxu0 %v1473
    %1795 = vmatprep.subr.bf16.mxu0 0
    %1796 = vmatpush1.bf16.msra.mxu0 %v1475
    %1797 = vmatprep.subr.bf16.mxu0 0
    %1798 = vmatpush1.bf16.msra.mxu0 %v1477
    %1799 = vmatprep.subr.bf16.mxu0 0
    %1800 = vmatpush1.bf16.msra.mxu0 %v1479
    %1801 = vmatprep.subr.bf16.mxu0 0
    %1802 = vmatpush1.bf16.msra.mxu0 %v1481
    %1803 = vmatprep.subr.bf16.mxu0 0
    %1804 = vmatpush1.bf16.msra.mxu0 %v1483
    %1805 = vmatprep.subr.bf16.mxu0 0
    %1806 = vmatpush1.bf16.msra.mxu0 %v1485
    %1807 = vmatprep.subr.bf16.mxu0 0
    %1808 = vmatpush1.bf16.msra.mxu0 0
    %1809 = vmatprep.subr.bf16.mxu0 0
    %1810 = vmatpush1.bf16.msra.mxu0 0
    %1811 = vmatprep.subr.bf16.mxu0 0
    %1812 = vmatpush1.bf16.msra.mxu0 0
    %1813 = vmatprep.subr.bf16.mxu0 0
    %1814 = vmatpush1.bf16.msra.mxu0 0
    %1815 = vmatprep.subr.bf16.mxu0 0
    %1816 = vmatpush1.bf16.msra.mxu0 0
    %1817 = vmatprep.subr.bf16.mxu0 0
    %1818 = vmatpush1.bf16.msra.mxu0 0
    %1819 = vmatprep.subr.bf16.mxu0 0
    %1820 = vmatpush1.bf16.msra.mxu0 0
    %1821 = vmatprep.subr.bf16.mxu0 0
    %1822 = vmatpush1.bf16.msra.mxu0 0
    %1823 = vmatprep.mubr.bf16.mxu0 0
    %1824 = vmatmul.mubr.bf16.gmra.mrb[0].mxu0 %v1775
    %v1825 = vpop.f32.mrb[0].mxu0
    %v1826 = vadd.f32 0.0, %v1825
    %v1827 = vpop.f32.mrb[0].mxu0
    %v1828 = vpop.f32.mrb[0].mxu0
    %v1829 = vadd.f32 0.0, %v1828
    %v1830 = vpop.f32.mrb[0].mxu0
    %1831 = vmatprep.mubr.bf16.mxu0 0
    %1832 = vmatmul.mubr.bf16.gmra.mrb[0].mxu0 %v1776
    %v1833 = vpop.f32.mrb[0].mxu0
    %v1834 = vadd.f32 0.0, %v1833
    %v1835 = vpop.f32.mrb[0].mxu0
    %v1836 = vpop.f32.mrb[0].mxu0
    %v1837 = vadd.f32 0.0, %v1836
    %v1838 = vpop.f32.mrb[0].mxu0
    %1839 = vmatprep.mubr.bf16.mxu0 0
    %1840 = vmatmul.mubr.bf16.gmra.mrb[0].mxu0 %v1777
    %v1841 = vpop.f32.mrb[0].mxu0
    %v1842 = vadd.f32 0.0, %v1841
    %v1843 = vpop.f32.mrb[0].mxu0
    %v1844 = vpop.f32.mrb[0].mxu0
    %v1845 = vadd.f32 0.0, %v1844
    %v1846 = vpop.f32.mrb[0].mxu0
    %1847 = vmatprep.mubr.bf16.mxu0 0
    %1848 = vmatmul.mubr.bf16.gmra.mrb[0].mxu0 %v1778
    %v1849 = vpop.f32.mrb[0].mxu0
    %v1850 = vadd.f32 0.0, %v1849
    %v1851 = vpop.f32.mrb[0].mxu0
    %v1852 = vpop.f32.mrb[0].mxu0
    %v1853 = vadd.f32 0.0, %v1852
    %v1854 = vpop.f32.mrb[0].mxu0
    %1855 = vmatprep.mubr.bf16.mxu0 0
    %1856 = vmatmul.mubr.bf16.gmra.mrb[0].mxu0 %v1779
    %v1857 = vpop.f32.mrb[0].mxu0
    %v1858 = vadd.f32 0.0, %v1857
    %v1859 = vpop.f32.mrb[0].mxu0
    %v1860 = vpop.f32.mrb[0].mxu0
    %v1861 = vadd.f32 0.0, %v1860
    %v1862 = vpop.f32.mrb[0].mxu0
    %1863 = vmatprep.mubr.bf16.mxu0 0
    %1864 = vmatmul.mubr.bf16.gmra.mrb[0].mxu0 %v1780
    %v1865 = vpop.f32.mrb[0].mxu0
    %v1866 = vadd.f32 0.0, %v1865
    %v1867 = vpop.f32.mrb[0].mxu0
    %v1868 = vpop.f32.mrb[0].mxu0
    %v1869 = vadd.f32 0.0, %v1868
    %v1870 = vpop.f32.mrb[0].mxu0
    %1871 = vmatprep.mubr.bf16.mxu0 0
    %1872 = vmatmul.mubr.bf16.gmra.mrb[0].mxu0 %v1781
    %v1873 = vpop.f32.mrb[0].mxu0
    %v1874 = vadd.f32 0.0, %v1873
    %v1875 = vpop.f32.mrb[0].mxu0
    %v1876 = vpop.f32.mrb[0].mxu0
    %v1877 = vadd.f32 0.0, %v1876
    %v1878 = vpop.f32.mrb[0].mxu0
    %1879 = vmatprep.mubr.bf16.mxu0 0
    %1880 = vmatmul.mubr.bf16.gmra.mrb[0].mxu0 %v1782
    %v1881 = vpop.f32.mrb[0].mxu0
    %v1882 = vadd.f32 0.0, %v1881
    %v1883 = vpop.f32.mrb[0].mxu0
    %v1884 = vpop.f32.mrb[0].mxu0
    %v1885 = vadd.f32 0.0, %v1884
    %v1886 = vpop.f32.mrb[0].mxu0
    %1887 = vdwg.mxu0
    %1888 = vrot.lane.b32.xlu0 %v569, 80
    %v1889 = vpop.permute.xlu0 %1888
    %1890 = vrot.lane.b32.xlu0 %v570, 80
    %v1891 = vpop.permute.xlu0 %1890
    %1892 = vrot.lane.b32.xlu0 %v571, 80
    %v1893 = vpop.permute.xlu0 %1892
    %1894 = vrot.lane.b32.xlu0 %v572, 80
    %v1895 = vpop.permute.xlu0 %1894
    %1896 = vrot.lane.b32.xlu0 %v573, 80
    %v1897 = vpop.permute.xlu0 %1896
    %1898 = vrot.lane.b32.xlu0 %v574, 80
    %v1899 = vpop.permute.xlu0 %1898
    %1900 = vrot.lane.b32.xlu0 %v575, 80
    %v1901 = vpop.permute.xlu0 %1900
    %1902 = vrot.lane.b32.xlu0 %v576, 80
    %v1903 = vpop.permute.xlu0 %1902
    %1904 = vrot.lane.b32.xlu0 %v569, 16
    %v1905 = vpop.permute.xlu0 %1904
    %1906 = vrot.lane.b32.xlu0 %v570, 16
    %v1907 = vpop.permute.xlu0 %1906
    %1908 = vrot.lane.b32.xlu0 %v571, 16
    %v1909 = vpop.permute.xlu0 %1908
    %1910 = vrot.lane.b32.xlu0 %v572, 16
    %v1911 = vpop.permute.xlu0 %1910
    %1912 = vrot.lane.b32.xlu0 %v573, 16
    %v1913 = vpop.permute.xlu0 %1912
    %1914 = vrot.lane.b32.xlu0 %v574, 16
    %v1915 = vpop.permute.xlu0 %1914
    %1916 = vrot.lane.b32.xlu0 %v575, 16
    %v1917 = vpop.permute.xlu0 %1916
    %1918 = vrot.lane.b32.xlu0 %v576, 16
    %v1919 = vpop.permute.xlu0 %1918
    %v1921 = vsel %vm617, %v1889, 0
    %v1924 = vsel %vm617, %v1891, 0
    %v1927 = vsel %vm617, %v1893, 0
    %v1930 = vsel %vm617, %v1895, 0
    %v1933 = vsel %vm617, %v1897, 0
    %v1936 = vsel %vm617, %v1899, 0
    %v1939 = vsel %vm617, %v1901, 0
    %v1942 = vsel %vm617, %v1903, 0
    %v1945 = vsel %vm617, %v1905, 0
    %v1948 = vsel %vm617, %v1907, 0
    %v1951 = vsel %vm617, %v1909, 0
    %v1954 = vsel %vm617, %v1911, 0
    %v1957 = vsel %vm617, %v1913, 0
    %v1960 = vsel %vm617, %v1915, 0
    %v1963 = vsel %vm617, %v1917, 0
    %v1966 = vsel %vm617, %v1919, 0
    %1968 = vmatprep.subr.bf16.mxu0 0
    %1969 = vmatpush1.bf16.xpose.msra.mxu0 %v1945
    %1970 = vmatprep.subr.bf16.mxu0 0
    %1971 = vmatpush1.bf16.xpose.msra.mxu0 %v1948
    %1972 = vmatprep.subr.bf16.mxu0 0
    %1973 = vmatpush1.bf16.xpose.msra.mxu0 %v1951
    %1974 = vmatprep.subr.bf16.mxu0 0
    %1975 = vmatpush1.bf16.xpose.msra.mxu0 %v1954
    %1976 = vmatprep.subr.bf16.mxu0 0
    %1977 = vmatpush1.bf16.xpose.msra.mxu0 %v1957
    %1978 = vmatprep.subr.bf16.mxu0 0
    %1979 = vmatpush1.bf16.xpose.msra.mxu0 %v1960
    %1980 = vmatprep.subr.bf16.mxu0 0
    %1981 = vmatpush1.bf16.xpose.msra.mxu0 %v1963
    %1982 = vmatprep.subr.bf16.mxu0 0
    %1983 = vmatpush1.bf16.xpose.msra.mxu0 %v1966
    %1984 = vmatprep.subr.bf16.mxu0 0
    %1985 = vmatpush1.bf16.xpose.msra.mxu0 0
    %1986 = vmatprep.subr.bf16.mxu0 0
    %1987 = vmatpush1.bf16.xpose.msra.mxu0 0
    %1988 = vmatprep.subr.bf16.mxu0 0
    %1989 = vmatpush1.bf16.xpose.msra.mxu0 0
    %1990 = vmatprep.subr.bf16.mxu0 0
    %1991 = vmatpush1.bf16.xpose.msra.mxu0 0
    %1992 = vmatprep.subr.bf16.mxu0 0
    %1993 = vmatpush1.bf16.xpose.msra.mxu0 0
    %1994 = vmatprep.subr.bf16.mxu0 0
    %1995 = vmatpush1.bf16.xpose.msra.mxu0 0
    %1996 = vmatprep.subr.bf16.mxu0 0
    %1997 = vmatpush1.bf16.xpose.msra.mxu0 0
    %1998 = vmatprep.subr.bf16.mxu0 0
    %1999 = vmatpush1.bf16.xpose.msra.mxu0 0
    %2000 = vmatprep.mubr.bf16.mxu0 0
    %2001 = vmatmul.mubr.bf16.gmra.mrb[0].mxu0 %v1921
    %v2002 = vpop.f32.mrb[0].mxu0
    %v2003 = vadd.f32 %v577, %v2002
    %v2004 = vpop.f32.mrb[0].mxu0
    %v2005 = vpop.f32.mrb[0].mxu0
    %v2006 = vadd.f32 %v578, %v2005
    %v2007 = vpop.f32.mrb[0].mxu0
    %2008 = vmatprep.mubr.bf16.mxu0 0
    %2009 = vmatmul.mubr.bf16.gmra.mrb[0].mxu0 %v1924
    %v2010 = vpop.f32.mrb[0].mxu0
    %v2011 = vadd.f32 %v579, %v2010
    %v2012 = vpop.f32.mrb[0].mxu0
    %v2013 = vpop.f32.mrb[0].mxu0
    %v2014 = vadd.f32 %v580, %v2013
    %v2015 = vpop.f32.mrb[0].mxu0
    %2016 = vmatprep.mubr.bf16.mxu0 0
    %2017 = vmatmul.mubr.bf16.gmra.mrb[0].mxu0 %v1927
    %v2018 = vpop.f32.mrb[0].mxu0
    %v2019 = vadd.f32 %v581, %v2018
    %v2020 = vpop.f32.mrb[0].mxu0
    %v2021 = vpop.f32.mrb[0].mxu0
    %v2022 = vadd.f32 %v582, %v2021
    %v2023 = vpop.f32.mrb[0].mxu0
    %2024 = vmatprep.mubr.bf16.mxu0 0
    %2025 = vmatmul.mubr.bf16.gmra.mrb[0].mxu0 %v1930
    %v2026 = vpop.f32.mrb[0].mxu0
    %v2027 = vadd.f32 %v583, %v2026
    %v2028 = vpop.f32.mrb[0].mxu0
    %v2029 = vpop.f32.mrb[0].mxu0
    %v2030 = vadd.f32 %v584, %v2029
    %v2031 = vpop.f32.mrb[0].mxu0
    %2032 = vmatprep.mubr.bf16.mxu0 0
    %2033 = vmatmul.mubr.bf16.gmra.mrb[0].mxu0 %v1933
    %v2034 = vpop.f32.mrb[0].mxu0
    %v2035 = vadd.f32 %v585, %v2034
    %v2036 = vpop.f32.mrb[0].mxu0
    %v2037 = vpop.f32.mrb[0].mxu0
    %v2038 = vadd.f32 %v586, %v2037
    %v2039 = vpop.f32.mrb[0].mxu0
    %2040 = vmatprep.mubr.bf16.mxu0 0
    %2041 = vmatmul.mubr.bf16.gmra.mrb[0].mxu0 %v1936
    %v2042 = vpop.f32.mrb[0].mxu0
    %v2043 = vadd.f32 %v587, %v2042
    %v2044 = vpop.f32.mrb[0].mxu0
    %v2045 = vpop.f32.mrb[0].mxu0
    %v2046 = vadd.f32 %v588, %v2045
    %v2047 = vpop.f32.mrb[0].mxu0
    %2048 = vmatprep.mubr.bf16.mxu0 0
    %2049 = vmatmul.mubr.bf16.gmra.mrb[0].mxu0 %v1939
    %v2050 = vpop.f32.mrb[0].mxu0
    %v2051 = vadd.f32 %v589, %v2050
    %v2052 = vpop.f32.mrb[0].mxu0
    %v2053 = vpop.f32.mrb[0].mxu0
    %v2054 = vadd.f32 %v590, %v2053
    %v2055 = vpop.f32.mrb[0].mxu0
    %2056 = vmatprep.mubr.bf16.mxu0 0
    %2057 = vmatmul.mubr.bf16.gmra.mrb[0].mxu0 %v1942
    %v2058 = vpop.f32.mrb[0].mxu0
    %v2059 = vadd.f32 %v591, %v2058
    %v2060 = vpop.f32.mrb[0].mxu0
    %v2061 = vpop.f32.mrb[0].mxu0
    %v2062 = vadd.f32 %v592, %v2061
    %v2063 = vpop.f32.mrb[0].mxu0
    %2064 = vdwg.mxu0
    %2065 = vmax.xlane.f32.xlu0 %v2003
    %v2066 = vpop.xlane.xlu0 %2065
    %2067 = vmax.xlane.f32.xlu0 %v2006
    %v2068 = vpop.xlane.xlu0 %2067
    %2069 = vmax.xlane.f32.xlu0 %v2011
    %v2070 = vpop.xlane.xlu0 %2069
    %2071 = vmax.xlane.f32.xlu0 %v2014
    %v2072 = vpop.xlane.xlu0 %2071
    %2073 = vmax.xlane.f32.xlu0 %v2019
    %v2074 = vpop.xlane.xlu0 %2073
    %2075 = vmax.xlane.f32.xlu0 %v2022
    %v2076 = vpop.xlane.xlu0 %2075
    %2077 = vmax.xlane.f32.xlu0 %v2027
    %v2078 = vpop.xlane.xlu0 %2077
    %2079 = vmax.xlane.f32.xlu0 %v2030
    %v2080 = vpop.xlane.xlu0 %2079
    %2081 = vmax.xlane.f32.xlu0 %v2035
    %v2082 = vpop.xlane.xlu0 %2081
    %2083 = vmax.xlane.f32.xlu0 %v2038
    %v2084 = vpop.xlane.xlu0 %2083
    %2085 = vmax.xlane.f32.xlu0 %v2043
    %v2086 = vpop.xlane.xlu0 %2085
    %2087 = vmax.xlane.f32.xlu0 %v2046
    %v2088 = vpop.xlane.xlu0 %2087
    %2089 = vmax.xlane.f32.xlu0 %v2051
    %v2090 = vpop.xlane.xlu0 %2089
    %2091 = vmax.xlane.f32.xlu0 %v2054
    %v2092 = vpop.xlane.xlu0 %2091
    %2093 = vmax.xlane.f32.xlu0 %v2059
    %v2094 = vpop.xlane.xlu0 %2093
    %2095 = vmax.xlane.f32.xlu0 %v2062
    %v2096 = vpop.xlane.xlu0 %2095
    %v2097 = vsub.f32 %v2003, %v2066
    %v2098 = vsub.f32 %v2006, %v2068
    %v2099 = vsub.f32 %v2011, %v2070
    %v2100 = vsub.f32 %v2014, %v2072
    %v2101 = vsub.f32 %v2019, %v2074
    %v2102 = vsub.f32 %v2022, %v2076
    %v2103 = vsub.f32 %v2027, %v2078
    %v2104 = vsub.f32 %v2030, %v2080
    %v2105 = vsub.f32 %v2035, %v2082
    %v2106 = vsub.f32 %v2038, %v2084
    %v2107 = vsub.f32 %v2043, %v2086
    %v2108 = vsub.f32 %v2046, %v2088
    %v2109 = vsub.f32 %v2051, %v2090
    %v2110 = vsub.f32 %v2054, %v2092
    %v2111 = vsub.f32 %v2059, %v2094
    %v2112 = vsub.f32 %v2062, %v2096
    %v2113 = vmul.f32 %v2097, 1.442695
    %v2114 = vpow.pop %v2113
    %v2115 = vmul.f32 %v2098, 1.442695
    %v2116 = vpow.pop %v2115
    %v2117 = vmul.f32 %v2099, 1.442695
    %v2118 = vpow.pop %v2117
    %v2119 = vmul.f32 %v2100, 1.442695
    %v2120 = vpow.pop %v2119
    %v2121 = vmul.f32 %v2101, 1.442695
    %v2122 = vpow.pop %v2121
    %v2123 = vmul.f32 %v2102, 1.442695
    %v2124 = vpow.pop %v2123
    %v2125 = vmul.f32 %v2103, 1.442695
    %v2126 = vpow.pop %v2125
    %v2127 = vmul.f32 %v2104, 1.442695
    %v2128 = vpow.pop %v2127
    %v2129 = vmul.f32 %v2105, 1.442695
    %v2130 = vpow.pop %v2129
    %v2131 = vmul.f32 %v2106, 1.442695
    %v2132 = vpow.pop %v2131
    %v2133 = vmul.f32 %v2107, 1.442695
    %v2134 = vpow.pop %v2133
    %v2135 = vmul.f32 %v2108, 1.442695
    %v2136 = vpow.pop %v2135
    %v2137 = vmul.f32 %v2109, 1.442695
    %v2138 = vpow.pop %v2137
    %v2139 = vmul.f32 %v2110, 1.442695
    %v2140 = vpow.pop %v2139
    %v2141 = vmul.f32 %v2111, 1.442695
    %v2142 = vpow.pop %v2141
    %v2143 = vmul.f32 %v2112, 1.442695
    %v2144 = vpow.pop %v2143
    %2145 = vadd.xlane.f32.xlu0 %v2114
    %v2146 = vpop.xlane.xlu0 %2145
    %2147 = vadd.xlane.f32.xlu0 %v2116
    %v2148 = vpop.xlane.xlu0 %2147
    %2149 = vadd.xlane.f32.xlu0 %v2118
    %v2150 = vpop.xlane.xlu0 %2149
    %2151 = vadd.xlane.f32.xlu0 %v2120
    %v2152 = vpop.xlane.xlu0 %2151
    %2153 = vadd.xlane.f32.xlu0 %v2122
    %v2154 = vpop.xlane.xlu0 %2153
    %2155 = vadd.xlane.f32.xlu0 %v2124
    %v2156 = vpop.xlane.xlu0 %2155
    %2157 = vadd.xlane.f32.xlu0 %v2126
    %v2158 = vpop.xlane.xlu0 %2157
    %2159 = vadd.xlane.f32.xlu0 %v2128
    %v2160 = vpop.xlane.xlu0 %2159
    %2161 = vadd.xlane.f32.xlu0 %v2130
    %v2162 = vpop.xlane.xlu0 %2161
    %2163 = vadd.xlane.f32.xlu0 %v2132
    %v2164 = vpop.xlane.xlu0 %2163
    %2165 = vadd.xlane.f32.xlu0 %v2134
    %v2166 = vpop.xlane.xlu0 %2165
    %2167 = vadd.xlane.f32.xlu0 %v2136
    %v2168 = vpop.xlane.xlu0 %2167
    %2169 = vadd.xlane.f32.xlu0 %v2138
    %v2170 = vpop.xlane.xlu0 %2169
    %2171 = vadd.xlane.f32.xlu0 %v2140
    %v2172 = vpop.xlane.xlu0 %2171
    %2173 = vadd.xlane.f32.xlu0 %v2142
    %v2174 = vpop.xlane.xlu0 %2173
    %2175 = vadd.xlane.f32.xlu0 %v2144
    %v2176 = vpop.xlane.xlu0 %2175
    %v2177 = vrcp.pop %v2146
    %v2178 = vrcp.pop %v2148
    %v2179 = vrcp.pop %v2150
    %v2180 = vrcp.pop %v2152
    %v2181 = vrcp.pop %v2154
    %v2182 = vrcp.pop %v2156
    %v2183 = vrcp.pop %v2158
    %v2184 = vrcp.pop %v2160
    %v2185 = vrcp.pop %v2162
    %v2186 = vrcp.pop %v2164
    %v2187 = vrcp.pop %v2166
    %v2188 = vrcp.pop %v2168
    %v2189 = vrcp.pop %v2170
    %v2190 = vrcp.pop %v2172
    %v2191 = vrcp.pop %v2174
    %v2192 = vrcp.pop %v2176
    %v2193 = vmul.f32 %v2114, %v2177
    %v2194 = vmul.f32 %v2116, %v2178
    %v2195 = vmul.f32 %v2118, %v2179
    %v2196 = vmul.f32 %v2120, %v2180
    %v2197 = vmul.f32 %v2122, %v2181
    %v2198 = vmul.f32 %v2124, %v2182
    %v2199 = vmul.f32 %v2126, %v2183
    %v2200 = vmul.f32 %v2128, %v2184
    %v2201 = vmul.f32 %v2130, %v2185
    %v2202 = vmul.f32 %v2132, %v2186
    %v2203 = vmul.f32 %v2134, %v2187
    %v2204 = vmul.f32 %v2136, %v2188
    %v2205 = vmul.f32 %v2138, %v2189
    %v2206 = vmul.f32 %v2140, %v2190
    %v2207 = vmul.f32 %v2142, %v2191
    %v2208 = vmul.f32 %v2144, %v2192
    %v2209 = vpack.c.bf16 %v2194, %v2193
    %v2210 = vpack.c.bf16 %v2196, %v2195
    %v2211 = vpack.c.bf16 %v2198, %v2197
    %v2212 = vpack.c.bf16 %v2200, %v2199
    %v2213 = vpack.c.bf16 %v2202, %v2201
    %v2214 = vpack.c.bf16 %v2204, %v2203
    %v2215 = vpack.c.bf16 %v2206, %v2205
    %v2216 = vpack.c.bf16 %v2208, %v2207
    %2225 = vmatprep.subr.bf16.mxu0 0
    %2226 = vmatpush1.bf16.msra.mxu0 %v1905
    %2227 = vmatprep.subr.bf16.mxu0 0
    %2228 = vmatpush1.bf16.msra.mxu0 %v1907
    %2229 = vmatprep.subr.bf16.mxu0 0
    %2230 = vmatpush1.bf16.msra.mxu0 %v1909
    %2231 = vmatprep.subr.bf16.mxu0 0
    %2232 = vmatpush1.bf16.msra.mxu0 %v1911
    %2233 = vmatprep.subr.bf16.mxu0 0
    %2234 = vmatpush1.bf16.msra.mxu0 %v1913
    %2235 = vmatprep.subr.bf16.mxu0 0
    %2236 = vmatpush1.bf16.msra.mxu0 %v1915
    %2237 = vmatprep.subr.bf16.mxu0 0
    %2238 = vmatpush1.bf16.msra.mxu0 %v1917
    %2239 = vmatprep.subr.bf16.mxu0 0
    %2240 = vmatpush1.bf16.msra.mxu0 %v1919
    %2241 = vmatprep.subr.bf16.mxu0 0
    %2242 = vmatpush1.bf16.msra.mxu0 0
    %2243 = vmatprep.subr.bf16.mxu0 0
    %2244 = vmatpush1.bf16.msra.mxu0 0
    %2245 = vmatprep.subr.bf16.mxu0 0
    %2246 = vmatpush1.bf16.msra.mxu0 0
    %2247 = vmatprep.subr.bf16.mxu0 0
    %2248 = vmatpush1.bf16.msra.mxu0 0
    %2249 = vmatprep.subr.bf16.mxu0 0
    %2250 = vmatpush1.bf16.msra.mxu0 0
    %2251 = vmatprep.subr.bf16.mxu0 0
    %2252 = vmatpush1.bf16.msra.mxu0 0
    %2253 = vmatprep.subr.bf16.mxu0 0
    %2254 = vmatpush1.bf16.msra.mxu0 0
    %2255 = vmatprep.subr.bf16.mxu0 0
    %2256 = vmatpush1.bf16.msra.mxu0 0
    %2257 = vmatprep.mubr.bf16.mxu0 0
    %2258 = vmatmul.mubr.bf16.gmra.mrb[0].mxu0 %v2209
    %v2259 = vpop.f32.mrb[0].mxu0
    %v2260 = vadd.f32 0.0, %v2259
    %v2261 = vpop.f32.mrb[0].mxu0
    %v2262 = vpop.f32.mrb[0].mxu0
    %v2263 = vadd.f32 0.0, %v2262
    %v2264 = vpop.f32.mrb[0].mxu0
    %2265 = vmatprep.mubr.bf16.mxu0 0
    %2266 = vmatmul.mubr.bf16.gmra.mrb[0].mxu0 %v2210
    %v2267 = vpop.f32.mrb[0].mxu0
    %v2268 = vadd.f32 0.0, %v2267
    %v2269 = vpop.f32.mrb[0].mxu0
    %v2270 = vpop.f32.mrb[0].mxu0
    %v2271 = vadd.f32 0.0, %v2270
    %v2272 = vpop.f32.mrb[0].mxu0
    %2273 = vmatprep.mubr.bf16.mxu0 0
    %2274 = vmatmul.mubr.bf16.gmra.mrb[0].mxu0 %v2211
    %v2275 = vpop.f32.mrb[0].mxu0
    %v2276 = vadd.f32 0.0, %v2275
    %v2277 = vpop.f32.mrb[0].mxu0
    %v2278 = vpop.f32.mrb[0].mxu0
    %v2279 = vadd.f32 0.0, %v2278
    %v2280 = vpop.f32.mrb[0].mxu0
    %2281 = vmatprep.mubr.bf16.mxu0 0
    %2282 = vmatmul.mubr.bf16.gmra.mrb[0].mxu0 %v2212
    %v2283 = vpop.f32.mrb[0].mxu0
    %v2284 = vadd.f32 0.0, %v2283
    %v2285 = vpop.f32.mrb[0].mxu0
    %v2286 = vpop.f32.mrb[0].mxu0
    %v2287 = vadd.f32 0.0, %v2286
    %v2288 = vpop.f32.mrb[0].mxu0
    %2289 = vmatprep.mubr.bf16.mxu0 0
    %2290 = vmatmul.mubr.bf16.gmra.mrb[0].mxu0 %v2213
    %v2291 = vpop.f32.mrb[0].mxu0
    %v2292 = vadd.f32 0.0, %v2291
    %v2293 = vpop.f32.mrb[0].mxu0
    %v2294 = vpop.f32.mrb[0].mxu0
    %v2295 = vadd.f32 0.0, %v2294
    %v2296 = vpop.f32.mrb[0].mxu0
    %2297 = vmatprep.mubr.bf16.mxu0 0
    %2298 = vmatmul.mubr.bf16.gmra.mrb[0].mxu0 %v2214
    %v2299 = vpop.f32.mrb[0].mxu0
    %v2300 = vadd.f32 0.0, %v2299
    %v2301 = vpop.f32.mrb[0].mxu0
    %v2302 = vpop.f32.mrb[0].mxu0
    %v2303 = vadd.f32 0.0, %v2302
    %v2304 = vpop.f32.mrb[0].mxu0
    %2305 = vmatprep.mubr.bf16.mxu0 0
    %2306 = vmatmul.mubr.bf16.gmra.mrb[0].mxu0 %v2215
    %v2307 = vpop.f32.mrb[0].mxu0
    %v2308 = vadd.f32 0.0, %v2307
    %v2309 = vpop.f32.mrb[0].mxu0
    %v2310 = vpop.f32.mrb[0].mxu0
    %v2311 = vadd.f32 0.0, %v2310
    %v2312 = vpop.f32.mrb[0].mxu0
    %2313 = vmatprep.mubr.bf16.mxu0 0
    %2314 = vmatmul.mubr.bf16.gmra.mrb[0].mxu0 %v2216
    %v2315 = vpop.f32.mrb[0].mxu0
    %v2316 = vadd.f32 0.0, %v2315
    %v2317 = vpop.f32.mrb[0].mxu0
    %v2318 = vpop.f32.mrb[0].mxu0
    %v2319 = vadd.f32 0.0, %v2318
    %v2320 = vpop.f32.mrb[0].mxu0
    %2321 = vdwg.mxu0
    %2338 = vrot.lane.b32.xlu0 %v1392, 16
    %v2339 = vpop.permute.xlu0 %2338
    %2340 = vrot.lane.b32.xlu0 %v1395, 16
    %v2341 = vpop.permute.xlu0 %2340
    %2342 = vrot.lane.b32.xlu0 %v1400, 16
    %v2343 = vpop.permute.xlu0 %2342
    %2344 = vrot.lane.b32.xlu0 %v1403, 16
    %v2345 = vpop.permute.xlu0 %2344
    %2346 = vrot.lane.b32.xlu0 %v1408, 16
    %v2347 = vpop.permute.xlu0 %2346
    %2348 = vrot.lane.b32.xlu0 %v1411, 16
    %v2349 = vpop.permute.xlu0 %2348
    %2350 = vrot.lane.b32.xlu0 %v1416, 16
    %v2351 = vpop.permute.xlu0 %2350
    %2352 = vrot.lane.b32.xlu0 %v1419, 16
    %v2353 = vpop.permute.xlu0 %2352
    %2354 = vrot.lane.b32.xlu0 %v1424, 16
    %v2355 = vpop.permute.xlu0 %2354
    %2356 = vrot.lane.b32.xlu0 %v1427, 16
    %v2357 = vpop.permute.xlu0 %2356
    %2358 = vrot.lane.b32.xlu0 %v1432, 16
    %v2359 = vpop.permute.xlu0 %2358
    %2360 = vrot.lane.b32.xlu0 %v1435, 16
    %v2361 = vpop.permute.xlu0 %2360
    %2362 = vrot.lane.b32.xlu0 %v1440, 16
    %v2363 = vpop.permute.xlu0 %2362
    %2364 = vrot.lane.b32.xlu0 %v1443, 16
    %v2365 = vpop.permute.xlu0 %2364
    %2366 = vrot.lane.b32.xlu0 %v1448, 16
    %v2367 = vpop.permute.xlu0 %2366
    %2368 = vrot.lane.b32.xlu0 %v1451, 16
    %v2369 = vpop.permute.xlu0 %2368
    %2402 = vrot.lane.b32.xlu0 %v1826, 32
    %v2403 = vpop.permute.xlu0 %2402
    %2404 = vrot.lane.b32.xlu0 %v1829, 32
    %v2405 = vpop.permute.xlu0 %2404
    %2406 = vrot.lane.b32.xlu0 %v1834, 32
    %v2407 = vpop.permute.xlu0 %2406
    %2408 = vrot.lane.b32.xlu0 %v1837, 32
    %v2409 = vpop.permute.xlu0 %2408
    %2410 = vrot.lane.b32.xlu0 %v1842, 32
    %v2411 = vpop.permute.xlu0 %2410
    %2412 = vrot.lane.b32.xlu0 %v1845, 32
    %v2413 = vpop.permute.xlu0 %2412
    %2414 = vrot.lane.b32.xlu0 %v1850, 32
    %v2415 = vpop.permute.xlu0 %2414
    %2416 = vrot.lane.b32.xlu0 %v1853, 32
    %v2417 = vpop.permute.xlu0 %2416
    %2418 = vrot.lane.b32.xlu0 %v1858, 32
    %v2419 = vpop.permute.xlu0 %2418
    %2420 = vrot.lane.b32.xlu0 %v1861, 32
    %v2421 = vpop.permute.xlu0 %2420
    %2422 = vrot.lane.b32.xlu0 %v1866, 32
    %v2423 = vpop.permute.xlu0 %2422
    %2424 = vrot.lane.b32.xlu0 %v1869, 32
    %v2425 = vpop.permute.xlu0 %2424
    %2426 = vrot.lane.b32.xlu0 %v1874, 32
    %v2427 = vpop.permute.xlu0 %2426
    %2428 = vrot.lane.b32.xlu0 %v1877, 32
    %v2429 = vpop.permute.xlu0 %2428
    %2430 = vrot.lane.b32.xlu0 %v1882, 32
    %v2431 = vpop.permute.xlu0 %2430
    %2432 = vrot.lane.b32.xlu0 %v1885, 32
    %v2433 = vpop.permute.xlu0 %2432
    %2466 = vrot.lane.b32.xlu0 %v2260, 48
    %v2467 = vpop.permute.xlu0 %2466
    %2468 = vrot.lane.b32.xlu0 %v2263, 48
    %v2469 = vpop.permute.xlu0 %2468
    %2470 = vrot.lane.b32.xlu0 %v2268, 48
    %v2471 = vpop.permute.xlu0 %2470
    %2472 = vrot.lane.b32.xlu0 %v2271, 48
    %v2473 = vpop.permute.xlu0 %2472
    %2474 = vrot.lane.b32.xlu0 %v2276, 48
    %v2475 = vpop.permute.xlu0 %2474
    %2476 = vrot.lane.b32.xlu0 %v2279, 48
    %v2477 = vpop.permute.xlu0 %2476
    %2478 = vrot.lane.b32.xlu0 %v2284, 48
    %v2479 = vpop.permute.xlu0 %2478
    %2480 = vrot.lane.b32.xlu0 %v2287, 48
    %v2481 = vpop.permute.xlu0 %2480
    %2482 = vrot.lane.b32.xlu0 %v2292, 48
    %v2483 = vpop.permute.xlu0 %2482
    %2484 = vrot.lane.b32.xlu0 %v2295, 48
    %v2485 = vpop.permute.xlu0 %2484
    %2486 = vrot.lane.b32.xlu0 %v2300, 48
    %v2487 = vpop.permute.xlu0 %2486
    %2488 = vrot.lane.b32.xlu0 %v2303, 48
    %v2489 = vpop.permute.xlu0 %2488
    %2490 = vrot.lane.b32.xlu0 %v2308, 48
    %v2491 = vpop.permute.xlu0 %2490
    %2492 = vrot.lane.b32.xlu0 %v2311, 48
    %v2493 = vpop.permute.xlu0 %2492
    %2494 = vrot.lane.b32.xlu0 %v2316, 48
    %v2495 = vpop.permute.xlu0 %2494
    %2496 = vrot.lane.b32.xlu0 %v2319, 48
    %v2497 = vpop.permute.xlu0 %2496
    %v2514 = vsel %vm617, %v958, %v2339
    %v2515 = vsel %vm617, %v961, %v2341
    %v2516 = vsel %vm617, %v966, %v2343
    %v2517 = vsel %vm617, %v969, %v2345
    %v2518 = vsel %vm617, %v974, %v2347
    %v2519 = vsel %vm617, %v977, %v2349
    %v2520 = vsel %vm617, %v982, %v2351
    %v2521 = vsel %vm617, %v985, %v2353
    %v2522 = vsel %vm617, %v990, %v2355
    %v2523 = vsel %vm617, %v993, %v2357
    %v2524 = vsel %vm617, %v998, %v2359
    %v2525 = vsel %vm617, %v1001, %v2361
    %v2526 = vsel %vm617, %v1006, %v2363
    %v2527 = vsel %vm617, %v1009, %v2365
    %v2528 = vsel %vm617, %v1014, %v2367
    %v2529 = vsel %vm617, %v1017, %v2369
    %vm2530 = vcmask 261120
    %v2531 = vsel %vm2530, %v2514, %v2403
    %v2532 = vsel %vm2530, %v2515, %v2405
    %v2533 = vsel %vm2530, %v2516, %v2407
    %v2534 = vsel %vm2530, %v2517, %v2409
    %v2535 = vsel %vm2530, %v2518, %v2411
    %v2536 = vsel %vm2530, %v2519, %v2413
    %v2537 = vsel %vm2530, %v2520, %v2415
    %v2538 = vsel %vm2530, %v2521, %v2417
    %v2539 = vsel %vm2530, %v2522, %v2419
    %v2540 = vsel %vm2530, %v2523, %v2421
    %v2541 = vsel %vm2530, %v2524, %v2423
    %v2542 = vsel %vm2530, %v2525, %v2425
    %v2543 = vsel %vm2530, %v2526, %v2427
    %v2544 = vsel %vm2530, %v2527, %v2429
    %v2545 = vsel %vm2530, %v2528, %v2431
    %v2546 = vsel %vm2530, %v2529, %v2433
    %vm2547 = vcmask 392192
    %v2548 = vsel %vm2547, %v2531, %v2467
    %v2549 = vsel %vm2547, %v2532, %v2469
    %v2550 = vsel %vm2547, %v2533, %v2471
    %v2551 = vsel %vm2547, %v2534, %v2473
    %v2552 = vsel %vm2547, %v2535, %v2475
    %v2553 = vsel %vm2547, %v2536, %v2477
    %v2554 = vsel %vm2547, %v2537, %v2479
    %v2555 = vsel %vm2547, %v2538, %v2481
    %v2556 = vsel %vm2547, %v2539, %v2483
    %v2557 = vsel %vm2547, %v2540, %v2485
    %v2558 = vsel %vm2547, %v2541, %v2487
    %v2559 = vsel %vm2547, %v2542, %v2489
    %v2560 = vsel %vm2547, %v2543, %v2491
    %v2561 = vsel %vm2547, %v2544, %v2493
    %v2562 = vsel %vm2547, %v2545, %v2495
    %v2563 = vsel %vm2547, %v2546, %v2497
    %v2564 = vpack.c.bf16 %v2549, %v2548
    %v2565 = vpack.c.bf16 %v2551, %v2550
    %v2566 = vpack.c.bf16 %v2553, %v2552
    %v2567 = vpack.c.bf16 %v2555, %v2554
    %v2568 = vpack.c.bf16 %v2557, %v2556
    %v2569 = vpack.c.bf16 %v2559, %v2558
    %v2570 = vpack.c.bf16 %v2561, %v2560
    %v2571 = vpack.c.bf16 %v2563, %v2562
    %v2572 = vld [vmem:[#allocation4] sm:$0xf]
    %v2573 = vld [vmem:[#allocation4 + $0x4] sm:$0xf]
    %v2574 = vld [vmem:[#allocation4 + $0x8] sm:$0xf]
    %v2575 = vld [vmem:[#allocation4 + $0xc] sm:$0xf]
    %v2576 = vld [vmem:[#allocation4 + $0x10] sm:$0xf]
    %v2577 = vld [vmem:[#allocation4 + $0x14] sm:$0xf]
    %v2578 = vld [vmem:[#allocation4 + $0x18] sm:$0xf]
    %v2579 = vld [vmem:[#allocation4 + $0x1c] sm:$0xf]
    %v2588 = vunpack.c.l.b16 %v2572
    %v2589 = vunpack.c.l.b16 %v2573
    %v2590 = vunpack.c.l.b16 %v2574
    %v2591 = vunpack.c.l.b16 %v2575
    %v2592 = vunpack.c.l.b16 %v2576
    %v2593 = vunpack.c.l.b16 %v2577
    %v2594 = vunpack.c.l.b16 %v2578
    %v2595 = vunpack.c.l.b16 %v2579
    %v2596 = vpack.c.b16 %v2589, %v2588
    %v2597 = vpack.c.b16 %v2591, %v2590
    %v2598 = vpack.c.b16 %v2593, %v2592
    %v2599 = vpack.c.b16 %v2595, %v2594
    %v2605 = vsel %vm104, %v2564, 0
    %v2608 = vsel %vm104, %v2565, 0
    %v2611 = vsel %vm104, %v2566, 0
    %v2614 = vsel %vm104, %v2567, 0
    %v2617 = vsel %vm104, %v2568, 0
    %v2620 = vsel %vm104, %v2569, 0
    %v2623 = vsel %vm104, %v2570, 0
    %v2626 = vsel %vm104, %v2571, 0
    %2628 = vmatprep.subr.bf16.mxu0 0
    %2629 = vmatpush1.bf16.msra.mxu0 %v2596
    %2630 = vmatprep.subr.bf16.mxu0 0
    %2631 = vmatpush1.bf16.msra.mxu0 %v2597
    %2632 = vmatprep.subr.bf16.mxu0 0
    %2633 = vmatpush1.bf16.msra.mxu0 %v2598
    %2634 = vmatprep.subr.bf16.mxu0 0
    %2635 = vmatpush1.bf16.msra.mxu0 %v2599
    %2636 = vmatprep.subr.bf16.mxu0 0
    %2637 = vmatpush1.bf16.msra.mxu0 0
    %2638 = vmatprep.subr.bf16.mxu0 0
    %2639 = vmatpush1.bf16.msra.mxu0 0
    %2640 = vmatprep.subr.bf16.mxu0 0
    %2641 = vmatpush1.bf16.msra.mxu0 0
    %2642 = vmatprep.subr.bf16.mxu0 0
    %2643 = vmatpush1.bf16.msra.mxu0 0
    %2644 = vmatprep.subr.bf16.mxu0 0
    %2645 = vmatpush1.bf16.msra.mxu0 0
    %2646 = vmatprep.subr.bf16.mxu0 0
    %2647 = vmatpush1.bf16.msra.mxu0 0
    %2648 = vmatprep.subr.bf16.mxu0 0
    %2649 = vmatpush1.bf16.msra.mxu0 0
    %2650 = vmatprep.subr.bf16.mxu0 0
    %2651 = vmatpush1.bf16.msra.mxu0 0
    %2652 = vmatprep.subr.bf16.mxu0 0
    %2653 = vmatpush1.bf16.msra.mxu0 0
    %2654 = vmatprep.subr.bf16.mxu0 0
    %2655 = vmatpush1.bf16.msra.mxu0 0
    %2656 = vmatprep.subr.bf16.mxu0 0
    %2657 = vmatpush1.bf16.msra.mxu0 0
    %2658 = vmatprep.subr.bf16.mxu0 0
    %2659 = vmatpush1.bf16.msra.mxu0 0
    %2660 = vmatprep.mubr.bf16.mxu0 0
    %2661 = vmatmul.mubr.bf16.gmra.mrb[0].mxu0 %v2605
    %v2662 = vpop.f32.mrb[0].mxu0
    %v2663 = vadd.f32 0.0, %v2662
    %v2664 = vpop.f32.mrb[0].mxu0
    %v2665 = vpop.f32.mrb[0].mxu0
    %v2666 = vadd.f32 0.0, %v2665
    %v2667 = vpop.f32.mrb[0].mxu0
    %2668 = vmatprep.mubr.bf16.mxu0 0
    %2669 = vmatmul.mubr.bf16.gmra.mrb[0].mxu0 %v2608
    %v2670 = vpop.f32.mrb[0].mxu0
    %v2671 = vadd.f32 0.0, %v2670
    %v2672 = vpop.f32.mrb[0].mxu0
    %v2673 = vpop.f32.mrb[0].mxu0
    %v2674 = vadd.f32 0.0, %v2673
    %v2675 = vpop.f32.mrb[0].mxu0
    %2676 = vmatprep.mubr.bf16.mxu0 0
    %2677 = vmatmul.mubr.bf16.gmra.mrb[0].mxu0 %v2611
    %v2678 = vpop.f32.mrb[0].mxu0
    %v2679 = vadd.f32 0.0, %v2678
    %v2680 = vpop.f32.mrb[0].mxu0
    %v2681 = vpop.f32.mrb[0].mxu0
    %v2682 = vadd.f32 0.0, %v2681
    %v2683 = vpop.f32.mrb[0].mxu0
    %2684 = vmatprep.mubr.bf16.mxu0 0
    %2685 = vmatmul.mubr.bf16.gmra.mrb[0].mxu0 %v2614
    %v2686 = vpop.f32.mrb[0].mxu0
    %v2687 = vadd.f32 0.0, %v2686
    %v2688 = vpop.f32.mrb[0].mxu0
    %v2689 = vpop.f32.mrb[0].mxu0
    %v2690 = vadd.f32 0.0, %v2689
    %v2691 = vpop.f32.mrb[0].mxu0
    %2692 = vmatprep.mubr.bf16.mxu0 0
    %2693 = vmatmul.mubr.bf16.gmra.mrb[0].mxu0 %v2617
    %v2694 = vpop.f32.mrb[0].mxu0
    %v2695 = vadd.f32 0.0, %v2694
    %v2696 = vpop.f32.mrb[0].mxu0
    %v2697 = vpop.f32.mrb[0].mxu0
    %v2698 = vadd.f32 0.0, %v2697
    %v2699 = vpop.f32.mrb[0].mxu0
    %2700 = vmatprep.mubr.bf16.mxu0 0
    %2701 = vmatmul.mubr.bf16.gmra.mrb[0].mxu0 %v2620
    %v2702 = vpop.f32.mrb[0].mxu0
    %v2703 = vadd.f32 0.0, %v2702
    %v2704 = vpop.f32.mrb[0].mxu0
    %v2705 = vpop.f32.mrb[0].mxu0
    %v2706 = vadd.f32 0.0, %v2705
    %v2707 = vpop.f32.mrb[0].mxu0
    %2708 = vmatprep.mubr.bf16.mxu0 0
    %2709 = vmatmul.mubr.bf16.gmra.mrb[0].mxu0 %v2623
    %v2710 = vpop.f32.mrb[0].mxu0
    %v2711 = vadd.f32 0.0, %v2710
    %v2712 = vpop.f32.mrb[0].mxu0
    %v2713 = vpop.f32.mrb[0].mxu0
    %v2714 = vadd.f32 0.0, %v2713
    %v2715 = vpop.f32.mrb[0].mxu0
    %2716 = vmatprep.mubr.bf16.mxu0 0
    %2717 = vmatmul.mubr.bf16.gmra.mrb[0].mxu0 %v2626
    %v2718 = vpop.f32.mrb[0].mxu0
    %v2719 = vadd.f32 0.0, %v2718
    %v2720 = vpop.f32.mrb[0].mxu0
    %v2721 = vpop.f32.mrb[0].mxu0
    %v2722 = vadd.f32 0.0, %v2721
    %v2723 = vpop.f32.mrb[0].mxu0
    %2724 = vdwg.mxu0
    %v2725 = vadd.f32 %v71, %v2663
    %v2726 = vadd.f32 %v72, %v2666
    %v2727 = vadd.f32 %v73, %v2671
    %v2728 = vadd.f32 %v74, %v2674
    %v2729 = vadd.f32 %v75, %v2679
    %v2730 = vadd.f32 %v76, %v2682
    %v2731 = vadd.f32 %v77, %v2687
    %v2732 = vadd.f32 %v78, %v2690
    %v2733 = vadd.f32 %v79, %v2695
    %v2734 = vadd.f32 %v80, %v2698
    %v2735 = vadd.f32 %v81, %v2703
    %v2736 = vadd.f32 %v82, %v2706
    %v2737 = vadd.f32 %v83, %v2711
    %v2738 = vadd.f32 %v84, %v2714
    %v2739 = vadd.f32 %v85, %v2719
    %v2740 = vadd.f32 %v86, %v2722
    %v2741 = vld [vmem:[%s7 + $0x1] sm:$0x1]
    %v2742 = vmul.f32 %v2725, %v2725
    %v2743 = vmul.f32 %v2726, %v2726
    %v2744 = vmul.f32 %v2727, %v2727
    %v2745 = vmul.f32 %v2728, %v2728
    %v2746 = vmul.f32 %v2729, %v2729
    %v2747 = vmul.f32 %v2730, %v2730
    %v2748 = vmul.f32 %v2731, %v2731
    %v2749 = vmul.f32 %v2732, %v2732
    %v2750 = vmul.f32 %v2733, %v2733
    %v2751 = vmul.f32 %v2734, %v2734
    %v2752 = vmul.f32 %v2735, %v2735
    %v2753 = vmul.f32 %v2736, %v2736
    %v2754 = vmul.f32 %v2737, %v2737
    %v2755 = vmul.f32 %v2738, %v2738
    %v2756 = vmul.f32 %v2739, %v2739
    %v2757 = vmul.f32 %v2740, %v2740
    %v2758 = vsel %vm104, %v2742, 0.0
    %2759 = vadd.xlane.f32.xlu0 %v2758
    %v2760 = vpop.xlane.xlu0 %2759
    %v2761 = vsel %vm104, %v2743, 0.0
    %2762 = vadd.xlane.f32.xlu0 %v2761
    %v2763 = vpop.xlane.xlu0 %2762
    %v2764 = vsel %vm104, %v2744, 0.0
    %2765 = vadd.xlane.f32.xlu0 %v2764
    %v2766 = vpop.xlane.xlu0 %2765
    %v2767 = vsel %vm104, %v2745, 0.0
    %2768 = vadd.xlane.f32.xlu0 %v2767
    %v2769 = vpop.xlane.xlu0 %2768
    %v2770 = vsel %vm104, %v2746, 0.0
    %2771 = vadd.xlane.f32.xlu0 %v2770
    %v2772 = vpop.xlane.xlu0 %2771
    %v2773 = vsel %vm104, %v2747, 0.0
    %2774 = vadd.xlane.f32.xlu0 %v2773
    %v2775 = vpop.xlane.xlu0 %2774
    %v2776 = vsel %vm104, %v2748, 0.0
    %2777 = vadd.xlane.f32.xlu0 %v2776
    %v2778 = vpop.xlane.xlu0 %2777
    %v2779 = vsel %vm104, %v2749, 0.0
    %2780 = vadd.xlane.f32.xlu0 %v2779
    %v2781 = vpop.xlane.xlu0 %2780
    %v2782 = vsel %vm104, %v2750, 0.0
    %2783 = vadd.xlane.f32.xlu0 %v2782
    %v2784 = vpop.xlane.xlu0 %2783
    %v2785 = vsel %vm104, %v2751, 0.0
    %2786 = vadd.xlane.f32.xlu0 %v2785
    %v2787 = vpop.xlane.xlu0 %2786
    %v2788 = vsel %vm104, %v2752, 0.0
    %2789 = vadd.xlane.f32.xlu0 %v2788
    %v2790 = vpop.xlane.xlu0 %2789
    %v2791 = vsel %vm104, %v2753, 0.0
    %2792 = vadd.xlane.f32.xlu0 %v2791
    %v2793 = vpop.xlane.xlu0 %2792
    %v2794 = vsel %vm104, %v2754, 0.0
    %2795 = vadd.xlane.f32.xlu0 %v2794
    %v2796 = vpop.xlane.xlu0 %2795
    %v2797 = vsel %vm104, %v2755, 0.0
    %2798 = vadd.xlane.f32.xlu0 %v2797
    %v2799 = vpop.xlane.xlu0 %2798
    %v2800 = vsel %vm104, %v2756, 0.0
    %2801 = vadd.xlane.f32.xlu0 %v2800
    %v2802 = vpop.xlane.xlu0 %2801
    %v2803 = vsel %vm104, %v2757, 0.0
    %2804 = vadd.xlane.f32.xlu0 %v2803
    %v2805 = vpop.xlane.xlu0 %2804
    %v2806 = vmul.f32 %v2760, %v153
    %v2807 = vmul.f32 %v2763, %v153
    %v2808 = vmul.f32 %v2766, %v153
    %v2809 = vmul.f32 %v2769, %v153
    %v2810 = vmul.f32 %v2772, %v153
    %v2811 = vmul.f32 %v2775, %v153
    %v2812 = vmul.f32 %v2778, %v153
    %v2813 = vmul.f32 %v2781, %v153
    %v2814 = vmul.f32 %v2784, %v153
    %v2815 = vmul.f32 %v2787, %v153
    %v2816 = vmul.f32 %v2790, %v153
    %v2817 = vmul.f32 %v2793, %v153
    %v2818 = vmul.f32 %v2796, %v153
    %v2819 = vmul.f32 %v2799, %v153
    %v2820 = vmul.f32 %v2802, %v153
    %v2821 = vmul.f32 %v2805, %v153
    %v2822 = vadd.f32 %v2806, 1e-05
    %v2823 = vadd.f32 %v2807, 1e-05
    %v2824 = vadd.f32 %v2808, 1e-05
    %v2825 = vadd.f32 %v2809, 1e-05
    %v2826 = vadd.f32 %v2810, 1e-05
    %v2827 = vadd.f32 %v2811, 1e-05
    %v2828 = vadd.f32 %v2812, 1e-05
    %v2829 = vadd.f32 %v2813, 1e-05
    %v2830 = vadd.f32 %v2814, 1e-05
    %v2831 = vadd.f32 %v2815, 1e-05
    %v2832 = vadd.f32 %v2816, 1e-05
    %v2833 = vadd.f32 %v2817, 1e-05
    %v2834 = vadd.f32 %v2818, 1e-05
    %v2835 = vadd.f32 %v2819, 1e-05
    %v2836 = vadd.f32 %v2820, 1e-05
    %v2837 = vadd.f32 %v2821, 1e-05
    %v2838 = vrsqrt.pop %v2822
    %v2839 = vrsqrt.pop %v2823
    %v2840 = vrsqrt.pop %v2824
    %v2841 = vrsqrt.pop %v2825
    %v2842 = vrsqrt.pop %v2826
    %v2843 = vrsqrt.pop %v2827
    %v2844 = vrsqrt.pop %v2828
    %v2845 = vrsqrt.pop %v2829
    %v2846 = vrsqrt.pop %v2830
    %v2847 = vrsqrt.pop %v2831
    %v2848 = vrsqrt.pop %v2832
    %v2849 = vrsqrt.pop %v2833
    %v2850 = vrsqrt.pop %v2834
    %v2851 = vrsqrt.pop %v2835
    %v2852 = vrsqrt.pop %v2836
    %v2853 = vrsqrt.pop %v2837
    %v2854 = vmul.f32 %v2725, %v2838
    %v2855 = vmul.f32 %v2726, %v2839
    %v2856 = vmul.f32 %v2727, %v2840
    %v2857 = vmul.f32 %v2728, %v2841
    %v2858 = vmul.f32 %v2729, %v2842
    %v2859 = vmul.f32 %v2730, %v2843
    %v2860 = vmul.f32 %v2731, %v2844
    %v2861 = vmul.f32 %v2732, %v2845
    %v2862 = vmul.f32 %v2733, %v2846
    %v2863 = vmul.f32 %v2734, %v2847
    %v2864 = vmul.f32 %v2735, %v2848
    %v2865 = vmul.f32 %v2736, %v2849
    %v2866 = vmul.f32 %v2737, %v2850
    %v2867 = vmul.f32 %v2738, %v2851
    %v2868 = vmul.f32 %v2739, %v2852
    %v2869 = vmul.f32 %v2740, %v2853
    %v2870 = vlaneseq
    %v2871 = vshrl.u32 %v2870, 7
    %v2872 = vsub.s32 0, %v2871
    %v2873 = vrot.slane %v2741, %v2872
    %v2874 = vmul.f32 %v2854, %v2873
    %v2875 = vmul.f32 %v2855, %v2873
    %v2876 = vmul.f32 %v2856, %v2873
    %v2877 = vmul.f32 %v2857, %v2873
    %v2878 = vmul.f32 %v2858, %v2873
    %v2879 = vmul.f32 %v2859, %v2873
    %v2880 = vmul.f32 %v2860, %v2873
    %v2881 = vmul.f32 %v2861, %v2873
    %v2882 = vmul.f32 %v2862, %v2873
    %v2883 = vmul.f32 %v2863, %v2873
    %v2884 = vmul.f32 %v2864, %v2873
    %v2885 = vmul.f32 %v2865, %v2873
    %v2886 = vmul.f32 %v2866, %v2873
    %v2887 = vmul.f32 %v2867, %v2873
    %v2888 = vmul.f32 %v2868, %v2873
    %v2889 = vmul.f32 %v2869, %v2873
    %v2890 = vpack.c.bf16 %v2875, %v2874
    %v2891 = vpack.c.bf16 %v2877, %v2876
    %v2892 = vpack.c.bf16 %v2879, %v2878
    %v2893 = vpack.c.bf16 %v2881, %v2880
    %v2894 = vpack.c.bf16 %v2883, %v2882
    %v2895 = vpack.c.bf16 %v2885, %v2884
    %v2896 = vpack.c.bf16 %v2887, %v2886
    %v2897 = vpack.c.bf16 %v2889, %v2888
    %v2898 = vld [vmem:[#allocation6] sm:$0xff]
    %v2899 = vld [vmem:[#allocation6 + $0x8] sm:$0xff]
    %v2900 = vld [vmem:[#allocation6 + $0x10] sm:$0xff]
    %v2901 = vld [vmem:[#allocation6 + $0x18] sm:$0xff]
    %v2902 = vld [vmem:[#allocation6 + $0x20] sm:$0xff]
    %v2903 = vld [vmem:[#allocation6 + $0x28] sm:$0xff]
    %v2904 = vld [vmem:[#allocation6 + $0x30] sm:$0xff]
    %v2905 = vld [vmem:[#allocation6 + $0x38] sm:$0xff]
    %v2906 = vld [vmem:[#allocation6 + $0x40] sm:$0xff]
    %v2907 = vld [vmem:[#allocation6 + $0x48] sm:$0xff]
    %v2908 = vld [vmem:[#allocation6 + $0x50] sm:$0xff]
    %v2909 = vld [vmem:[#allocation6 + $0x58] sm:$0xff]
    %v2910 = vld [vmem:[#allocation6 + $0x60] sm:$0xff]
    %v2911 = vld [vmem:[#allocation6 + $0x68] sm:$0xff]
    %v2912 = vld [vmem:[#allocation6 + $0x70] sm:$0xff]
    %v2913 = vld [vmem:[#allocation6 + $0x78] sm:$0xff]
    %v2930 = vunpack.c.l.b16 %v2898
    %v2931 = vunpack.c.h.b16 %v2898
    %v2932 = vunpack.c.l.b16 %v2899
    %v2933 = vunpack.c.h.b16 %v2899
    %v2934 = vunpack.c.l.b16 %v2900
    %v2935 = vunpack.c.h.b16 %v2900
    %v2936 = vunpack.c.l.b16 %v2901
    %v2937 = vunpack.c.h.b16 %v2901
    %v2938 = vunpack.c.l.b16 %v2902
    %v2939 = vunpack.c.h.b16 %v2902
    %v2940 = vunpack.c.l.b16 %v2903
    %v2941 = vunpack.c.h.b16 %v2903
    %v2942 = vunpack.c.l.b16 %v2904
    %v2943 = vunpack.c.h.b16 %v2904
    %v2944 = vunpack.c.l.b16 %v2905
    %v2945 = vunpack.c.h.b16 %v2905
    %v2946 = vunpack.c.l.b16 %v2906
    %v2947 = vunpack.c.h.b16 %v2906
    %v2948 = vunpack.c.l.b16 %v2907
    %v2949 = vunpack.c.h.b16 %v2907
    %v2950 = vunpack.c.l.b16 %v2908
    %v2951 = vunpack.c.h.b16 %v2908
    %v2952 = vunpack.c.l.b16 %v2909
    %v2953 = vunpack.c.h.b16 %v2909
    %v2954 = vunpack.c.l.b16 %v2910
    %v2955 = vunpack.c.h.b16 %v2910
    %v2956 = vunpack.c.l.b16 %v2911
    %v2957 = vunpack.c.h.b16 %v2911
    %v2958 = vunpack.c.l.b16 %v2912
    %v2959 = vunpack.c.h.b16 %v2912
    %v2960 = vunpack.c.l.b16 %v2913
    %v2961 = vunpack.c.h.b16 %v2913
    %v2962 = vpack.c.b16 %v2934, %v2930
    %v2963 = vpack.c.b16 %v2935, %v2931
    %v2964 = vpack.c.b16 %v2936, %v2932
    %v2965 = vpack.c.b16 %v2937, %v2933
    %v2966 = vpack.c.b16 %v2942, %v2938
    %v2967 = vpack.c.b16 %v2943, %v2939
    %v2968 = vpack.c.b16 %v2944, %v2940
    %v2969 = vpack.c.b16 %v2945, %v2941
    %v2970 = vpack.c.b16 %v2950, %v2946
    %v2971 = vpack.c.b16 %v2951, %v2947
    %v2972 = vpack.c.b16 %v2952, %v2948
    %v2973 = vpack.c.b16 %v2953, %v2949
    %v2974 = vpack.c.b16 %v2958, %v2954
    %v2975 = vpack.c.b16 %v2959, %v2955
    %v2976 = vpack.c.b16 %v2960, %v2956
    %v2977 = vpack.c.b16 %v2961, %v2957
    %v2995 = vsel %vm104, %v2890, 0
    %v2998 = vsel %vm104, %v2891, 0
    %v3001 = vsel %vm104, %v2892, 0
    %v3004 = vsel %vm104, %v2893, 0
    %v3007 = vsel %vm104, %v2894, 0
    %v3010 = vsel %vm104, %v2895, 0
    %v3013 = vsel %vm104, %v2896, 0
    %v3016 = vsel %vm104, %v2897, 0
    %3018 = vmatprep.subr.bf16.mxu0 %v2963
    %3019 = vmatpush1.bf16.msra.mxu0 %v2962
    %3020 = vmatprep.subr.bf16.mxu0 %v2967
    %3021 = vmatpush1.bf16.msra.mxu0 %v2966
    %3022 = vmatprep.subr.bf16.mxu0 %v2971
    %3023 = vmatpush1.bf16.msra.mxu0 %v2970
    %3024 = vmatprep.subr.bf16.mxu0 %v2975
    %3025 = vmatpush1.bf16.msra.mxu0 %v2974
    %3026 = vmatprep.subr.bf16.mxu0 0
    %3027 = vmatpush1.bf16.msra.mxu0 0
    %3028 = vmatprep.subr.bf16.mxu0 0
    %3029 = vmatpush1.bf16.msra.mxu0 0
    %3030 = vmatprep.subr.bf16.mxu0 0
    %3031 = vmatpush1.bf16.msra.mxu0 0
    %3032 = vmatprep.subr.bf16.mxu0 0
    %3033 = vmatpush1.bf16.msra.mxu0 0
    %3034 = vmatprep.subr.bf16.mxu0 0
    %3035 = vmatpush1.bf16.msra.mxu0 0
    %3036 = vmatprep.subr.bf16.mxu0 0
    %3037 = vmatpush1.bf16.msra.mxu0 0
    %3038 = vmatprep.subr.bf16.mxu0 0
    %3039 = vmatpush1.bf16.msra.mxu0 0
    %3040 = vmatprep.subr.bf16.mxu0 0
    %3041 = vmatpush1.bf16.msra.mxu0 0
    %3042 = vmatprep.subr.bf16.mxu0 0
    %3043 = vmatpush1.bf16.msra.mxu0 0
    %3044 = vmatprep.subr.bf16.mxu0 0
    %3045 = vmatpush1.bf16.msra.mxu0 0
    %3046 = vmatprep.subr.bf16.mxu0 0
    %3047 = vmatpush1.bf16.msra.mxu0 0
    %3048 = vmatprep.subr.bf16.mxu0 0
    %3049 = vmatpush1.bf16.msra.mxu0 0
    %3050 = vmatprep.mubr.bf16.mxu0 0
    %3051 = vmatmul.mubr.bf16.gmra.mrb[0].mxu0 %v2995
    %v3052 = vpop.f32.mrb[0].mxu0
    %v3053 = vadd.f32 0.0, %v3052
    %v3054 = vpop.f32.mrb[0].mxu0
    %v3055 = vadd.f32 0.0, %v3054
    %v3056 = vpop.f32.mrb[0].mxu0
    %v3057 = vadd.f32 0.0, %v3056
    %v3058 = vpop.f32.mrb[0].mxu0
    %v3059 = vadd.f32 0.0, %v3058
    %3060 = vmatprep.mubr.bf16.mxu0 0
    %3061 = vmatmul.mubr.bf16.gmra.mrb[0].mxu0 %v2998
    %v3062 = vpop.f32.mrb[0].mxu0
    %v3063 = vadd.f32 0.0, %v3062
    %v3064 = vpop.f32.mrb[0].mxu0
    %v3065 = vadd.f32 0.0, %v3064
    %v3066 = vpop.f32.mrb[0].mxu0
    %v3067 = vadd.f32 0.0, %v3066
    %v3068 = vpop.f32.mrb[0].mxu0
    %v3069 = vadd.f32 0.0, %v3068
    %3070 = vmatprep.mubr.bf16.mxu0 0
    %3071 = vmatmul.mubr.bf16.gmra.mrb[0].mxu0 %v3001
    %v3072 = vpop.f32.mrb[0].mxu0
    %v3073 = vadd.f32 0.0, %v3072
    %v3074 = vpop.f32.mrb[0].mxu0
    %v3075 = vadd.f32 0.0, %v3074
    %v3076 = vpop.f32.mrb[0].mxu0
    %v3077 = vadd.f32 0.0, %v3076
    %v3078 = vpop.f32.mrb[0].mxu0
    %v3079 = vadd.f32 0.0, %v3078
    %3080 = vmatprep.mubr.bf16.mxu0 0
    %3081 = vmatmul.mubr.bf16.gmra.mrb[0].mxu0 %v3004
    %v3082 = vpop.f32.mrb[0].mxu0
    %v3083 = vadd.f32 0.0, %v3082
    %v3084 = vpop.f32.mrb[0].mxu0
    %v3085 = vadd.f32 0.0, %v3084
    %v3086 = vpop.f32.mrb[0].mxu0
    %v3087 = vadd.f32 0.0, %v3086
    %v3088 = vpop.f32.mrb[0].mxu0
    %v3089 = vadd.f32 0.0, %v3088
    %3090 = vmatprep.mubr.bf16.mxu0 0
    %3091 = vmatmul.mubr.bf16.gmra.mrb[0].mxu0 %v3007
    %v3092 = vpop.f32.mrb[0].mxu0
    %v3093 = vadd.f32 0.0, %v3092
    %v3094 = vpop.f32.mrb[0].mxu0
    %v3095 = vadd.f32 0.0, %v3094
    %v3096 = vpop.f32.mrb[0].mxu0
    %v3097 = vadd.f32 0.0, %v3096
    %v3098 = vpop.f32.mrb[0].mxu0
    %v3099 = vadd.f32 0.0, %v3098
    %3100 = vmatprep.mubr.bf16.mxu0 0
    %3101 = vmatmul.mubr.bf16.gmra.mrb[0].mxu0 %v3010
    %v3102 = vpop.f32.mrb[0].mxu0
    %v3103 = vadd.f32 0.0, %v3102
    %v3104 = vpop.f32.mrb[0].mxu0
    %v3105 = vadd.f32 0.0, %v3104
    %v3106 = vpop.f32.mrb[0].mxu0
    %v3107 = vadd.f32 0.0, %v3106
    %v3108 = vpop.f32.mrb[0].mxu0
    %v3109 = vadd.f32 0.0, %v3108
    %3110 = vmatprep.mubr.bf16.mxu0 0
    %3111 = vmatmul.mubr.bf16.gmra.mrb[0].mxu0 %v3013
    %v3112 = vpop.f32.mrb[0].mxu0
    %v3113 = vadd.f32 0.0, %v3112
    %v3114 = vpop.f32.mrb[0].mxu0
    %v3115 = vadd.f32 0.0, %v3114
    %v3116 = vpop.f32.mrb[0].mxu0
    %v3117 = vadd.f32 0.0, %v3116
    %v3118 = vpop.f32.mrb[0].mxu0
    %v3119 = vadd.f32 0.0, %v3118
    %3120 = vmatprep.mubr.bf16.mxu0 0
    %3121 = vmatmul.mubr.bf16.gmra.mrb[0].mxu0 %v3016
    %v3122 = vpop.f32.mrb[0].mxu0
    %v3123 = vadd.f32 0.0, %v3122
    %v3124 = vpop.f32.mrb[0].mxu0
    %v3125 = vadd.f32 0.0, %v3124
    %v3126 = vpop.f32.mrb[0].mxu0
    %v3127 = vadd.f32 0.0, %v3126
    %v3128 = vpop.f32.mrb[0].mxu0
    %v3129 = vadd.f32 0.0, %v3128
    %3130 = vdwg.mxu0
    %3131 = vmatprep.subr.bf16.mxu0 %v2965
    %3132 = vmatpush1.bf16.msra.mxu0 %v2964
    %3133 = vmatprep.subr.bf16.mxu0 %v2969
    %3134 = vmatpush1.bf16.msra.mxu0 %v2968
    %3135 = vmatprep.subr.bf16.mxu0 %v2973
    %3136 = vmatpush1.bf16.msra.mxu0 %v2972
    %3137 = vmatprep.subr.bf16.mxu0 %v2977
    %3138 = vmatpush1.bf16.msra.mxu0 %v2976
    %3139 = vmatprep.subr.bf16.mxu0 0
    %3140 = vmatpush1.bf16.msra.mxu0 0
    %3141 = vmatprep.subr.bf16.mxu0 0
    %3142 = vmatpush1.bf16.msra.mxu0 0
    %3143 = vmatprep.subr.bf16.mxu0 0
    %3144 = vmatpush1.bf16.msra.mxu0 0
    %3145 = vmatprep.subr.bf16.mxu0 0
    %3146 = vmatpush1.bf16.msra.mxu0 0
    %3147 = vmatprep.subr.bf16.mxu0 0
    %3148 = vmatpush1.bf16.msra.mxu0 0
    %3149 = vmatprep.subr.bf16.mxu0 0
    %3150 = vmatpush1.bf16.msra.mxu0 0
    %3151 = vmatprep.subr.bf16.mxu0 0
    %3152 = vmatpush1.bf16.msra.mxu0 0
    %3153 = vmatprep.subr.bf16.mxu0 0
    %3154 = vmatpush1.bf16.msra.mxu0 0
    %3155 = vmatprep.subr.bf16.mxu0 0
    %3156 = vmatpush1.bf16.msra.mxu0 0
    %3157 = vmatprep.subr.bf16.mxu0 0
    %3158 = vmatpush1.bf16.msra.mxu0 0
    %3159 = vmatprep.subr.bf16.mxu0 0
    %3160 = vmatpush1.bf16.msra.mxu0 0
    %3161 = vmatprep.subr.bf16.mxu0 0
    %3162 = vmatpush1.bf16.msra.mxu0 0
    %3163 = vmatprep.mubr.bf16.mxu0 0
    %3164 = vmatmul.mubr.bf16.gmra.mrb[0].mxu0 %v2995
    %v3165 = vpop.f32.mrb[0].mxu0
    %v3166 = vadd.f32 0.0, %v3165
    %v3167 = vpop.f32.mrb[0].mxu0
    %v3168 = vadd.f32 0.0, %v3167
    %v3169 = vpop.f32.mrb[0].mxu0
    %v3170 = vadd.f32 0.0, %v3169
    %v3171 = vpop.f32.mrb[0].mxu0
    %v3172 = vadd.f32 0.0, %v3171
    %3173 = vmatprep.mubr.bf16.mxu0 0
    %3174 = vmatmul.mubr.bf16.gmra.mrb[0].mxu0 %v2998
    %v3175 = vpop.f32.mrb[0].mxu0
    %v3176 = vadd.f32 0.0, %v3175
    %v3177 = vpop.f32.mrb[0].mxu0
    %v3178 = vadd.f32 0.0, %v3177
    %v3179 = vpop.f32.mrb[0].mxu0
    %v3180 = vadd.f32 0.0, %v3179
    %v3181 = vpop.f32.mrb[0].mxu0
    %v3182 = vadd.f32 0.0, %v3181
    %3183 = vmatprep.mubr.bf16.mxu0 0
    %3184 = vmatmul.mubr.bf16.gmra.mrb[0].mxu0 %v3001
    %v3185 = vpop.f32.mrb[0].mxu0
    %v3186 = vadd.f32 0.0, %v3185
    %v3187 = vpop.f32.mrb[0].mxu0
    %v3188 = vadd.f32 0.0, %v3187
    %v3189 = vpop.f32.mrb[0].mxu0
    %v3190 = vadd.f32 0.0, %v3189
    %v3191 = vpop.f32.mrb[0].mxu0
    %v3192 = vadd.f32 0.0, %v3191
    %3193 = vmatprep.mubr.bf16.mxu0 0
    %3194 = vmatmul.mubr.bf16.gmra.mrb[0].mxu0 %v3004
    %v3195 = vpop.f32.mrb[0].mxu0
    %v3196 = vadd.f32 0.0, %v3195
    %v3197 = vpop.f32.mrb[0].mxu0
    %v3198 = vadd.f32 0.0, %v3197
    %v3199 = vpop.f32.mrb[0].mxu0
    %v3200 = vadd.f32 0.0, %v3199
    %v3201 = vpop.f32.mrb[0].mxu0
    %v3202 = vadd.f32 0.0, %v3201
    %3203 = vmatprep.mubr.bf16.mxu0 0
    %3204 = vmatmul.mubr.bf16.gmra.mrb[0].mxu0 %v3007
    %v3205 = vpop.f32.mrb[0].mxu0
    %v3206 = vadd.f32 0.0, %v3205
    %v3207 = vpop.f32.mrb[0].mxu0
    %v3208 = vadd.f32 0.0, %v3207
    %v3209 = vpop.f32.mrb[0].mxu0
    %v3210 = vadd.f32 0.0, %v3209
    %v3211 = vpop.f32.mrb[0].mxu0
    %v3212 = vadd.f32 0.0, %v3211
    %3213 = vmatprep.mubr.bf16.mxu0 0
    %3214 = vmatmul.mubr.bf16.gmra.mrb[0].mxu0 %v3010
    %v3215 = vpop.f32.mrb[0].mxu0
    %v3216 = vadd.f32 0.0, %v3215
    %v3217 = vpop.f32.mrb[0].mxu0
    %v3218 = vadd.f32 0.0, %v3217
    %v3219 = vpop.f32.mrb[0].mxu0
    %v3220 = vadd.f32 0.0, %v3219
    %v3221 = vpop.f32.mrb[0].mxu0
    %v3222 = vadd.f32 0.0, %v3221
    %3223 = vmatprep.mubr.bf16.mxu0 0
    %3224 = vmatmul.mubr.bf16.gmra.mrb[0].mxu0 %v3013
    %v3225 = vpop.f32.mrb[0].mxu0
    %v3226 = vadd.f32 0.0, %v3225
    %v3227 = vpop.f32.mrb[0].mxu0
    %v3228 = vadd.f32 0.0, %v3227
    %v3229 = vpop.f32.mrb[0].mxu0
    %v3230 = vadd.f32 0.0, %v3229
    %v3231 = vpop.f32.mrb[0].mxu0
    %v3232 = vadd.f32 0.0, %v3231
    %3233 = vmatprep.mubr.bf16.mxu0 0
    %3234 = vmatmul.mubr.bf16.gmra.mrb[0].mxu0 %v3016
    %v3235 = vpop.f32.mrb[0].mxu0
    %v3236 = vadd.f32 0.0, %v3235
    %v3237 = vpop.f32.mrb[0].mxu0
    %v3238 = vadd.f32 0.0, %v3237
    %v3239 = vpop.f32.mrb[0].mxu0
    %v3240 = vadd.f32 0.0, %v3239
    %v3241 = vpop.f32.mrb[0].mxu0
    %v3242 = vadd.f32 0.0, %v3241
    %3243 = vdwg.mxu0
    %v3244 = vxor.u32 %v3053, 2147483648
    %v3245 = vxor.u32 %v3055, 2147483648
    %v3246 = vxor.u32 %v3057, 2147483648
    %v3247 = vxor.u32 %v3059, 2147483648
    %v3248 = vxor.u32 %v3063, 2147483648
    %v3249 = vxor.u32 %v3065, 2147483648
    %v3250 = vxor.u32 %v3067, 2147483648
    %v3251 = vxor.u32 %v3069, 2147483648
    %v3252 = vxor.u32 %v3073, 2147483648
    %v3253 = vxor.u32 %v3075, 2147483648
    %v3254 = vxor.u32 %v3077, 2147483648
    %v3255 = vxor.u32 %v3079, 2147483648
    %v3256 = vxor.u32 %v3083, 2147483648
    %v3257 = vxor.u32 %v3085, 2147483648
    %v3258 = vxor.u32 %v3087, 2147483648
    %v3259 = vxor.u32 %v3089, 2147483648
    %v3260 = vxor.u32 %v3093, 2147483648
    %v3261 = vxor.u32 %v3095, 2147483648
    %v3262 = vxor.u32 %v3097, 2147483648
    %v3263 = vxor.u32 %v3099, 2147483648
    %v3264 = vxor.u32 %v3103, 2147483648
    %v3265 = vxor.u32 %v3105, 2147483648
    %v3266 = vxor.u32 %v3107, 2147483648
    %v3267 = vxor.u32 %v3109, 2147483648
    %v3268 = vxor.u32 %v3113, 2147483648
    %v3269 = vxor.u32 %v3115, 2147483648
    %v3270 = vxor.u32 %v3117, 2147483648
    %v3271 = vxor.u32 %v3119, 2147483648
    %v3272 = vxor.u32 %v3123, 2147483648
    %v3273 = vxor.u32 %v3125, 2147483648
    %v3274 = vxor.u32 %v3127, 2147483648
    %v3275 = vxor.u32 %v3129, 2147483648
    %v3276 = vmul.f32 %v3244, 1.442695
    %v3277 = vpow.pop %v3276
    %v3278 = vmul.f32 %v3245, 1.442695
    %v3279 = vpow.pop %v3278
    %v3280 = vmul.f32 %v3246, 1.442695
    %v3281 = vpow.pop %v3280
    %v3282 = vmul.f32 %v3247, 1.442695
    %v3283 = vpow.pop %v3282
    %v3284 = vmul.f32 %v3248, 1.442695
    %v3285 = vpow.pop %v3284
    %v3286 = vmul.f32 %v3249, 1.442695
    %v3287 = vpow.pop %v3286
    %v3288 = vmul.f32 %v3250, 1.442695
    %v3289 = vpow.pop %v3288
    %v3290 = vmul.f32 %v3251, 1.442695
    %v3291 = vpow.pop %v3290
    %v3292 = vmul.f32 %v3252, 1.442695
    %v3293 = vpow.pop %v3292
    %v3294 = vmul.f32 %v3253, 1.442695
    %v3295 = vpow.pop %v3294
    %v3296 = vmul.f32 %v3254, 1.442695
    %v3297 = vpow.pop %v3296
    %v3298 = vmul.f32 %v3255, 1.442695
    %v3299 = vpow.pop %v3298
    %v3300 = vmul.f32 %v3256, 1.442695
    %v3301 = vpow.pop %v3300
    %v3302 = vmul.f32 %v3257, 1.442695
    %v3303 = vpow.pop %v3302
    %v3304 = vmul.f32 %v3258, 1.442695
    %v3305 = vpow.pop %v3304
    %v3306 = vmul.f32 %v3259, 1.442695
    %v3307 = vpow.pop %v3306
    %v3308 = vmul.f32 %v3260, 1.442695
    %v3309 = vpow.pop %v3308
    %v3310 = vmul.f32 %v3261, 1.442695
    %v3311 = vpow.pop %v3310
    %v3312 = vmul.f32 %v3262, 1.442695
    %v3313 = vpow.pop %v3312
    %v3314 = vmul.f32 %v3263, 1.442695
    %v3315 = vpow.pop %v3314
    %v3316 = vmul.f32 %v3264, 1.442695
    %v3317 = vpow.pop %v3316
    %v3318 = vmul.f32 %v3265, 1.442695
    %v3319 = vpow.pop %v3318
    %v3320 = vmul.f32 %v3266, 1.442695
    %v3321 = vpow.pop %v3320
    %v3322 = vmul.f32 %v3267, 1.442695
    %v3323 = vpow.pop %v3322
    %v3324 = vmul.f32 %v3268, 1.442695
    %v3325 = vpow.pop %v3324
    %v3326 = vmul.f32 %v3269, 1.442695
    %v3327 = vpow.pop %v3326
    %v3328 = vmul.f32 %v3270, 1.442695
    %v3329 = vpow.pop %v3328
    %v3330 = vmul.f32 %v3271, 1.442695
    %v3331 = vpow.pop %v3330
    %v3332 = vmul.f32 %v3272, 1.442695
    %v3333 = vpow.pop %v3332
    %v3334 = vmul.f32 %v3273, 1.442695
    %v3335 = vpow.pop %v3334
    %v3336 = vmul.f32 %v3274, 1.442695
    %v3337 = vpow.pop %v3336
    %v3338 = vmul.f32 %v3275, 1.442695
    %v3339 = vpow.pop %v3338
    %v3340 = vadd.f32 %v3277, 1.0
    %v3341 = vadd.f32 %v3279, 1.0
    %v3342 = vadd.f32 %v3281, 1.0
    %v3343 = vadd.f32 %v3283, 1.0
    %v3344 = vadd.f32 %v3285, 1.0
    %v3345 = vadd.f32 %v3287, 1.0
    %v3346 = vadd.f32 %v3289, 1.0
    %v3347 = vadd.f32 %v3291, 1.0
    %v3348 = vadd.f32 %v3293, 1.0
    %v3349 = vadd.f32 %v3295, 1.0
    %v3350 = vadd.f32 %v3297, 1.0
    %v3351 = vadd.f32 %v3299, 1.0
    %v3352 = vadd.f32 %v3301, 1.0
    %v3353 = vadd.f32 %v3303, 1.0
    %v3354 = vadd.f32 %v3305, 1.0
    %v3355 = vadd.f32 %v3307, 1.0
    %v3356 = vadd.f32 %v3309, 1.0
    %v3357 = vadd.f32 %v3311, 1.0
    %v3358 = vadd.f32 %v3313, 1.0
    %v3359 = vadd.f32 %v3315, 1.0
    %v3360 = vadd.f32 %v3317, 1.0
    %v3361 = vadd.f32 %v3319, 1.0
    %v3362 = vadd.f32 %v3321, 1.0
    %v3363 = vadd.f32 %v3323, 1.0
    %v3364 = vadd.f32 %v3325, 1.0
    %v3365 = vadd.f32 %v3327, 1.0
    %v3366 = vadd.f32 %v3329, 1.0
    %v3367 = vadd.f32 %v3331, 1.0
    %v3368 = vadd.f32 %v3333, 1.0
    %v3369 = vadd.f32 %v3335, 1.0
    %v3370 = vadd.f32 %v3337, 1.0
    %v3371 = vadd.f32 %v3339, 1.0
    %v3372 = vrcp.pop %v3340
    %v3373 = vmul.f32 1.0, %v3372
    %v3374 = vrcp.pop %v3341
    %v3375 = vmul.f32 1.0, %v3374
    %v3376 = vrcp.pop %v3342
    %v3377 = vmul.f32 1.0, %v3376
    %v3378 = vrcp.pop %v3343
    %v3379 = vmul.f32 1.0, %v3378
    %v3380 = vrcp.pop %v3344
    %v3381 = vmul.f32 1.0, %v3380
    %v3382 = vrcp.pop %v3345
    %v3383 = vmul.f32 1.0, %v3382
    %v3384 = vrcp.pop %v3346
    %v3385 = vmul.f32 1.0, %v3384
    %v3386 = vrcp.pop %v3347
    %v3387 = vmul.f32 1.0, %v3386
    %v3388 = vrcp.pop %v3348
    %v3389 = vmul.f32 1.0, %v3388
    %v3390 = vrcp.pop %v3349
    %v3391 = vmul.f32 1.0, %v3390
    %v3392 = vrcp.pop %v3350
    %v3393 = vmul.f32 1.0, %v3392
    %v3394 = vrcp.pop %v3351
    %v3395 = vmul.f32 1.0, %v3394
    %v3396 = vrcp.pop %v3352
    %v3397 = vmul.f32 1.0, %v3396
    %v3398 = vrcp.pop %v3353
    %v3399 = vmul.f32 1.0, %v3398
    %v3400 = vrcp.pop %v3354
    %v3401 = vmul.f32 1.0, %v3400
    %v3402 = vrcp.pop %v3355
    %v3403 = vmul.f32 1.0, %v3402
    %v3404 = vrcp.pop %v3356
    %v3405 = vmul.f32 1.0, %v3404
    %v3406 = vrcp.pop %v3357
    %v3407 = vmul.f32 1.0, %v3406
    %v3408 = vrcp.pop %v3358
    %v3409 = vmul.f32 1.0, %v3408
    %v3410 = vrcp.pop %v3359
    %v3411 = vmul.f32 1.0, %v3410
    %v3412 = vrcp.pop %v3360
    %v3413 = vmul.f32 1.0, %v3412
    %v3414 = vrcp.pop %v3361
    %v3415 = vmul.f32 1.0, %v3414
    %v3416 = vrcp.pop %v3362
    %v3417 = vmul.f32 1.0, %v3416
    %v3418 = vrcp.pop %v3363
    %v3419 = vmul.f32 1.0, %v3418
    %v3420 = vrcp.pop %v3364
    %v3421 = vmul.f32 1.0, %v3420
    %v3422 = vrcp.pop %v3365
    %v3423 = vmul.f32 1.0, %v3422
    %v3424 = vrcp.pop %v3366
    %v3425 = vmul.f32 1.0, %v3424
    %v3426 = vrcp.pop %v3367
    %v3427 = vmul.f32 1.0, %v3426
    %v3428 = vrcp.pop %v3368
    %v3429 = vmul.f32 1.0, %v3428
    %v3430 = vrcp.pop %v3369
    %v3431 = vmul.f32 1.0, %v3430
    %v3432 = vrcp.pop %v3370
    %v3433 = vmul.f32 1.0, %v3432
    %v3434 = vrcp.pop %v3371
    %v3435 = vmul.f32 1.0, %v3434
    %v3436 = vmul.f32 %v3053, %v3373
    %v3437 = vmul.f32 %v3055, %v3375
    %v3438 = vmul.f32 %v3057, %v3377
    %v3439 = vmul.f32 %v3059, %v3379
    %v3440 = vmul.f32 %v3063, %v3381
    %v3441 = vmul.f32 %v3065, %v3383
    %v3442 = vmul.f32 %v3067, %v3385
    %v3443 = vmul.f32 %v3069, %v3387
    %v3444 = vmul.f32 %v3073, %v3389
    %v3445 = vmul.f32 %v3075, %v3391
    %v3446 = vmul.f32 %v3077, %v3393
    %v3447 = vmul.f32 %v3079, %v3395
    %v3448 = vmul.f32 %v3083, %v3397
    %v3449 = vmul.f32 %v3085, %v3399
    %v3450 = vmul.f32 %v3087, %v3401
    %v3451 = vmul.f32 %v3089, %v3403
    %v3452 = vmul.f32 %v3093, %v3405
    %v3453 = vmul.f32 %v3095, %v3407
    %v3454 = vmul.f32 %v3097, %v3409
    %v3455 = vmul.f32 %v3099, %v3411
    %v3456 = vmul.f32 %v3103, %v3413
    %v3457 = vmul.f32 %v3105, %v3415
    %v3458 = vmul.f32 %v3107, %v3417
    %v3459 = vmul.f32 %v3109, %v3419
    %v3460 = vmul.f32 %v3113, %v3421
    %v3461 = vmul.f32 %v3115, %v3423
    %v3462 = vmul.f32 %v3117, %v3425
    %v3463 = vmul.f32 %v3119, %v3427
    %v3464 = vmul.f32 %v3123, %v3429
    %v3465 = vmul.f32 %v3125, %v3431
    %v3466 = vmul.f32 %v3127, %v3433
    %v3467 = vmul.f32 %v3129, %v3435
    %v3468 = vmul.f32 %v3436, %v3166
    %v3469 = vmul.f32 %v3437, %v3168
    %v3470 = vmul.f32 %v3438, %v3170
    %v3471 = vmul.f32 %v3439, %v3172
    %v3472 = vmul.f32 %v3440, %v3176
    %v3473 = vmul.f32 %v3441, %v3178
    %v3474 = vmul.f32 %v3442, %v3180
    %v3475 = vmul.f32 %v3443, %v3182
    %v3476 = vmul.f32 %v3444, %v3186
    %v3477 = vmul.f32 %v3445, %v3188
    %v3478 = vmul.f32 %v3446, %v3190
    %v3479 = vmul.f32 %v3447, %v3192
    %v3480 = vmul.f32 %v3448, %v3196
    %v3481 = vmul.f32 %v3449, %v3198
    %v3482 = vmul.f32 %v3450, %v3200
    %v3483 = vmul.f32 %v3451, %v3202
    %v3484 = vmul.f32 %v3452, %v3206
    %v3485 = vmul.f32 %v3453, %v3208
    %v3486 = vmul.f32 %v3454, %v3210
    %v3487 = vmul.f32 %v3455, %v3212
    %v3488 = vmul.f32 %v3456, %v3216
    %v3489 = vmul.f32 %v3457, %v3218
    %v3490 = vmul.f32 %v3458, %v3220
    %v3491 = vmul.f32 %v3459, %v3222
    %v3492 = vmul.f32 %v3460, %v3226
    %v3493 = vmul.f32 %v3461, %v3228
    %v3494 = vmul.f32 %v3462, %v3230
    %v3495 = vmul.f32 %v3463, %v3232
    %v3496 = vmul.f32 %v3464, %v3236
    %v3497 = vmul.f32 %v3465, %v3238
    %v3498 = vmul.f32 %v3466, %v3240
    %v3499 = vmul.f32 %v3467, %v3242
    %v3500 = vpack.c.bf16 %v3470, %v3468
    %v3501 = vpack.c.bf16 %v3471, %v3469
    %v3502 = vpack.c.bf16 %v3474, %v3472
    %v3503 = vpack.c.bf16 %v3475, %v3473
    %v3504 = vpack.c.bf16 %v3478, %v3476
    %v3505 = vpack.c.bf16 %v3479, %v3477
    %v3506 = vpack.c.bf16 %v3482, %v3480
    %v3507 = vpack.c.bf16 %v3483, %v3481
    %v3508 = vpack.c.bf16 %v3486, %v3484
    %v3509 = vpack.c.bf16 %v3487, %v3485
    %v3510 = vpack.c.bf16 %v3490, %v3488
    %v3511 = vpack.c.bf16 %v3491, %v3489
    %v3512 = vpack.c.bf16 %v3494, %v3492
    %v3513 = vpack.c.bf16 %v3495, %v3493
    %v3514 = vpack.c.bf16 %v3498, %v3496
    %v3515 = vpack.c.bf16 %v3499, %v3497
    %v3516 = vld [vmem:[%s6] sm:$0xf]
    %v3517 = vld [vmem:[%s6 + $0x4] sm:$0xf]
    %v3518 = vld [vmem:[%s6 + $0x8] sm:$0xf]
    %v3519 = vld [vmem:[%s6 + $0xc] sm:$0xf]
    %v3520 = vld [vmem:[%s6 + $0x10] sm:$0xf]
    %v3521 = vld [vmem:[%s6 + $0x14] sm:$0xf]
    %v3522 = vld [vmem:[%s6 + $0x18] sm:$0xf]
    %v3523 = vld [vmem:[%s6 + $0x1c] sm:$0xf]
    %v3524 = vld [vmem:[%s6 + $0x20] sm:$0xf]
    %v3525 = vld [vmem:[%s6 + $0x24] sm:$0xf]
    %v3526 = vld [vmem:[%s6 + $0x28] sm:$0xf]
    %v3527 = vld [vmem:[%s6 + $0x2c] sm:$0xf]
    %v3528 = vld [vmem:[%s6 + $0x30] sm:$0xf]
    %v3529 = vld [vmem:[%s6 + $0x34] sm:$0xf]
    %v3530 = vld [vmem:[%s6 + $0x38] sm:$0xf]
    %v3531 = vld [vmem:[%s6 + $0x3c] sm:$0xf]
    %v3532 = vld [vmem:[%s6 + $0x40] sm:$0xf]
    %v3533 = vld [vmem:[%s6 + $0x44] sm:$0xf]
    %v3534 = vld [vmem:[%s6 + $0x48] sm:$0xf]
    %v3535 = vld [vmem:[%s6 + $0x4c] sm:$0xf]
    %v3536 = vld [vmem:[%s6 + $0x50] sm:$0xf]
    %v3537 = vld [vmem:[%s6 + $0x54] sm:$0xf]
    %v3538 = vld [vmem:[%s6 + $0x58] sm:$0xf]
    %v3539 = vld [vmem:[%s6 + $0x5c] sm:$0xf]
    %v3540 = vld [vmem:[%s6 + $0x60] sm:$0xf]
    %v3541 = vld [vmem:[%s6 + $0x64] sm:$0xf]
    %v3542 = vld [vmem:[%s6 + $0x68] sm:$0xf]
    %v3543 = vld [vmem:[%s6 + $0x6c] sm:$0xf]
    %v3544 = vld [vmem:[%s6 + $0x70] sm:$0xf]
    %v3545 = vld [vmem:[%s6 + $0x74] sm:$0xf]
    %v3546 = vld [vmem:[%s6 + $0x78] sm:$0xf]
    %v3547 = vld [vmem:[%s6 + $0x7c] sm:$0xf]
    %v3580 = vunpack.c.l.b16 %v3516
    %v3581 = vunpack.c.l.b16 %v3517
    %v3582 = vunpack.c.l.b16 %v3518
    %v3583 = vunpack.c.l.b16 %v3519
    %v3584 = vunpack.c.l.b16 %v3520
    %v3585 = vunpack.c.l.b16 %v3521
    %v3586 = vunpack.c.l.b16 %v3522
    %v3587 = vunpack.c.l.b16 %v3523
    %v3588 = vunpack.c.l.b16 %v3524
    %v3589 = vunpack.c.l.b16 %v3525
    %v3590 = vunpack.c.l.b16 %v3526
    %v3591 = vunpack.c.l.b16 %v3527
    %v3592 = vunpack.c.l.b16 %v3528
    %v3593 = vunpack.c.l.b16 %v3529
    %v3594 = vunpack.c.l.b16 %v3530
    %v3595 = vunpack.c.l.b16 %v3531
    %v3596 = vunpack.c.l.b16 %v3532
    %v3597 = vunpack.c.l.b16 %v3533
    %v3598 = vunpack.c.l.b16 %v3534
    %v3599 = vunpack.c.l.b16 %v3535
    %v3600 = vunpack.c.l.b16 %v3536
    %v3601 = vunpack.c.l.b16 %v3537
    %v3602 = vunpack.c.l.b16 %v3538
    %v3603 = vunpack.c.l.b16 %v3539
    %v3604 = vunpack.c.l.b16 %v3540
    %v3605 = vunpack.c.l.b16 %v3541
    %v3606 = vunpack.c.l.b16 %v3542
    %v3607 = vunpack.c.l.b16 %v3543
    %v3608 = vunpack.c.l.b16 %v3544
    %v3609 = vunpack.c.l.b16 %v3545
    %v3610 = vunpack.c.l.b16 %v3546
    %v3611 = vunpack.c.l.b16 %v3547
    %v3612 = vpack.c.b16 %v3581, %v3580
    %v3613 = vpack.c.b16 %v3583, %v3582
    %v3614 = vpack.c.b16 %v3585, %v3584
    %v3615 = vpack.c.b16 %v3587, %v3586
    %v3616 = vpack.c.b16 %v3589, %v3588
    %v3617 = vpack.c.b16 %v3591, %v3590
    %v3618 = vpack.c.b16 %v3593, %v3592
    %v3619 = vpack.c.b16 %v3595, %v3594
    %v3620 = vpack.c.b16 %v3597, %v3596
    %v3621 = vpack.c.b16 %v3599, %v3598
    %v3622 = vpack.c.b16 %v3601, %v3600
    %v3623 = vpack.c.b16 %v3603, %v3602
    %v3624 = vpack.c.b16 %v3605, %v3604
    %v3625 = vpack.c.b16 %v3607, %v3606
    %v3626 = vpack.c.b16 %v3609, %v3608
    %v3627 = vpack.c.b16 %v3611, %v3610
    %3644 = vmatprep.subr.bf16.mxu0 0
    %3645 = vmatpush1.bf16.msra.mxu0 %v3612
    %3646 = vmatprep.subr.bf16.mxu0 0
    %3647 = vmatpush1.bf16.msra.mxu0 %v3613
    %3648 = vmatprep.subr.bf16.mxu0 0
    %3649 = vmatpush1.bf16.msra.mxu0 %v3614
    %3650 = vmatprep.subr.bf16.mxu0 0
    %3651 = vmatpush1.bf16.msra.mxu0 %v3615
    %3652 = vmatprep.subr.bf16.mxu0 0
    %3653 = vmatpush1.bf16.msra.mxu0 %v3616
    %3654 = vmatprep.subr.bf16.mxu0 0
    %3655 = vmatpush1.bf16.msra.mxu0 %v3617
    %3656 = vmatprep.subr.bf16.mxu0 0
    %3657 = vmatpush1.bf16.msra.mxu0 %v3618
    %3658 = vmatprep.subr.bf16.mxu0 0
    %3659 = vmatpush1.bf16.msra.mxu0 %v3619
    %3660 = vmatprep.subr.bf16.mxu0 0
    %3661 = vmatpush1.bf16.msra.mxu0 %v3620
    %3662 = vmatprep.subr.bf16.mxu0 0
    %3663 = vmatpush1.bf16.msra.mxu0 %v3621
    %3664 = vmatprep.subr.bf16.mxu0 0
    %3665 = vmatpush1.bf16.msra.mxu0 %v3622
    %3666 = vmatprep.subr.bf16.mxu0 0
    %3667 = vmatpush1.bf16.msra.mxu0 %v3623
    %3668 = vmatprep.subr.bf16.mxu0 0
    %3669 = vmatpush1.bf16.msra.mxu0 %v3624
    %3670 = vmatprep.subr.bf16.mxu0 0
    %3671 = vmatpush1.bf16.msra.mxu0 %v3625
    %3672 = vmatprep.subr.bf16.mxu0 0
    %3673 = vmatpush1.bf16.msra.mxu0 %v3626
    %3674 = vmatprep.subr.bf16.mxu0 0
    %3675 = vmatpush1.bf16.msra.mxu0 %v3627
    %3676 = vmatprep.mubr.bf16.mxu0 %v3501
    %3677 = vmatmul.mubr.bf16.gmra.mrb[0].mxu0 %v3500
    %v3678 = vpop.f32.mrb[0].mxu0
    %v3679 = vadd.f32 0.0, %v3678
    %v3680 = vpop.f32.mrb[0].mxu0
    %v3681 = vpop.f32.mrb[0].mxu0
    %v3682 = vadd.f32 0.0, %v3681
    %v3683 = vpop.f32.mrb[0].mxu0
    %3684 = vmatprep.mubr.bf16.mxu0 %v3503
    %3685 = vmatmul.mubr.bf16.gmra.mrb[0].mxu0 %v3502
    %v3686 = vpop.f32.mrb[0].mxu0
    %v3687 = vadd.f32 0.0, %v3686
    %v3688 = vpop.f32.mrb[0].mxu0
    %v3689 = vpop.f32.mrb[0].mxu0
    %v3690 = vadd.f32 0.0, %v3689
    %v3691 = vpop.f32.mrb[0].mxu0
    %3692 = vmatprep.mubr.bf16.mxu0 %v3505
    %3693 = vmatmul.mubr.bf16.gmra.mrb[0].mxu0 %v3504
    %v3694 = vpop.f32.mrb[0].mxu0
    %v3695 = vadd.f32 0.0, %v3694
    %v3696 = vpop.f32.mrb[0].mxu0
    %v3697 = vpop.f32.mrb[0].mxu0
    %v3698 = vadd.f32 0.0, %v3697
    %v3699 = vpop.f32.mrb[0].mxu0
    %3700 = vmatprep.mubr.bf16.mxu0 %v3507
    %3701 = vmatmul.mubr.bf16.gmra.mrb[0].mxu0 %v3506
    %v3702 = vpop.f32.mrb[0].mxu0
    %v3703 = vadd.f32 0.0, %v3702
    %v3704 = vpop.f32.mrb[0].mxu0
    %v3705 = vpop.f32.mrb[0].mxu0
    %v3706 = vadd.f32 0.0, %v3705
    %v3707 = vpop.f32.mrb[0].mxu0
    %3708 = vmatprep.mubr.bf16.mxu0 %v3509
    %3709 = vmatmul.mubr.bf16.gmra.mrb[0].mxu0 %v3508
    %v3710 = vpop.f32.mrb[0].mxu0
    %v3711 = vadd.f32 0.0, %v3710
    %v3712 = vpop.f32.mrb[0].mxu0
    %v3713 = vpop.f32.mrb[0].mxu0
    %v3714 = vadd.f32 0.0, %v3713
    %v3715 = vpop.f32.mrb[0].mxu0
    %3716 = vmatprep.mubr.bf16.mxu0 %v3511
    %3717 = vmatmul.mubr.bf16.gmra.mrb[0].mxu0 %v3510
    %v3718 = vpop.f32.mrb[0].mxu0
    %v3719 = vadd.f32 0.0, %v3718
    %v3720 = vpop.f32.mrb[0].mxu0
    %v3721 = vpop.f32.mrb[0].mxu0
    %v3722 = vadd.f32 0.0, %v3721
    %v3723 = vpop.f32.mrb[0].mxu0
    %3724 = vmatprep.mubr.bf16.mxu0 %v3513
    %3725 = vmatmul.mubr.bf16.gmra.mrb[0].mxu0 %v3512
    %v3726 = vpop.f32.mrb[0].mxu0
    %v3727 = vadd.f32 0.0, %v3726
    %v3728 = vpop.f32.mrb[0].mxu0
    %v3729 = vpop.f32.mrb[0].mxu0
    %v3730 = vadd.f32 0.0, %v3729
    %v3731 = vpop.f32.mrb[0].mxu0
    %3732 = vmatprep.mubr.bf16.mxu0 %v3515
    %3733 = vmatmul.mubr.bf16.gmra.mrb[0].mxu0 %v3514
    %v3734 = vpop.f32.mrb[0].mxu0
    %v3735 = vadd.f32 0.0, %v3734
    %v3736 = vpop.f32.mrb[0].mxu0
    %v3737 = vpop.f32.mrb[0].mxu0
    %v3738 = vadd.f32 0.0, %v3737
    %v3739 = vpop.f32.mrb[0].mxu0
    %3740 = vdwg.mxu0
    %v3741 = vadd.f32 %v2725, %v3679
    %v3742 = vadd.f32 %v2726, %v3682
    %v3743 = vadd.f32 %v2727, %v3687
    %v3744 = vadd.f32 %v2728, %v3690
    %v3745 = vadd.f32 %v2729, %v3695
    %v3746 = vadd.f32 %v2730, %v3698
    %v3747 = vadd.f32 %v2731, %v3703
    %v3748 = vadd.f32 %v2732, %v3706
    %v3749 = vadd.f32 %v2733, %v3711
    %v3750 = vadd.f32 %v2734, %v3714
    %v3751 = vadd.f32 %v2735, %v3719
    %v3752 = vadd.f32 %v2736, %v3722
    %v3753 = vadd.f32 %v2737, %v3727
    %v3754 = vadd.f32 %v2738, %v3730
    %v3755 = vadd.f32 %v2739, %v3735
    %v3756 = vadd.f32 %v2740, %v3738
    %3757 = vst.msk [vmem:[%s8] sm:$0xff] %vm104, %v3741
    %3758 = vst.msk [vmem:[%s8 + $0x8] sm:$0xff] %vm104, %v3742
    %3759 = vst.msk [vmem:[%s8 + $0x10] sm:$0xff] %vm104, %v3743
    %3760 = vst.msk [vmem:[%s8 + $0x18] sm:$0xff] %vm104, %v3744
    %3761 = vst.msk [vmem:[%s8 + $0x20] sm:$0xff] %vm104, %v3745
    %3762 = vst.msk [vmem:[%s8 + $0x28] sm:$0xff] %vm104, %v3746
    %3763 = vst.msk [vmem:[%s8 + $0x30] sm:$0xff] %vm104, %v3747
    %3764 = vst.msk [vmem:[%s8 + $0x38] sm:$0xff] %vm104, %v3748
    %3765 = vst.msk [vmem:[%s8 + $0x40] sm:$0xff] %vm104, %v3749
    %3766 = vst.msk [vmem:[%s8 + $0x48] sm:$0xff] %vm104, %v3750
    %3767 = vst.msk [vmem:[%s8 + $0x50] sm:$0xff] %vm104, %v3751
    %3768 = vst.msk [vmem:[%s8 + $0x58] sm:$0xff] %vm104, %v3752
    %3769 = vst.msk [vmem:[%s8 + $0x60] sm:$0xff] %vm104, %v3753
    %3770 = vst.msk [vmem:[%s8 + $0x68] sm:$0xff] %vm104, %v3754
    %3771 = vst.msk [vmem:[%s8 + $0x70] sm:$0xff] %vm104, %v3755
    %3772 = vst.msk [vmem:[%s8 + $0x78] sm:$0xff] %vm104, %v3756
    // Predicated region
    $region46: #{tpu_custom_call.1} parent=1 // pred_check
      _
    $region47: #{tpu_custom_call.1} parent=1 // pred_check_branch
      %3774 = sbr.rel (0) target = $region49
    $region48: #{tpu_custom_call.1} parent=1 // pred_region
      _
    $region49: #{tpu_custom_call.1} parent=1 // pred_fallthru
      _
    // Predicated region
    $region50: #{tpu_custom_call.1} parent=1 // pred_check
      _
    $region51: #{tpu_custom_call.1} parent=1 // pred_check_branch
      %3776 = sbr.rel (0) target = $region53
    $region52: #{tpu_custom_call.1} parent=1 // pred_region
      _
    $region53: #{tpu_custom_call.1} parent=1 // pred_fallthru
      _
    %3777 = vsyncpa [#allocation3], 1
    %3778 = vsyncpa [#allocation5], 1

</llo_original>
